<compile_context>
chip_gen: v7x
topology: tpu7x:2x2x1
jax: 0.10.0
libtpu: 0.0.40
codegen_flags: <defaults>
</compile_context>

<pallas_src>
import functools

import jax
import jax.numpy as jnp
from jax.experimental import pallas as pl
from jax.experimental.pallas import tpu as pltpu


def _fused_lstm_stack_kernel(*refs, num_layers, num_dirs, B, T, H):
    """Entire multi-layer bidirectional LSTM stack in one kernel.

    Refs (in order):
      lens_ref : (B, 1) int32                     sequence lengths
      x_ref    : (T, B, D) f32                    time-major padded input
      per layer l: A_l (Din_l, 4*ND*H), B_l (Din_l, 4*ND*H),
                   Wh_l (ND*H, 4*ND*H), b_l (1, 4*ND*H)
      y_ref    : (T, B, ND*H) f32                 last layer output, natural time,
                                                  direction-interleaved [fwd|bwd]
      hn_ref   : (num_layers*ND, B, H) f32        final hidden states (torch order)
      cn_ref   : (num_layers*ND, B, H) f32        final cell states
      reps_ref : (B, ND*H) f32                    per-sequence representations
    """
    ND = num_dirs
    GW = ND * H          # width of h/c along lanes
    G4 = 4 * GW          # width of the gate tile
    f32 = jnp.float32

    n_in = 2 + 4 * num_layers
    lens_ref, x_ref = refs[0], refs[1]
    w_refs = refs[2:n_in]
    y_ref, hn_ref, cn_ref, reps_ref = refs[n_in:n_in + 4]

    # ---- packed-sequence masks, precomputed once and shared by all layers ----
    lens = lens_ref[...]                                          # (B, 1) int32
    col = jax.lax.broadcasted_iota(jnp.int32, (1, GW), 1)         # (1, GW)
    is_fwd_col = col < H                                          # fwd lanes
    masks = []
    for t in range(T):
        t_eff = jnp.where(is_fwd_col, jnp.int32(t), jnp.int32(T - 1 - t))
        masks.append((t_eff < lens).astype(f32))                  # (B, GW)

    if ND == 2:
        cmf = is_fwd_col.astype(f32)                              # (1, GW) fwd lanes
        cmb = 1.0 - cmf                                           # (1, GW) bwd lanes

    # Layer-1 per-step inputs (natural time).
    inp = [x_ref[t] for t in range(T)]                            # T x (B, D)

    ys = None
    h = None
    for l in range(num_layers):
        A = w_refs[4 * l][...]                                    # (Din, G4)
        Wh = w_refs[4 * l + 2][...]                               # (GW, G4)
        bias = w_refs[4 * l + 3][...]                             # (1, G4)

        # Hoisted input projection (bias folded in).  The backward direction's
        # time flip is absorbed by the A/B weight layout + static indexing.
        gx = []
        for t in range(T):
            g = jnp.dot(inp[t], A, preferred_element_type=f32) + bias
            if ND == 2:
                Bm = w_refs[4 * l + 1][...]                       # (Din, G4)
                g = g + jnp.dot(inp[T - 1 - t], Bm, preferred_element_type=f32)
            gx.append(g)                                          # (B, G4)

        # Recurrence: fwd lanes process time t, bwd lanes process time T-1-t.
        h = jnp.zeros((B, GW), f32)
        c = jnp.zeros((B, GW), f32)
        ys = []
        for t in range(T):
            gates = gx[t] + jnp.dot(h, Wh, preferred_element_type=f32)   # (B, G4)
            # Single EUP pass: g-gate columns were pre-scaled by 2, so
            # tanh(0.5*gates) is tanh() there and 0.5*th+0.5 is sigmoid() elsewhere.
            th = jnp.tanh(0.5 * gates)
            i_g = 0.5 * th[:, 0 * GW:1 * GW] + 0.5
            f_g = 0.5 * th[:, 1 * GW:2 * GW] + 0.5
            g_g = th[:, 2 * GW:3 * GW]
            o_g = 0.5 * th[:, 3 * GW:4 * GW] + 0.5
            c_new = f_g * c + i_g * g_g
            h_new = o_g * jnp.tanh(c_new)
            # Packed-sequence semantics: freeze state / zero output past length.
            m = masks[t]
            h = h + m * (h_new - h)
            c = c + m * (c_new - c)
            ys.append(m * h_new)                                  # (B, GW)

        # Final states in PyTorch order: [l0_fwd, l0_bwd, l1_fwd, l1_bwd, ...].
        for d in range(ND):
            hn_ref[l * ND + d] = h[:, d * H:(d + 1) * H]
            cn_ref[l * ND + d] = c[:, d * H:(d + 1) * H]

        inp = ys   # next layer consumes this layer's per-step outputs (in vregs)

    # ---- last layer's padded output, natural time, direction-interleaved ----
    for t in range(T):
        if ND == 2:
            y_ref[t] = ys[t] * cmf + ys[T - 1 - t] * cmb
        else:
            y_ref[t] = ys[t]

    # Per-sequence representations == final hidden state of the last layer:
    # [fwd output at len-1 | bwd output at t=0]  (state is frozen past length).
    reps_ref[...] = h


class ProductSequencesLSTMPallas:
    """JAX/Pallas equivalent of ProductSequencesLSTM (eval-time forward pass)."""

    def __init__(self, d_input, d_output, num_layers, is_bidirectional, dropout, key):
        assert d_output % 2 == 0, "Output dimension must be divisible by 2."
        self.is_bidirectional = is_bidirectional
        self.hidden = d_output // 2 if is_bidirectional else d_output
        self.num_layers = num_layers
        self.dropout = dropout   # TODO(synk): train-time only; not applied (eval).
        ND = 2 if is_bidirectional else 1
        self.num_dirs = ND
        H = self.hidden
        bound = 1.0 / float(H) ** 0.5
        # Parameters kept in PyTorch-native layout (gate order i, f, g, o).
        self.params = []
        for layer in range(num_layers):
            d_in = d_input if layer == 0 else H * ND
            layer_params = []
            for _ in range(ND):
                key, k1, k2, k3, k4 = jax.random.split(key, 5)
                w_ih = jax.random.uniform(k1, (4 * H, d_in), jnp.float32, -bound, bound)
                w_hh = jax.random.uniform(k2, (4 * H, H), jnp.float32, -bound, bound)
                b_ih = jax.random.uniform(k3, (4 * H,), jnp.float32, -bound, bound)
                b_hh = jax.random.uniform(k4, (4 * H,), jnp.float32, -bound, bound)
                layer_params.append((w_ih, w_hh, b_ih, b_hh))
            self.params.append(layer_params)
        self.kernel_weights = self._build_kernel_weights()

    # ---- one-time weight re-layout for the fused kernel ----------------------

    def _build_kernel_weights(self):
        ND, H, L = self.num_dirs, self.hidden, self.num_layers
        G4 = 4 * ND * H
        # Pre-scale g-gate columns by 2 so the kernel needs a single tanh pass.
        gscale = jnp.ones((G4,), jnp.float32).at[2 * ND * H:3 * ND * H].set(2.0)

        def place(mat_t, d):
            # mat_t: (rows, 4H) in gate order i,f,g,o.  Scatter each gate's H
            # columns into that gate's direction-d block of a (rows, G4) matrix.
            rows = mat_t.shape[0]
            out = jnp.zeros((rows, G4), jnp.float32)
            for g in range(4):
                out = out.at[:, g * ND * H + d * H: g * ND * H + (d + 1) * H].set(
                    mat_t[:, g * H:(g + 1) * H])
            return out

        weights = []
        for l in range(L):
            px, ph, pb = [], [], []
            for d, (w_ih, w_hh, b_ih, b_hh) in enumerate(self.params[l]):
                px.append(place(jnp.transpose(w_ih), d))               # (Din, G4)
                ph.append(place(jnp.transpose(w_hh), d))               # (H, G4)
                pb.append(place((b_ih + b_hh)[None, :], d))            # (1, G4)
            Wh = jnp.concatenate(ph, axis=0) if ND == 2 else ph[0]     # (ND*H, G4)
            bias = pb[0] if ND == 1 else pb[0] + pb[1]                 # disjoint cols
            if ND == 2:
                if l == 0:
                    # Layer-1 input has no direction structure.
                    A, Bm = px[0], px[1]
                else:
                    # Deeper layers consume the previous layer's step-order outputs
                    # [fwd(t) | bwd(T-1-t)]; split the input rows accordingly so
                    #   gx[t] = inp[t] @ A + inp[T-1-t] @ B  is exact.
                    A = jnp.concatenate([px[0][:H], px[1][H:]], axis=0)
                    Bm = jnp.concatenate([px[1][:H], px[0][H:]], axis=0)
            else:
                A = px[0]
                Bm = jnp.zeros_like(A)
            weights.append((A * gscale, Bm * gscale, Wh * gscale, bias * gscale))
        return weights

    # ---- Pallas path ----------------------------------------------------------

    def _run_stack_pallas(self, x_padded, lengths):
        B, T, _ = x_padded.shape
        ND, H, L = self.num_dirs, self.hidden, self.num_layers
        x_tm = jnp.transpose(x_padded, (1, 0, 2)).astype(jnp.float32)   # (T, B, D)
        lens = lengths.astype(jnp.int32).reshape(B, 1)

        kernel = functools.partial(_fused_lstm_stack_kernel, num_layers=L,
                                   num_dirs=ND, B=B, T=T, H=H)
        vmem = pl.BlockSpec(memory_space=pltpu.MemorySpace.VMEM)
        n_in = 2 + 4 * L
        flat_w = []
        for l in range(L):
            flat_w.extend(self.kernel_weights[l])

        y_tm, h_n, c_n, reps = pl.pallas_call(
            kernel,
            out_shape=(
                jax.ShapeDtypeStruct((T, B, ND * H), jnp.float32),   # y (time-major)
                jax.ShapeDtypeStruct((L * ND, B, H), jnp.float32),   # h_n
                jax.ShapeDtypeStruct((L * ND, B, H), jnp.float32),   # c_n
                jax.ShapeDtypeStruct((B, ND * H), jnp.float32),      # reps
            ),
            in_specs=[vmem] * n_in,
            out_specs=(vmem, vmem, vmem, vmem),
        )(lens, x_tm, *flat_w)

        output = jnp.transpose(y_tm, (1, 0, 2))                       # (B, T, ND*H)
        return reps, output, h_n, c_n

    def __call__(self, x_padded, lengths):
        reps, output, h_n, c_n = self._run_stack_pallas(x_padded, lengths)
        # (per-seq reps, "packed output" proxy = (padded output, lengths), (h_n, c_n))
        return reps, (output, lengths), (h_n, c_n)

    # ---- pure-JAX reference (lax.scan) for validation -------------------------

    def reference(self, x_padded, lengths):
        x_tm = jnp.transpose(x_padded, (1, 0, 2))
        cur = x_tm
        h_list, c_list = [], []
        for layer in range(self.num_layers):
            outs = []
            for d, (w_ih, w_hh, b_ih, b_hh) in enumerate(self.params[layer]):
                y, h_n, c_n = _ref_lstm_direction(cur, lengths, w_ih, w_hh, b_ih, b_hh,
                                                  reverse=(d == 1))
                outs.append(y)
                h_list.append(h_n)
                c_list.append(c_n)
            cur = jnp.concatenate(outs, axis=-1) if len(outs) > 1 else outs[0]
        output = jnp.transpose(cur, (1, 0, 2))
        reps = self.extract_sequence_representations(output, lengths)
        return reps, (output, lengths), (jnp.stack(h_list, 0), jnp.stack(c_list, 0))

    # ---- representation extraction (matches the torch module) -----------------

    def extract_sequence_representations(self, output, lengths):
        B = output.shape[0]
        last_idx = (lengths - 1).astype(jnp.int32)
        batch_idx = jnp.arange(B)
        if self.is_bidirectional:
            H = self.hidden
            fwd = output[..., :H]
            bwd = output[..., H:]
            final_fwd = fwd[batch_idx, last_idx]                 # (B, H)
            final_bwd = bwd[:, 0, :]                             # (B, H)
            return jnp.concatenate([final_fwd, final_bwd], axis=1)
        return output[batch_idx, last_idx]


def _ref_lstm_direction(x_tm, lengths, w_ih, w_hh, b_ih, b_hh, *, reverse):
    """Pure-JAX reference (lax.scan) for one direction of one layer."""
    T, B, _ = x_tm.shape
    H = w_hh.shape[1]

    def step(carry, t):
        h, c = carry
        t_act = (T - 1 - t) if reverse else t
        x = x_tm[t_act]
        gates = x @ w_ih.T + h @ w_hh.T + b_ih + b_hh
        i = jax.nn.sigmoid(gates[:, :H])
        f = jax.nn.sigmoid(gates[:, H:2 * H])
        g = jnp.tanh(gates[:, 2 * H:3 * H])
        o = jax.nn.sigmoid(gates[:, 3 * H:])
        c_new = f * c + i * g
        h_new = o * jnp.tanh(c_new)
        mask = (lengths > t_act)[:, None]
        h2 = jnp.where(mask, h_new, h)
        c2 = jnp.where(mask, c_new, c)
        y = jnp.where(mask, h_new, 0.0)
        return (h2, c2), y

    init = (jnp.zeros((B, H), x_tm.dtype), jnp.zeros((B, H), x_tm.dtype))
    (h_n, c_n), ys = jax.lax.scan(step, init, jnp.arange(T))
    y_tm = jnp.flip(ys, axis=0) if reverse else ys
    return y_tm, h_n, c_n


if __name__ == "__main__":
    # Module config: d_input=16, d_output=32, num_layers=2, bidirectional, dropout=0.0
    D_INPUT, D_OUTPUT, NUM_LAYERS = 16, 32, 2
    B, T = 4, 8

    key = jax.random.PRNGKey(0)
    key, k_x, k_model = jax.random.split(key, 3)

    lengths = jnp.array([8, 5, 3, 6], dtype=jnp.int32)   # all >= 1 (packed-seq req.)
    x = jax.random.normal(k_x, (B, T, D_INPUT), dtype=jnp.float32)
    # Zero out padded positions (mimics what pad_packed_sequence would give back).
    valid = (jnp.arange(T)[None, :] < lengths[:, None])[:, :, None]
    x = x * valid.astype(x.dtype)

    model = ProductSequencesLSTMPallas(D_INPUT, D_OUTPUT, NUM_LAYERS,
                                       is_bidirectional=True, dropout=0.0,
                                       key=k_model)

    fwd = jax.jit(model.__call__)
    reps, (padded_out, out_lengths), (h_n, c_n) = fwd(x, lengths)
    jax.block_until_ready(reps)

    # Validate against a pure-JAX reference of the same computation.
    r_reps, (r_out, _), (r_h, r_c) = model.reference(x, lengths)
    assert reps.shape == (B, D_OUTPUT)
    assert padded_out.shape == (B, T, D_OUTPUT)
    assert h_n.shape == (NUM_LAYERS * 2, B, D_OUTPUT // 2)
    assert jnp.allclose(reps, r_reps, atol=1e-4, rtol=1e-4)
    assert jnp.allclose(padded_out, r_out, atol=1e-4, rtol=1e-4)
    assert jnp.allclose(h_n, r_h, atol=1e-4, rtol=1e-4)
    assert jnp.allclose(c_n, r_c, atol=1e-4, rtol=1e-4)

    print("KERNEL_OK")
</pallas_src>

<mosaic_0001>
module attributes {stable_mosaic.version = 11 : i64} {
  func.func @_fused_lstm_stack_kernel(%arg0: memref<4x1xi32, #tpu.memory_space<vmem>>, %arg1: memref<8x4x16xf32, #tpu.memory_space<vmem>>, %arg2: memref<16x128xf32, #tpu.memory_space<vmem>>, %arg3: memref<16x128xf32, #tpu.memory_space<vmem>>, %arg4: memref<32x128xf32, #tpu.memory_space<vmem>>, %arg5: memref<1x128xf32, #tpu.memory_space<vmem>>, %arg6: memref<32x128xf32, #tpu.memory_space<vmem>>, %arg7: memref<32x128xf32, #tpu.memory_space<vmem>>, %arg8: memref<32x128xf32, #tpu.memory_space<vmem>>, %arg9: memref<1x128xf32, #tpu.memory_space<vmem>>, %arg10: memref<8x4x32xf32, #tpu.memory_space<vmem>>, %arg11: memref<4x4x16xf32, #tpu.memory_space<vmem>>, %arg12: memref<4x4x16xf32, #tpu.memory_space<vmem>>, %arg13: memref<4x32xf32, #tpu.memory_space<vmem>>) attributes {dimension_semantics = [], scalar_prefetch = 0 : i64, scratch_operands = 0 : i64, tpu.core_type = #tpu.core_type<tc>} {
    %c0 = arith.constant 0 : index
    %c0_0 = arith.constant 0 : index
    %0 = vector.load %arg0[%c0, %c0_0] : memref<4x1xi32, #tpu.memory_space<vmem>>, vector<4x1xi32>
    %1 = tpu.iota {dimensions = array<i32: 1>} : vector<1x32xi32>
    %c16_i32 = arith.constant 16 : i32
    %2 = vector.broadcast %c16_i32 : i32 to vector<1x32xi32>
    %3 = arith.cmpi slt, %1, %2 : vector<1x32xi32>
    %c0_i32 = arith.constant 0 : i32
    %c7_i32 = arith.constant 7 : i32
    %4 = vector.broadcast %c0_i32 : i32 to vector<1x32xi32>
    %5 = vector.broadcast %c7_i32 : i32 to vector<1x32xi32>
    %6 = arith.select %3, %4, %5 : vector<1x32xi1>, vector<1x32xi32>
    %7 = vector.broadcast %6 : vector<1x32xi32> to vector<4x32xi32>
    %8 = vector.broadcast %0 : vector<4x1xi32> to vector<4x32xi32>
    %9 = arith.cmpi slt, %7, %8 : vector<4x32xi32>
    %10 = arith.extui %9 : vector<4x32xi1> to vector<4x32xi32>
    %11 = arith.sitofp %10 : vector<4x32xi32> to vector<4x32xf32>
    %c1_i32 = arith.constant 1 : i32
    %c6_i32 = arith.constant 6 : i32
    %12 = vector.broadcast %c1_i32 : i32 to vector<1x32xi32>
    %13 = vector.broadcast %c6_i32 : i32 to vector<1x32xi32>
    %14 = arith.select %3, %12, %13 : vector<1x32xi1>, vector<1x32xi32>
    %15 = vector.broadcast %14 : vector<1x32xi32> to vector<4x32xi32>
    %16 = vector.broadcast %0 : vector<4x1xi32> to vector<4x32xi32>
    %17 = arith.cmpi slt, %15, %16 : vector<4x32xi32>
    %18 = arith.extui %17 : vector<4x32xi1> to vector<4x32xi32>
    %19 = arith.sitofp %18 : vector<4x32xi32> to vector<4x32xf32>
    %c2_i32 = arith.constant 2 : i32
    %c5_i32 = arith.constant 5 : i32
    %20 = vector.broadcast %c2_i32 : i32 to vector<1x32xi32>
    %21 = vector.broadcast %c5_i32 : i32 to vector<1x32xi32>
    %22 = arith.select %3, %20, %21 : vector<1x32xi1>, vector<1x32xi32>
    %23 = vector.broadcast %22 : vector<1x32xi32> to vector<4x32xi32>
    %24 = vector.broadcast %0 : vector<4x1xi32> to vector<4x32xi32>
    %25 = arith.cmpi slt, %23, %24 : vector<4x32xi32>
    %26 = arith.extui %25 : vector<4x32xi1> to vector<4x32xi32>
    %27 = arith.sitofp %26 : vector<4x32xi32> to vector<4x32xf32>
    %c3_i32 = arith.constant 3 : i32
    %c4_i32 = arith.constant 4 : i32
    %28 = vector.broadcast %c3_i32 : i32 to vector<1x32xi32>
    %29 = vector.broadcast %c4_i32 : i32 to vector<1x32xi32>
    %30 = arith.select %3, %28, %29 : vector<1x32xi1>, vector<1x32xi32>
    %31 = vector.broadcast %30 : vector<1x32xi32> to vector<4x32xi32>
    %32 = vector.broadcast %0 : vector<4x1xi32> to vector<4x32xi32>
    %33 = arith.cmpi slt, %31, %32 : vector<4x32xi32>
    %34 = arith.extui %33 : vector<4x32xi1> to vector<4x32xi32>
    %35 = arith.sitofp %34 : vector<4x32xi32> to vector<4x32xf32>
    %c4_i32_1 = arith.constant 4 : i32
    %c3_i32_2 = arith.constant 3 : i32
    %36 = vector.broadcast %c4_i32_1 : i32 to vector<1x32xi32>
    %37 = vector.broadcast %c3_i32_2 : i32 to vector<1x32xi32>
    %38 = arith.select %3, %36, %37 : vector<1x32xi1>, vector<1x32xi32>
    %39 = vector.broadcast %38 : vector<1x32xi32> to vector<4x32xi32>
    %40 = vector.broadcast %0 : vector<4x1xi32> to vector<4x32xi32>
    %41 = arith.cmpi slt, %39, %40 : vector<4x32xi32>
    %42 = arith.extui %41 : vector<4x32xi1> to vector<4x32xi32>
    %43 = arith.sitofp %42 : vector<4x32xi32> to vector<4x32xf32>
    %c5_i32_3 = arith.constant 5 : i32
    %c2_i32_4 = arith.constant 2 : i32
    %44 = vector.broadcast %c5_i32_3 : i32 to vector<1x32xi32>
    %45 = vector.broadcast %c2_i32_4 : i32 to vector<1x32xi32>
    %46 = arith.select %3, %44, %45 : vector<1x32xi1>, vector<1x32xi32>
    %47 = vector.broadcast %46 : vector<1x32xi32> to vector<4x32xi32>
    %48 = vector.broadcast %0 : vector<4x1xi32> to vector<4x32xi32>
    %49 = arith.cmpi slt, %47, %48 : vector<4x32xi32>
    %50 = arith.extui %49 : vector<4x32xi1> to vector<4x32xi32>
    %51 = arith.sitofp %50 : vector<4x32xi32> to vector<4x32xf32>
    %c6_i32_5 = arith.constant 6 : i32
    %c1_i32_6 = arith.constant 1 : i32
    %52 = vector.broadcast %c6_i32_5 : i32 to vector<1x32xi32>
    %53 = vector.broadcast %c1_i32_6 : i32 to vector<1x32xi32>
    %54 = arith.select %3, %52, %53 : vector<1x32xi1>, vector<1x32xi32>
    %55 = vector.broadcast %54 : vector<1x32xi32> to vector<4x32xi32>
    %56 = vector.broadcast %0 : vector<4x1xi32> to vector<4x32xi32>
    %57 = arith.cmpi slt, %55, %56 : vector<4x32xi32>
    %58 = arith.extui %57 : vector<4x32xi1> to vector<4x32xi32>
    %59 = arith.sitofp %58 : vector<4x32xi32> to vector<4x32xf32>
    %c7_i32_7 = arith.constant 7 : i32
    %c0_i32_8 = arith.constant 0 : i32
    %60 = vector.broadcast %c7_i32_7 : i32 to vector<1x32xi32>
    %61 = vector.broadcast %c0_i32_8 : i32 to vector<1x32xi32>
    %62 = arith.select %3, %60, %61 : vector<1x32xi1>, vector<1x32xi32>
    %63 = vector.broadcast %62 : vector<1x32xi32> to vector<4x32xi32>
    %64 = vector.broadcast %0 : vector<4x1xi32> to vector<4x32xi32>
    %65 = arith.cmpi slt, %63, %64 : vector<4x32xi32>
    %66 = arith.extui %65 : vector<4x32xi1> to vector<4x32xi32>
    %67 = arith.sitofp %66 : vector<4x32xi32> to vector<4x32xf32>
    %68 = arith.extui %3 : vector<1x32xi1> to vector<1x32xi32>
    %69 = arith.sitofp %68 : vector<1x32xi32> to vector<1x32xf32>
    %cst = arith.constant 1.000000e+00 : f32
    %70 = vector.broadcast %cst : f32 to vector<1x32xf32>
    %71 = arith.subf %70, %69 : vector<1x32xf32>
    %c0_9 = arith.constant 0 : index
    %c0_10 = arith.constant 0 : index
    %c0_11 = arith.constant 0 : index
    %72 = vector.load %arg1[%c0_9, %c0_10, %c0_11] : memref<8x4x16xf32, #tpu.memory_space<vmem>>, vector<1x4x16xf32>
    %73 = vector.shape_cast %72 : vector<1x4x16xf32> to vector<4x16xf32>
    %c1 = arith.constant 1 : index
    %c0_12 = arith.constant 0 : index
    %c0_13 = arith.constant 0 : index
    %74 = vector.load %arg1[%c1, %c0_12, %c0_13] : memref<8x4x16xf32, #tpu.memory_space<vmem>>, vector<1x4x16xf32>
    %75 = vector.shape_cast %74 : vector<1x4x16xf32> to vector<4x16xf32>
    %c2 = arith.constant 2 : index
    %c0_14 = arith.constant 0 : index
    %c0_15 = arith.constant 0 : index
    %76 = vector.load %arg1[%c2, %c0_14, %c0_15] : memref<8x4x16xf32, #tpu.memory_space<vmem>>, vector<1x4x16xf32>
    %77 = vector.shape_cast %76 : vector<1x4x16xf32> to vector<4x16xf32>
    %c3 = arith.constant 3 : index
    %c0_16 = arith.constant 0 : index
    %c0_17 = arith.constant 0 : index
    %78 = vector.load %arg1[%c3, %c0_16, %c0_17] : memref<8x4x16xf32, #tpu.memory_space<vmem>>, vector<1x4x16xf32>
    %79 = vector.shape_cast %78 : vector<1x4x16xf32> to vector<4x16xf32>
    %c4 = arith.constant 4 : index
    %c0_18 = arith.constant 0 : index
    %c0_19 = arith.constant 0 : index
    %80 = vector.load %arg1[%c4, %c0_18, %c0_19] : memref<8x4x16xf32, #tpu.memory_space<vmem>>, vector<1x4x16xf32>
    %81 = vector.shape_cast %80 : vector<1x4x16xf32> to vector<4x16xf32>
    %c5 = arith.constant 5 : index
    %c0_20 = arith.constant 0 : index
    %c0_21 = arith.constant 0 : index
    %82 = vector.load %arg1[%c5, %c0_20, %c0_21] : memref<8x4x16xf32, #tpu.memory_space<vmem>>, vector<1x4x16xf32>
    %83 = vector.shape_cast %82 : vector<1x4x16xf32> to vector<4x16xf32>
    %c6 = arith.constant 6 : index
    %c0_22 = arith.constant 0 : index
    %c0_23 = arith.constant 0 : index
    %84 = vector.load %arg1[%c6, %c0_22, %c0_23] : memref<8x4x16xf32, #tpu.memory_space<vmem>>, vector<1x4x16xf32>
    %85 = vector.shape_cast %84 : vector<1x4x16xf32> to vector<4x16xf32>
    %c7 = arith.constant 7 : index
    %c0_24 = arith.constant 0 : index
    %c0_25 = arith.constant 0 : index
    %86 = vector.load %arg1[%c7, %c0_24, %c0_25] : memref<8x4x16xf32, #tpu.memory_space<vmem>>, vector<1x4x16xf32>
    %87 = vector.shape_cast %86 : vector<1x4x16xf32> to vector<4x16xf32>
    %c0_26 = arith.constant 0 : index
    %c0_27 = arith.constant 0 : index
    %88 = vector.load %arg2[%c0_26, %c0_27] : memref<16x128xf32, #tpu.memory_space<vmem>>, vector<16x128xf32>
    %c0_28 = arith.constant 0 : index
    %c0_29 = arith.constant 0 : index
    %89 = vector.load %arg4[%c0_28, %c0_29] : memref<32x128xf32, #tpu.memory_space<vmem>>, vector<32x128xf32>
    %c0_30 = arith.constant 0 : index
    %c0_31 = arith.constant 0 : index
    %90 = vector.load %arg5[%c0_30, %c0_31] : memref<1x128xf32, #tpu.memory_space<vmem>>, vector<1x128xf32>
    %cst_32 = arith.constant dense<0.000000e+00> : vector<4x128xf32>
    %91 = tpu.matmul %73, %88, %cst_32 {dimension_numbers = #tpu.dot_dimension_numbers<[1], [0], [0], [1], [0, 0, 1, 1], [], []>} : vector<4x16xf32>, vector<16x128xf32>, vector<4x128xf32> -> vector<4x128xf32>
    %92 = vector.broadcast %90 : vector<1x128xf32> to vector<4x128xf32>
    %93 = arith.addf %91, %92 : vector<4x128xf32>
    %c0_33 = arith.constant 0 : index
    %c0_34 = arith.constant 0 : index
    %94 = vector.load %arg3[%c0_33, %c0_34] : memref<16x128xf32, #tpu.memory_space<vmem>>, vector<16x128xf32>
    %cst_35 = arith.constant dense<0.000000e+00> : vector<4x128xf32>
    %95 = tpu.matmul %87, %94, %cst_35 {dimension_numbers = #tpu.dot_dimension_numbers<[1], [0], [0], [1], [0, 0, 1, 1], [], []>} : vector<4x16xf32>, vector<16x128xf32>, vector<4x128xf32> -> vector<4x128xf32>
    %96 = arith.addf %93, %95 : vector<4x128xf32>
    %cst_36 = arith.constant dense<0.000000e+00> : vector<4x128xf32>
    %97 = tpu.matmul %75, %88, %cst_36 {dimension_numbers = #tpu.dot_dimension_numbers<[1], [0], [0], [1], [0, 0, 1, 1], [], []>} : vector<4x16xf32>, vector<16x128xf32>, vector<4x128xf32> -> vector<4x128xf32>
    %98 = vector.broadcast %90 : vector<1x128xf32> to vector<4x128xf32>
    %99 = arith.addf %97, %98 : vector<4x128xf32>
    %c0_37 = arith.constant 0 : index
    %c0_38 = arith.constant 0 : index
    %100 = vector.load %arg3[%c0_37, %c0_38] : memref<16x128xf32, #tpu.memory_space<vmem>>, vector<16x128xf32>
    %cst_39 = arith.constant dense<0.000000e+00> : vector<4x128xf32>
    %101 = tpu.matmul %85, %100, %cst_39 {dimension_numbers = #tpu.dot_dimension_numbers<[1], [0], [0], [1], [0, 0, 1, 1], [], []>} : vector<4x16xf32>, vector<16x128xf32>, vector<4x128xf32> -> vector<4x128xf32>
    %102 = arith.addf %99, %101 : vector<4x128xf32>
    %cst_40 = arith.constant dense<0.000000e+00> : vector<4x128xf32>
    %103 = tpu.matmul %77, %88, %cst_40 {dimension_numbers = #tpu.dot_dimension_numbers<[1], [0], [0], [1], [0, 0, 1, 1], [], []>} : vector<4x16xf32>, vector<16x128xf32>, vector<4x128xf32> -> vector<4x128xf32>
    %104 = vector.broadcast %90 : vector<1x128xf32> to vector<4x128xf32>
    %105 = arith.addf %103, %104 : vector<4x128xf32>
    %c0_41 = arith.constant 0 : index
    %c0_42 = arith.constant 0 : index
    %106 = vector.load %arg3[%c0_41, %c0_42] : memref<16x128xf32, #tpu.memory_space<vmem>>, vector<16x128xf32>
    %cst_43 = arith.constant dense<0.000000e+00> : vector<4x128xf32>
    %107 = tpu.matmul %83, %106, %cst_43 {dimension_numbers = #tpu.dot_dimension_numbers<[1], [0], [0], [1], [0, 0, 1, 1], [], []>} : vector<4x16xf32>, vector<16x128xf32>, vector<4x128xf32> -> vector<4x128xf32>
    %108 = arith.addf %105, %107 : vector<4x128xf32>
    %cst_44 = arith.constant dense<0.000000e+00> : vector<4x128xf32>
    %109 = tpu.matmul %79, %88, %cst_44 {dimension_numbers = #tpu.dot_dimension_numbers<[1], [0], [0], [1], [0, 0, 1, 1], [], []>} : vector<4x16xf32>, vector<16x128xf32>, vector<4x128xf32> -> vector<4x128xf32>
    %110 = vector.broadcast %90 : vector<1x128xf32> to vector<4x128xf32>
    %111 = arith.addf %109, %110 : vector<4x128xf32>
    %c0_45 = arith.constant 0 : index
    %c0_46 = arith.constant 0 : index
    %112 = vector.load %arg3[%c0_45, %c0_46] : memref<16x128xf32, #tpu.memory_space<vmem>>, vector<16x128xf32>
    %cst_47 = arith.constant dense<0.000000e+00> : vector<4x128xf32>
    %113 = tpu.matmul %81, %112, %cst_47 {dimension_numbers = #tpu.dot_dimension_numbers<[1], [0], [0], [1], [0, 0, 1, 1], [], []>} : vector<4x16xf32>, vector<16x128xf32>, vector<4x128xf32> -> vector<4x128xf32>
    %114 = arith.addf %111, %113 : vector<4x128xf32>
    %cst_48 = arith.constant dense<0.000000e+00> : vector<4x128xf32>
    %115 = tpu.matmul %81, %88, %cst_48 {dimension_numbers = #tpu.dot_dimension_numbers<[1], [0], [0], [1], [0, 0, 1, 1], [], []>} : vector<4x16xf32>, vector<16x128xf32>, vector<4x128xf32> -> vector<4x128xf32>
    %116 = vector.broadcast %90 : vector<1x128xf32> to vector<4x128xf32>
    %117 = arith.addf %115, %116 : vector<4x128xf32>
    %c0_49 = arith.constant 0 : index
    %c0_50 = arith.constant 0 : index
    %118 = vector.load %arg3[%c0_49, %c0_50] : memref<16x128xf32, #tpu.memory_space<vmem>>, vector<16x128xf32>
    %cst_51 = arith.constant dense<0.000000e+00> : vector<4x128xf32>
    %119 = tpu.matmul %79, %118, %cst_51 {dimension_numbers = #tpu.dot_dimension_numbers<[1], [0], [0], [1], [0, 0, 1, 1], [], []>} : vector<4x16xf32>, vector<16x128xf32>, vector<4x128xf32> -> vector<4x128xf32>
    %120 = arith.addf %117, %119 : vector<4x128xf32>
    %cst_52 = arith.constant dense<0.000000e+00> : vector<4x128xf32>
    %121 = tpu.matmul %83, %88, %cst_52 {dimension_numbers = #tpu.dot_dimension_numbers<[1], [0], [0], [1], [0, 0, 1, 1], [], []>} : vector<4x16xf32>, vector<16x128xf32>, vector<4x128xf32> -> vector<4x128xf32>
    %122 = vector.broadcast %90 : vector<1x128xf32> to vector<4x128xf32>
    %123 = arith.addf %121, %122 : vector<4x128xf32>
    %c0_53 = arith.constant 0 : index
    %c0_54 = arith.constant 0 : index
    %124 = vector.load %arg3[%c0_53, %c0_54] : memref<16x128xf32, #tpu.memory_space<vmem>>, vector<16x128xf32>
    %cst_55 = arith.constant dense<0.000000e+00> : vector<4x128xf32>
    %125 = tpu.matmul %77, %124, %cst_55 {dimension_numbers = #tpu.dot_dimension_numbers<[1], [0], [0], [1], [0, 0, 1, 1], [], []>} : vector<4x16xf32>, vector<16x128xf32>, vector<4x128xf32> -> vector<4x128xf32>
    %126 = arith.addf %123, %125 : vector<4x128xf32>
    %cst_56 = arith.constant dense<0.000000e+00> : vector<4x128xf32>
    %127 = tpu.matmul %85, %88, %cst_56 {dimension_numbers = #tpu.dot_dimension_numbers<[1], [0], [0], [1], [0, 0, 1, 1], [], []>} : vector<4x16xf32>, vector<16x128xf32>, vector<4x128xf32> -> vector<4x128xf32>
    %128 = vector.broadcast %90 : vector<1x128xf32> to vector<4x128xf32>
    %129 = arith.addf %127, %128 : vector<4x128xf32>
    %c0_57 = arith.constant 0 : index
    %c0_58 = arith.constant 0 : index
    %130 = vector.load %arg3[%c0_57, %c0_58] : memref<16x128xf32, #tpu.memory_space<vmem>>, vector<16x128xf32>
    %cst_59 = arith.constant dense<0.000000e+00> : vector<4x128xf32>
    %131 = tpu.matmul %75, %130, %cst_59 {dimension_numbers = #tpu.dot_dimension_numbers<[1], [0], [0], [1], [0, 0, 1, 1], [], []>} : vector<4x16xf32>, vector<16x128xf32>, vector<4x128xf32> -> vector<4x128xf32>
    %132 = arith.addf %129, %131 : vector<4x128xf32>
    %cst_60 = arith.constant dense<0.000000e+00> : vector<4x128xf32>
    %133 = tpu.matmul %87, %88, %cst_60 {dimension_numbers = #tpu.dot_dimension_numbers<[1], [0], [0], [1], [0, 0, 1, 1], [], []>} : vector<4x16xf32>, vector<16x128xf32>, vector<4x128xf32> -> vector<4x128xf32>
    %134 = vector.broadcast %90 : vector<1x128xf32> to vector<4x128xf32>
    %135 = arith.addf %133, %134 : vector<4x128xf32>
    %c0_61 = arith.constant 0 : index
    %c0_62 = arith.constant 0 : index
    %136 = vector.load %arg3[%c0_61, %c0_62] : memref<16x128xf32, #tpu.memory_space<vmem>>, vector<16x128xf32>
    %cst_63 = arith.constant dense<0.000000e+00> : vector<4x128xf32>
    %137 = tpu.matmul %73, %136, %cst_63 {dimension_numbers = #tpu.dot_dimension_numbers<[1], [0], [0], [1], [0, 0, 1, 1], [], []>} : vector<4x16xf32>, vector<16x128xf32>, vector<4x128xf32> -> vector<4x128xf32>
    %138 = arith.addf %135, %137 : vector<4x128xf32>
    %cst_64 = arith.constant 0.000000e+00 : f32
    %139 = vector.broadcast %cst_64 : f32 to vector<4x32xf32>
    %cst_65 = arith.constant 0.000000e+00 : f32
    %140 = vector.broadcast %cst_65 : f32 to vector<4x32xf32>
    %cst_66 = arith.constant dense<0.000000e+00> : vector<4x128xf32>
    %141 = tpu.matmul %139, %89, %cst_66 {dimension_numbers = #tpu.dot_dimension_numbers<[1], [0], [0], [1], [0, 0, 1, 1], [], []>} : vector<4x32xf32>, vector<32x128xf32>, vector<4x128xf32> -> vector<4x128xf32>
    %142 = arith.addf %96, %141 : vector<4x128xf32>
    %cst_67 = arith.constant 5.000000e-01 : f32
    %143 = vector.broadcast %cst_67 : f32 to vector<4x128xf32>
    %144 = arith.mulf %143, %142 : vector<4x128xf32>
    %145 = math.tanh %144 : vector<4x128xf32>
    %146 = vector.extract_strided_slice %145 {offsets = [0, 0], sizes = [4, 32], strides = [1, 1]} : vector<4x128xf32> to vector<4x32xf32>
    %cst_68 = arith.constant 5.000000e-01 : f32
    %147 = vector.broadcast %cst_68 : f32 to vector<4x32xf32>
    %148 = arith.mulf %147, %146 : vector<4x32xf32>
    %cst_69 = arith.constant 5.000000e-01 : f32
    %149 = vector.broadcast %cst_69 : f32 to vector<4x32xf32>
    %150 = arith.addf %148, %149 : vector<4x32xf32>
    %151 = vector.extract_strided_slice %145 {offsets = [0, 32], sizes = [4, 32], strides = [1, 1]} : vector<4x128xf32> to vector<4x32xf32>
    %cst_70 = arith.constant 5.000000e-01 : f32
    %152 = vector.broadcast %cst_70 : f32 to vector<4x32xf32>
    %153 = arith.mulf %152, %151 : vector<4x32xf32>
    %cst_71 = arith.constant 5.000000e-01 : f32
    %154 = vector.broadcast %cst_71 : f32 to vector<4x32xf32>
    %155 = arith.addf %153, %154 : vector<4x32xf32>
    %156 = vector.extract_strided_slice %145 {offsets = [0, 64], sizes = [4, 32], strides = [1, 1]} : vector<4x128xf32> to vector<4x32xf32>
    %157 = vector.extract_strided_slice %145 {offsets = [0, 96], sizes = [4, 32], strides = [1, 1]} : vector<4x128xf32> to vector<4x32xf32>
    %cst_72 = arith.constant 5.000000e-01 : f32
    %158 = vector.broadcast %cst_72 : f32 to vector<4x32xf32>
    %159 = arith.mulf %158, %157 : vector<4x32xf32>
    %cst_73 = arith.constant 5.000000e-01 : f32
    %160 = vector.broadcast %cst_73 : f32 to vector<4x32xf32>
    %161 = arith.addf %159, %160 : vector<4x32xf32>
    %162 = arith.mulf %155, %140 : vector<4x32xf32>
    %163 = arith.mulf %150, %156 : vector<4x32xf32>
    %164 = arith.addf %162, %163 : vector<4x32xf32>
    %165 = math.tanh %164 : vector<4x32xf32>
    %166 = arith.mulf %161, %165 : vector<4x32xf32>
    %167 = arith.subf %166, %139 : vector<4x32xf32>
    %168 = arith.mulf %11, %167 : vector<4x32xf32>
    %169 = arith.addf %139, %168 : vector<4x32xf32>
    %170 = arith.subf %164, %140 : vector<4x32xf32>
    %171 = arith.mulf %11, %170 : vector<4x32xf32>
    %172 = arith.addf %140, %171 : vector<4x32xf32>
    %173 = arith.mulf %11, %166 : vector<4x32xf32>
    %cst_74 = arith.constant dense<0.000000e+00> : vector<4x128xf32>
    %174 = tpu.matmul %169, %89, %cst_74 {dimension_numbers = #tpu.dot_dimension_numbers<[1], [0], [0], [1], [0, 0, 1, 1], [], []>} : vector<4x32xf32>, vector<32x128xf32>, vector<4x128xf32> -> vector<4x128xf32>
    %175 = arith.addf %102, %174 : vector<4x128xf32>
    %cst_75 = arith.constant 5.000000e-01 : f32
    %176 = vector.broadcast %cst_75 : f32 to vector<4x128xf32>
    %177 = arith.mulf %176, %175 : vector<4x128xf32>
    %178 = math.tanh %177 : vector<4x128xf32>
    %179 = vector.extract_strided_slice %178 {offsets = [0, 0], sizes = [4, 32], strides = [1, 1]} : vector<4x128xf32> to vector<4x32xf32>
    %cst_76 = arith.constant 5.000000e-01 : f32
    %180 = vector.broadcast %cst_76 : f32 to vector<4x32xf32>
    %181 = arith.mulf %180, %179 : vector<4x32xf32>
    %cst_77 = arith.constant 5.000000e-01 : f32
    %182 = vector.broadcast %cst_77 : f32 to vector<4x32xf32>
    %183 = arith.addf %181, %182 : vector<4x32xf32>
    %184 = vector.extract_strided_slice %178 {offsets = [0, 32], sizes = [4, 32], strides = [1, 1]} : vector<4x128xf32> to vector<4x32xf32>
    %cst_78 = arith.constant 5.000000e-01 : f32
    %185 = vector.broadcast %cst_78 : f32 to vector<4x32xf32>
    %186 = arith.mulf %185, %184 : vector<4x32xf32>
    %cst_79 = arith.constant 5.000000e-01 : f32
    %187 = vector.broadcast %cst_79 : f32 to vector<4x32xf32>
    %188 = arith.addf %186, %187 : vector<4x32xf32>
    %189 = vector.extract_strided_slice %178 {offsets = [0, 64], sizes = [4, 32], strides = [1, 1]} : vector<4x128xf32> to vector<4x32xf32>
    %190 = vector.extract_strided_slice %178 {offsets = [0, 96], sizes = [4, 32], strides = [1, 1]} : vector<4x128xf32> to vector<4x32xf32>
    %cst_80 = arith.constant 5.000000e-01 : f32
    %191 = vector.broadcast %cst_80 : f32 to vector<4x32xf32>
    %192 = arith.mulf %191, %190 : vector<4x32xf32>
    %cst_81 = arith.constant 5.000000e-01 : f32
    %193 = vector.broadcast %cst_81 : f32 to vector<4x32xf32>
    %194 = arith.addf %192, %193 : vector<4x32xf32>
    %195 = arith.mulf %188, %172 : vector<4x32xf32>
    %196 = arith.mulf %183, %189 : vector<4x32xf32>
    %197 = arith.addf %195, %196 : vector<4x32xf32>
    %198 = math.tanh %197 : vector<4x32xf32>
    %199 = arith.mulf %194, %198 : vector<4x32xf32>
    %200 = arith.subf %199, %169 : vector<4x32xf32>
    %201 = arith.mulf %19, %200 : vector<4x32xf32>
    %202 = arith.addf %169, %201 : vector<4x32xf32>
    %203 = arith.subf %197, %172 : vector<4x32xf32>
    %204 = arith.mulf %19, %203 : vector<4x32xf32>
    %205 = arith.addf %172, %204 : vector<4x32xf32>
    %206 = arith.mulf %19, %199 : vector<4x32xf32>
    %cst_82 = arith.constant dense<0.000000e+00> : vector<4x128xf32>
    %207 = tpu.matmul %202, %89, %cst_82 {dimension_numbers = #tpu.dot_dimension_numbers<[1], [0], [0], [1], [0, 0, 1, 1], [], []>} : vector<4x32xf32>, vector<32x128xf32>, vector<4x128xf32> -> vector<4x128xf32>
    %208 = arith.addf %108, %207 : vector<4x128xf32>
    %cst_83 = arith.constant 5.000000e-01 : f32
    %209 = vector.broadcast %cst_83 : f32 to vector<4x128xf32>
    %210 = arith.mulf %209, %208 : vector<4x128xf32>
    %211 = math.tanh %210 : vector<4x128xf32>
    %212 = vector.extract_strided_slice %211 {offsets = [0, 0], sizes = [4, 32], strides = [1, 1]} : vector<4x128xf32> to vector<4x32xf32>
    %cst_84 = arith.constant 5.000000e-01 : f32
    %213 = vector.broadcast %cst_84 : f32 to vector<4x32xf32>
    %214 = arith.mulf %213, %212 : vector<4x32xf32>
    %cst_85 = arith.constant 5.000000e-01 : f32
    %215 = vector.broadcast %cst_85 : f32 to vector<4x32xf32>
    %216 = arith.addf %214, %215 : vector<4x32xf32>
    %217 = vector.extract_strided_slice %211 {offsets = [0, 32], sizes = [4, 32], strides = [1, 1]} : vector<4x128xf32> to vector<4x32xf32>
    %cst_86 = arith.constant 5.000000e-01 : f32
    %218 = vector.broadcast %cst_86 : f32 to vector<4x32xf32>
    %219 = arith.mulf %218, %217 : vector<4x32xf32>
    %cst_87 = arith.constant 5.000000e-01 : f32
    %220 = vector.broadcast %cst_87 : f32 to vector<4x32xf32>
    %221 = arith.addf %219, %220 : vector<4x32xf32>
    %222 = vector.extract_strided_slice %211 {offsets = [0, 64], sizes = [4, 32], strides = [1, 1]} : vector<4x128xf32> to vector<4x32xf32>
    %223 = vector.extract_strided_slice %211 {offsets = [0, 96], sizes = [4, 32], strides = [1, 1]} : vector<4x128xf32> to vector<4x32xf32>
    %cst_88 = arith.constant 5.000000e-01 : f32
    %224 = vector.broadcast %cst_88 : f32 to vector<4x32xf32>
    %225 = arith.mulf %224, %223 : vector<4x32xf32>
    %cst_89 = arith.constant 5.000000e-01 : f32
    %226 = vector.broadcast %cst_89 : f32 to vector<4x32xf32>
    %227 = arith.addf %225, %226 : vector<4x32xf32>
    %228 = arith.mulf %221, %205 : vector<4x32xf32>
    %229 = arith.mulf %216, %222 : vector<4x32xf32>
    %230 = arith.addf %228, %229 : vector<4x32xf32>
    %231 = math.tanh %230 : vector<4x32xf32>
    %232 = arith.mulf %227, %231 : vector<4x32xf32>
    %233 = arith.subf %232, %202 : vector<4x32xf32>
    %234 = arith.mulf %27, %233 : vector<4x32xf32>
    %235 = arith.addf %202, %234 : vector<4x32xf32>
    %236 = arith.subf %230, %205 : vector<4x32xf32>
    %237 = arith.mulf %27, %236 : vector<4x32xf32>
    %238 = arith.addf %205, %237 : vector<4x32xf32>
    %239 = arith.mulf %27, %232 : vector<4x32xf32>
    %cst_90 = arith.constant dense<0.000000e+00> : vector<4x128xf32>
    %240 = tpu.matmul %235, %89, %cst_90 {dimension_numbers = #tpu.dot_dimension_numbers<[1], [0], [0], [1], [0, 0, 1, 1], [], []>} : vector<4x32xf32>, vector<32x128xf32>, vector<4x128xf32> -> vector<4x128xf32>
    %241 = arith.addf %114, %240 : vector<4x128xf32>
    %cst_91 = arith.constant 5.000000e-01 : f32
    %242 = vector.broadcast %cst_91 : f32 to vector<4x128xf32>
    %243 = arith.mulf %242, %241 : vector<4x128xf32>
    %244 = math.tanh %243 : vector<4x128xf32>
    %245 = vector.extract_strided_slice %244 {offsets = [0, 0], sizes = [4, 32], strides = [1, 1]} : vector<4x128xf32> to vector<4x32xf32>
    %cst_92 = arith.constant 5.000000e-01 : f32
    %246 = vector.broadcast %cst_92 : f32 to vector<4x32xf32>
    %247 = arith.mulf %246, %245 : vector<4x32xf32>
    %cst_93 = arith.constant 5.000000e-01 : f32
    %248 = vector.broadcast %cst_93 : f32 to vector<4x32xf32>
    %249 = arith.addf %247, %248 : vector<4x32xf32>
    %250 = vector.extract_strided_slice %244 {offsets = [0, 32], sizes = [4, 32], strides = [1, 1]} : vector<4x128xf32> to vector<4x32xf32>
    %cst_94 = arith.constant 5.000000e-01 : f32
    %251 = vector.broadcast %cst_94 : f32 to vector<4x32xf32>
    %252 = arith.mulf %251, %250 : vector<4x32xf32>
    %cst_95 = arith.constant 5.000000e-01 : f32
    %253 = vector.broadcast %cst_95 : f32 to vector<4x32xf32>
    %254 = arith.addf %252, %253 : vector<4x32xf32>
    %255 = vector.extract_strided_slice %244 {offsets = [0, 64], sizes = [4, 32], strides = [1, 1]} : vector<4x128xf32> to vector<4x32xf32>
    %256 = vector.extract_strided_slice %244 {offsets = [0, 96], sizes = [4, 32], strides = [1, 1]} : vector<4x128xf32> to vector<4x32xf32>
    %cst_96 = arith.constant 5.000000e-01 : f32
    %257 = vector.broadcast %cst_96 : f32 to vector<4x32xf32>
    %258 = arith.mulf %257, %256 : vector<4x32xf32>
    %cst_97 = arith.constant 5.000000e-01 : f32
    %259 = vector.broadcast %cst_97 : f32 to vector<4x32xf32>
    %260 = arith.addf %258, %259 : vector<4x32xf32>
    %261 = arith.mulf %254, %238 : vector<4x32xf32>
    %262 = arith.mulf %249, %255 : vector<4x32xf32>
    %263 = arith.addf %261, %262 : vector<4x32xf32>
    %264 = math.tanh %263 : vector<4x32xf32>
    %265 = arith.mulf %260, %264 : vector<4x32xf32>
    %266 = arith.subf %265, %235 : vector<4x32xf32>
    %267 = arith.mulf %35, %266 : vector<4x32xf32>
    %268 = arith.addf %235, %267 : vector<4x32xf32>
    %269 = arith.subf %263, %238 : vector<4x32xf32>
    %270 = arith.mulf %35, %269 : vector<4x32xf32>
    %271 = arith.addf %238, %270 : vector<4x32xf32>
    %272 = arith.mulf %35, %265 : vector<4x32xf32>
    %cst_98 = arith.constant dense<0.000000e+00> : vector<4x128xf32>
    %273 = tpu.matmul %268, %89, %cst_98 {dimension_numbers = #tpu.dot_dimension_numbers<[1], [0], [0], [1], [0, 0, 1, 1], [], []>} : vector<4x32xf32>, vector<32x128xf32>, vector<4x128xf32> -> vector<4x128xf32>
    %274 = arith.addf %120, %273 : vector<4x128xf32>
    %cst_99 = arith.constant 5.000000e-01 : f32
    %275 = vector.broadcast %cst_99 : f32 to vector<4x128xf32>
    %276 = arith.mulf %275, %274 : vector<4x128xf32>
    %277 = math.tanh %276 : vector<4x128xf32>
    %278 = vector.extract_strided_slice %277 {offsets = [0, 0], sizes = [4, 32], strides = [1, 1]} : vector<4x128xf32> to vector<4x32xf32>
    %cst_100 = arith.constant 5.000000e-01 : f32
    %279 = vector.broadcast %cst_100 : f32 to vector<4x32xf32>
    %280 = arith.mulf %279, %278 : vector<4x32xf32>
    %cst_101 = arith.constant 5.000000e-01 : f32
    %281 = vector.broadcast %cst_101 : f32 to vector<4x32xf32>
    %282 = arith.addf %280, %281 : vector<4x32xf32>
    %283 = vector.extract_strided_slice %277 {offsets = [0, 32], sizes = [4, 32], strides = [1, 1]} : vector<4x128xf32> to vector<4x32xf32>
    %cst_102 = arith.constant 5.000000e-01 : f32
    %284 = vector.broadcast %cst_102 : f32 to vector<4x32xf32>
    %285 = arith.mulf %284, %283 : vector<4x32xf32>
    %cst_103 = arith.constant 5.000000e-01 : f32
    %286 = vector.broadcast %cst_103 : f32 to vector<4x32xf32>
    %287 = arith.addf %285, %286 : vector<4x32xf32>
    %288 = vector.extract_strided_slice %277 {offsets = [0, 64], sizes = [4, 32], strides = [1, 1]} : vector<4x128xf32> to vector<4x32xf32>
    %289 = vector.extract_strided_slice %277 {offsets = [0, 96], sizes = [4, 32], strides = [1, 1]} : vector<4x128xf32> to vector<4x32xf32>
    %cst_104 = arith.constant 5.000000e-01 : f32
    %290 = vector.broadcast %cst_104 : f32 to vector<4x32xf32>
    %291 = arith.mulf %290, %289 : vector<4x32xf32>
    %cst_105 = arith.constant 5.000000e-01 : f32
    %292 = vector.broadcast %cst_105 : f32 to vector<4x32xf32>
    %293 = arith.addf %291, %292 : vector<4x32xf32>
    %294 = arith.mulf %287, %271 : vector<4x32xf32>
    %295 = arith.mulf %282, %288 : vector<4x32xf32>
    %296 = arith.addf %294, %295 : vector<4x32xf32>
    %297 = math.tanh %296 : vector<4x32xf32>
    %298 = arith.mulf %293, %297 : vector<4x32xf32>
    %299 = arith.subf %298, %268 : vector<4x32xf32>
    %300 = arith.mulf %43, %299 : vector<4x32xf32>
    %301 = arith.addf %268, %300 : vector<4x32xf32>
    %302 = arith.subf %296, %271 : vector<4x32xf32>
    %303 = arith.mulf %43, %302 : vector<4x32xf32>
    %304 = arith.addf %271, %303 : vector<4x32xf32>
    %305 = arith.mulf %43, %298 : vector<4x32xf32>
    %cst_106 = arith.constant dense<0.000000e+00> : vector<4x128xf32>
    %306 = tpu.matmul %301, %89, %cst_106 {dimension_numbers = #tpu.dot_dimension_numbers<[1], [0], [0], [1], [0, 0, 1, 1], [], []>} : vector<4x32xf32>, vector<32x128xf32>, vector<4x128xf32> -> vector<4x128xf32>
    %307 = arith.addf %126, %306 : vector<4x128xf32>
    %cst_107 = arith.constant 5.000000e-01 : f32
    %308 = vector.broadcast %cst_107 : f32 to vector<4x128xf32>
    %309 = arith.mulf %308, %307 : vector<4x128xf32>
    %310 = math.tanh %309 : vector<4x128xf32>
    %311 = vector.extract_strided_slice %310 {offsets = [0, 0], sizes = [4, 32], strides = [1, 1]} : vector<4x128xf32> to vector<4x32xf32>
    %cst_108 = arith.constant 5.000000e-01 : f32
    %312 = vector.broadcast %cst_108 : f32 to vector<4x32xf32>
    %313 = arith.mulf %312, %311 : vector<4x32xf32>
    %cst_109 = arith.constant 5.000000e-01 : f32
    %314 = vector.broadcast %cst_109 : f32 to vector<4x32xf32>
    %315 = arith.addf %313, %314 : vector<4x32xf32>
    %316 = vector.extract_strided_slice %310 {offsets = [0, 32], sizes = [4, 32], strides = [1, 1]} : vector<4x128xf32> to vector<4x32xf32>
    %cst_110 = arith.constant 5.000000e-01 : f32
    %317 = vector.broadcast %cst_110 : f32 to vector<4x32xf32>
    %318 = arith.mulf %317, %316 : vector<4x32xf32>
    %cst_111 = arith.constant 5.000000e-01 : f32
    %319 = vector.broadcast %cst_111 : f32 to vector<4x32xf32>
    %320 = arith.addf %318, %319 : vector<4x32xf32>
    %321 = vector.extract_strided_slice %310 {offsets = [0, 64], sizes = [4, 32], strides = [1, 1]} : vector<4x128xf32> to vector<4x32xf32>
    %322 = vector.extract_strided_slice %310 {offsets = [0, 96], sizes = [4, 32], strides = [1, 1]} : vector<4x128xf32> to vector<4x32xf32>
    %cst_112 = arith.constant 5.000000e-01 : f32
    %323 = vector.broadcast %cst_112 : f32 to vector<4x32xf32>
    %324 = arith.mulf %323, %322 : vector<4x32xf32>
    %cst_113 = arith.constant 5.000000e-01 : f32
    %325 = vector.broadcast %cst_113 : f32 to vector<4x32xf32>
    %326 = arith.addf %324, %325 : vector<4x32xf32>
    %327 = arith.mulf %320, %304 : vector<4x32xf32>
    %328 = arith.mulf %315, %321 : vector<4x32xf32>
    %329 = arith.addf %327, %328 : vector<4x32xf32>
    %330 = math.tanh %329 : vector<4x32xf32>
    %331 = arith.mulf %326, %330 : vector<4x32xf32>
    %332 = arith.subf %331, %301 : vector<4x32xf32>
    %333 = arith.mulf %51, %332 : vector<4x32xf32>
    %334 = arith.addf %301, %333 : vector<4x32xf32>
    %335 = arith.subf %329, %304 : vector<4x32xf32>
    %336 = arith.mulf %51, %335 : vector<4x32xf32>
    %337 = arith.addf %304, %336 : vector<4x32xf32>
    %338 = arith.mulf %51, %331 : vector<4x32xf32>
    %cst_114 = arith.constant dense<0.000000e+00> : vector<4x128xf32>
    %339 = tpu.matmul %334, %89, %cst_114 {dimension_numbers = #tpu.dot_dimension_numbers<[1], [0], [0], [1], [0, 0, 1, 1], [], []>} : vector<4x32xf32>, vector<32x128xf32>, vector<4x128xf32> -> vector<4x128xf32>
    %340 = arith.addf %132, %339 : vector<4x128xf32>
    %cst_115 = arith.constant 5.000000e-01 : f32
    %341 = vector.broadcast %cst_115 : f32 to vector<4x128xf32>
    %342 = arith.mulf %341, %340 : vector<4x128xf32>
    %343 = math.tanh %342 : vector<4x128xf32>
    %344 = vector.extract_strided_slice %343 {offsets = [0, 0], sizes = [4, 32], strides = [1, 1]} : vector<4x128xf32> to vector<4x32xf32>
    %cst_116 = arith.constant 5.000000e-01 : f32
    %345 = vector.broadcast %cst_116 : f32 to vector<4x32xf32>
    %346 = arith.mulf %345, %344 : vector<4x32xf32>
    %cst_117 = arith.constant 5.000000e-01 : f32
    %347 = vector.broadcast %cst_117 : f32 to vector<4x32xf32>
    %348 = arith.addf %346, %347 : vector<4x32xf32>
    %349 = vector.extract_strided_slice %343 {offsets = [0, 32], sizes = [4, 32], strides = [1, 1]} : vector<4x128xf32> to vector<4x32xf32>
    %cst_118 = arith.constant 5.000000e-01 : f32
    %350 = vector.broadcast %cst_118 : f32 to vector<4x32xf32>
    %351 = arith.mulf %350, %349 : vector<4x32xf32>
    %cst_119 = arith.constant 5.000000e-01 : f32
    %352 = vector.broadcast %cst_119 : f32 to vector<4x32xf32>
    %353 = arith.addf %351, %352 : vector<4x32xf32>
    %354 = vector.extract_strided_slice %343 {offsets = [0, 64], sizes = [4, 32], strides = [1, 1]} : vector<4x128xf32> to vector<4x32xf32>
    %355 = vector.extract_strided_slice %343 {offsets = [0, 96], sizes = [4, 32], strides = [1, 1]} : vector<4x128xf32> to vector<4x32xf32>
    %cst_120 = arith.constant 5.000000e-01 : f32
    %356 = vector.broadcast %cst_120 : f32 to vector<4x32xf32>
    %357 = arith.mulf %356, %355 : vector<4x32xf32>
    %cst_121 = arith.constant 5.000000e-01 : f32
    %358 = vector.broadcast %cst_121 : f32 to vector<4x32xf32>
    %359 = arith.addf %357, %358 : vector<4x32xf32>
    %360 = arith.mulf %353, %337 : vector<4x32xf32>
    %361 = arith.mulf %348, %354 : vector<4x32xf32>
    %362 = arith.addf %360, %361 : vector<4x32xf32>
    %363 = math.tanh %362 : vector<4x32xf32>
    %364 = arith.mulf %359, %363 : vector<4x32xf32>
    %365 = arith.subf %364, %334 : vector<4x32xf32>
    %366 = arith.mulf %59, %365 : vector<4x32xf32>
    %367 = arith.addf %334, %366 : vector<4x32xf32>
    %368 = arith.subf %362, %337 : vector<4x32xf32>
    %369 = arith.mulf %59, %368 : vector<4x32xf32>
    %370 = arith.addf %337, %369 : vector<4x32xf32>
    %371 = arith.mulf %59, %364 : vector<4x32xf32>
    %cst_122 = arith.constant dense<0.000000e+00> : vector<4x128xf32>
    %372 = tpu.matmul %367, %89, %cst_122 {dimension_numbers = #tpu.dot_dimension_numbers<[1], [0], [0], [1], [0, 0, 1, 1], [], []>} : vector<4x32xf32>, vector<32x128xf32>, vector<4x128xf32> -> vector<4x128xf32>
    %373 = arith.addf %138, %372 : vector<4x128xf32>
    %cst_123 = arith.constant 5.000000e-01 : f32
    %374 = vector.broadcast %cst_123 : f32 to vector<4x128xf32>
    %375 = arith.mulf %374, %373 : vector<4x128xf32>
    %376 = math.tanh %375 : vector<4x128xf32>
    %377 = vector.extract_strided_slice %376 {offsets = [0, 0], sizes = [4, 32], strides = [1, 1]} : vector<4x128xf32> to vector<4x32xf32>
    %cst_124 = arith.constant 5.000000e-01 : f32
    %378 = vector.broadcast %cst_124 : f32 to vector<4x32xf32>
    %379 = arith.mulf %378, %377 : vector<4x32xf32>
    %cst_125 = arith.constant 5.000000e-01 : f32
    %380 = vector.broadcast %cst_125 : f32 to vector<4x32xf32>
    %381 = arith.addf %379, %380 : vector<4x32xf32>
    %382 = vector.extract_strided_slice %376 {offsets = [0, 32], sizes = [4, 32], strides = [1, 1]} : vector<4x128xf32> to vector<4x32xf32>
    %cst_126 = arith.constant 5.000000e-01 : f32
    %383 = vector.broadcast %cst_126 : f32 to vector<4x32xf32>
    %384 = arith.mulf %383, %382 : vector<4x32xf32>
    %cst_127 = arith.constant 5.000000e-01 : f32
    %385 = vector.broadcast %cst_127 : f32 to vector<4x32xf32>
    %386 = arith.addf %384, %385 : vector<4x32xf32>
    %387 = vector.extract_strided_slice %376 {offsets = [0, 64], sizes = [4, 32], strides = [1, 1]} : vector<4x128xf32> to vector<4x32xf32>
    %388 = vector.extract_strided_slice %376 {offsets = [0, 96], sizes = [4, 32], strides = [1, 1]} : vector<4x128xf32> to vector<4x32xf32>
    %cst_128 = arith.constant 5.000000e-01 : f32
    %389 = vector.broadcast %cst_128 : f32 to vector<4x32xf32>
    %390 = arith.mulf %389, %388 : vector<4x32xf32>
    %cst_129 = arith.constant 5.000000e-01 : f32
    %391 = vector.broadcast %cst_129 : f32 to vector<4x32xf32>
    %392 = arith.addf %390, %391 : vector<4x32xf32>
    %393 = arith.mulf %386, %370 : vector<4x32xf32>
    %394 = arith.mulf %381, %387 : vector<4x32xf32>
    %395 = arith.addf %393, %394 : vector<4x32xf32>
    %396 = math.tanh %395 : vector<4x32xf32>
    %397 = arith.mulf %392, %396 : vector<4x32xf32>
    %398 = arith.subf %397, %367 : vector<4x32xf32>
    %399 = arith.mulf %67, %398 : vector<4x32xf32>
    %400 = arith.addf %367, %399 : vector<4x32xf32>
    %401 = arith.subf %395, %370 : vector<4x32xf32>
    %402 = arith.mulf %67, %401 : vector<4x32xf32>
    %403 = arith.addf %370, %402 : vector<4x32xf32>
    %404 = arith.mulf %67, %397 : vector<4x32xf32>
    %405 = vector.extract_strided_slice %400 {offsets = [0, 0], sizes = [4, 16], strides = [1, 1]} : vector<4x32xf32> to vector<4x16xf32>
    %c0_130 = arith.constant 0 : index
    %c0_131 = arith.constant 0 : index
    %c0_132 = arith.constant 0 : index
    %406 = vector.load %arg11[%c0_130, %c0_131, %c0_132] : memref<4x4x16xf32, #tpu.memory_space<vmem>>, vector<1x4x16xf32>
    %407 = vector.shape_cast %406 : vector<1x4x16xf32> to vector<4x16xf32>
    %408 = vector.shape_cast %405 : vector<4x16xf32> to vector<1x4x16xf32>
    tpu.vector_store %arg11[%c0_130, %c0_131, %c0_132], %408 {strides = array<i32>} : memref<4x4x16xf32, #tpu.memory_space<vmem>>, vector<1x4x16xf32>,
    %409 = vector.extract_strided_slice %403 {offsets = [0, 0], sizes = [4, 16], strides = [1, 1]} : vector<4x32xf32> to vector<4x16xf32>
    %c0_133 = arith.constant 0 : index
    %c0_134 = arith.constant 0 : index
    %c0_135 = arith.constant 0 : index
    %410 = vector.load %arg12[%c0_133, %c0_134, %c0_135] : memref<4x4x16xf32, #tpu.memory_space<vmem>>, vector<1x4x16xf32>
    %411 = vector.shape_cast %410 : vector<1x4x16xf32> to vector<4x16xf32>
    %412 = vector.shape_cast %409 : vector<4x16xf32> to vector<1x4x16xf32>
    tpu.vector_store %arg12[%c0_133, %c0_134, %c0_135], %412 {strides = array<i32>} : memref<4x4x16xf32, #tpu.memory_space<vmem>>, vector<1x4x16xf32>,
    %413 = vector.extract_strided_slice %400 {offsets = [0, 16], sizes = [4, 16], strides = [1, 1]} : vector<4x32xf32> to vector<4x16xf32>
    %c1_136 = arith.constant 1 : index
    %c0_137 = arith.constant 0 : index
    %c0_138 = arith.constant 0 : index
    %414 = vector.load %arg11[%c1_136, %c0_137, %c0_138] : memref<4x4x16xf32, #tpu.memory_space<vmem>>, vector<1x4x16xf32>
    %415 = vector.shape_cast %414 : vector<1x4x16xf32> to vector<4x16xf32>
    %416 = vector.shape_cast %413 : vector<4x16xf32> to vector<1x4x16xf32>
    tpu.vector_store %arg11[%c1_136, %c0_137, %c0_138], %416 {strides = array<i32>} : memref<4x4x16xf32, #tpu.memory_space<vmem>>, vector<1x4x16xf32>,
    %417 = vector.extract_strided_slice %403 {offsets = [0, 16], sizes = [4, 16], strides = [1, 1]} : vector<4x32xf32> to vector<4x16xf32>
    %c1_139 = arith.constant 1 : index
    %c0_140 = arith.constant 0 : index
    %c0_141 = arith.constant 0 : index
    %418 = vector.load %arg12[%c1_139, %c0_140, %c0_141] : memref<4x4x16xf32, #tpu.memory_space<vmem>>, vector<1x4x16xf32>
    %419 = vector.shape_cast %418 : vector<1x4x16xf32> to vector<4x16xf32>
    %420 = vector.shape_cast %417 : vector<4x16xf32> to vector<1x4x16xf32>
    tpu.vector_store %arg12[%c1_139, %c0_140, %c0_141], %420 {strides = array<i32>} : memref<4x4x16xf32, #tpu.memory_space<vmem>>, vector<1x4x16xf32>,
    %c0_142 = arith.constant 0 : index
    %c0_143 = arith.constant 0 : index
    %421 = vector.load %arg6[%c0_142, %c0_143] : memref<32x128xf32, #tpu.memory_space<vmem>>, vector<32x128xf32>
    %c0_144 = arith.constant 0 : index
    %c0_145 = arith.constant 0 : index
    %422 = vector.load %arg8[%c0_144, %c0_145] : memref<32x128xf32, #tpu.memory_space<vmem>>, vector<32x128xf32>
    %c0_146 = arith.constant 0 : index
    %c0_147 = arith.constant 0 : index
    %423 = vector.load %arg9[%c0_146, %c0_147] : memref<1x128xf32, #tpu.memory_space<vmem>>, vector<1x128xf32>
    %cst_148 = arith.constant dense<0.000000e+00> : vector<4x128xf32>
    %424 = tpu.matmul %173, %421, %cst_148 {dimension_numbers = #tpu.dot_dimension_numbers<[1], [0], [0], [1], [0, 0, 1, 1], [], []>} : vector<4x32xf32>, vector<32x128xf32>, vector<4x128xf32> -> vector<4x128xf32>
    %425 = vector.broadcast %423 : vector<1x128xf32> to vector<4x128xf32>
    %426 = arith.addf %424, %425 : vector<4x128xf32>
    %c0_149 = arith.constant 0 : index
    %c0_150 = arith.constant 0 : index
    %427 = vector.load %arg7[%c0_149, %c0_150] : memref<32x128xf32, #tpu.memory_space<vmem>>, vector<32x128xf32>
    %cst_151 = arith.constant dense<0.000000e+00> : vector<4x128xf32>
    %428 = tpu.matmul %404, %427, %cst_151 {dimension_numbers = #tpu.dot_dimension_numbers<[1], [0], [0], [1], [0, 0, 1, 1], [], []>} : vector<4x32xf32>, vector<32x128xf32>, vector<4x128xf32> -> vector<4x128xf32>
    %429 = arith.addf %426, %428 : vector<4x128xf32>
    %cst_152 = arith.constant dense<0.000000e+00> : vector<4x128xf32>
    %430 = tpu.matmul %206, %421, %cst_152 {dimension_numbers = #tpu.dot_dimension_numbers<[1], [0], [0], [1], [0, 0, 1, 1], [], []>} : vector<4x32xf32>, vector<32x128xf32>, vector<4x128xf32> -> vector<4x128xf32>
    %431 = vector.broadcast %423 : vector<1x128xf32> to vector<4x128xf32>
    %432 = arith.addf %430, %431 : vector<4x128xf32>
    %c0_153 = arith.constant 0 : index
    %c0_154 = arith.constant 0 : index
    %433 = vector.load %arg7[%c0_153, %c0_154] : memref<32x128xf32, #tpu.memory_space<vmem>>, vector<32x128xf32>
    %cst_155 = arith.constant dense<0.000000e+00> : vector<4x128xf32>
    %434 = tpu.matmul %371, %433, %cst_155 {dimension_numbers = #tpu.dot_dimension_numbers<[1], [0], [0], [1], [0, 0, 1, 1], [], []>} : vector<4x32xf32>, vector<32x128xf32>, vector<4x128xf32> -> vector<4x128xf32>
    %435 = arith.addf %432, %434 : vector<4x128xf32>
    %cst_156 = arith.constant dense<0.000000e+00> : vector<4x128xf32>
    %436 = tpu.matmul %239, %421, %cst_156 {dimension_numbers = #tpu.dot_dimension_numbers<[1], [0], [0], [1], [0, 0, 1, 1], [], []>} : vector<4x32xf32>, vector<32x128xf32>, vector<4x128xf32> -> vector<4x128xf32>
    %437 = vector.broadcast %423 : vector<1x128xf32> to vector<4x128xf32>
    %438 = arith.addf %436, %437 : vector<4x128xf32>
    %c0_157 = arith.constant 0 : index
    %c0_158 = arith.constant 0 : index
    %439 = vector.load %arg7[%c0_157, %c0_158] : memref<32x128xf32, #tpu.memory_space<vmem>>, vector<32x128xf32>
    %cst_159 = arith.constant dense<0.000000e+00> : vector<4x128xf32>
    %440 = tpu.matmul %338, %439, %cst_159 {dimension_numbers = #tpu.dot_dimension_numbers<[1], [0], [0], [1], [0, 0, 1, 1], [], []>} : vector<4x32xf32>, vector<32x128xf32>, vector<4x128xf32> -> vector<4x128xf32>
    %441 = arith.addf %438, %440 : vector<4x128xf32>
    %cst_160 = arith.constant dense<0.000000e+00> : vector<4x128xf32>
    %442 = tpu.matmul %272, %421, %cst_160 {dimension_numbers = #tpu.dot_dimension_numbers<[1], [0], [0], [1], [0, 0, 1, 1], [], []>} : vector<4x32xf32>, vector<32x128xf32>, vector<4x128xf32> -> vector<4x128xf32>
    %443 = vector.broadcast %423 : vector<1x128xf32> to vector<4x128xf32>
    %444 = arith.addf %442, %443 : vector<4x128xf32>
    %c0_161 = arith.constant 0 : index
    %c0_162 = arith.constant 0 : index
    %445 = vector.load %arg7[%c0_161, %c0_162] : memref<32x128xf32, #tpu.memory_space<vmem>>, vector<32x128xf32>
    %cst_163 = arith.constant dense<0.000000e+00> : vector<4x128xf32>
    %446 = tpu.matmul %305, %445, %cst_163 {dimension_numbers = #tpu.dot_dimension_numbers<[1], [0], [0], [1], [0, 0, 1, 1], [], []>} : vector<4x32xf32>, vector<32x128xf32>, vector<4x128xf32> -> vector<4x128xf32>
    %447 = arith.addf %444, %446 : vector<4x128xf32>
    %cst_164 = arith.constant dense<0.000000e+00> : vector<4x128xf32>
    %448 = tpu.matmul %305, %421, %cst_164 {dimension_numbers = #tpu.dot_dimension_numbers<[1], [0], [0], [1], [0, 0, 1, 1], [], []>} : vector<4x32xf32>, vector<32x128xf32>, vector<4x128xf32> -> vector<4x128xf32>
    %449 = vector.broadcast %423 : vector<1x128xf32> to vector<4x128xf32>
    %450 = arith.addf %448, %449 : vector<4x128xf32>
    %c0_165 = arith.constant 0 : index
    %c0_166 = arith.constant 0 : index
    %451 = vector.load %arg7[%c0_165, %c0_166] : memref<32x128xf32, #tpu.memory_space<vmem>>, vector<32x128xf32>
    %cst_167 = arith.constant dense<0.000000e+00> : vector<4x128xf32>
    %452 = tpu.matmul %272, %451, %cst_167 {dimension_numbers = #tpu.dot_dimension_numbers<[1], [0], [0], [1], [0, 0, 1, 1], [], []>} : vector<4x32xf32>, vector<32x128xf32>, vector<4x128xf32> -> vector<4x128xf32>
    %453 = arith.addf %450, %452 : vector<4x128xf32>
    %cst_168 = arith.constant dense<0.000000e+00> : vector<4x128xf32>
    %454 = tpu.matmul %338, %421, %cst_168 {dimension_numbers = #tpu.dot_dimension_numbers<[1], [0], [0], [1], [0, 0, 1, 1], [], []>} : vector<4x32xf32>, vector<32x128xf32>, vector<4x128xf32> -> vector<4x128xf32>
    %455 = vector.broadcast %423 : vector<1x128xf32> to vector<4x128xf32>
    %456 = arith.addf %454, %455 : vector<4x128xf32>
    %c0_169 = arith.constant 0 : index
    %c0_170 = arith.constant 0 : index
    %457 = vector.load %arg7[%c0_169, %c0_170] : memref<32x128xf32, #tpu.memory_space<vmem>>, vector<32x128xf32>
    %cst_171 = arith.constant dense<0.000000e+00> : vector<4x128xf32>
    %458 = tpu.matmul %239, %457, %cst_171 {dimension_numbers = #tpu.dot_dimension_numbers<[1], [0], [0], [1], [0, 0, 1, 1], [], []>} : vector<4x32xf32>, vector<32x128xf32>, vector<4x128xf32> -> vector<4x128xf32>
    %459 = arith.addf %456, %458 : vector<4x128xf32>
    %cst_172 = arith.constant dense<0.000000e+00> : vector<4x128xf32>
    %460 = tpu.matmul %371, %421, %cst_172 {dimension_numbers = #tpu.dot_dimension_numbers<[1], [0], [0], [1], [0, 0, 1, 1], [], []>} : vector<4x32xf32>, vector<32x128xf32>, vector<4x128xf32> -> vector<4x128xf32>
    %461 = vector.broadcast %423 : vector<1x128xf32> to vector<4x128xf32>
    %462 = arith.addf %460, %461 : vector<4x128xf32>
    %c0_173 = arith.constant 0 : index
    %c0_174 = arith.constant 0 : index
    %463 = vector.load %arg7[%c0_173, %c0_174] : memref<32x128xf32, #tpu.memory_space<vmem>>, vector<32x128xf32>
    %cst_175 = arith.constant dense<0.000000e+00> : vector<4x128xf32>
    %464 = tpu.matmul %206, %463, %cst_175 {dimension_numbers = #tpu.dot_dimension_numbers<[1], [0], [0], [1], [0, 0, 1, 1], [], []>} : vector<4x32xf32>, vector<32x128xf32>, vector<4x128xf32> -> vector<4x128xf32>
    %465 = arith.addf %462, %464 : vector<4x128xf32>
    %cst_176 = arith.constant dense<0.000000e+00> : vector<4x128xf32>
    %466 = tpu.matmul %404, %421, %cst_176 {dimension_numbers = #tpu.dot_dimension_numbers<[1], [0], [0], [1], [0, 0, 1, 1], [], []>} : vector<4x32xf32>, vector<32x128xf32>, vector<4x128xf32> -> vector<4x128xf32>
    %467 = vector.broadcast %423 : vector<1x128xf32> to vector<4x128xf32>
    %468 = arith.addf %466, %467 : vector<4x128xf32>
    %c0_177 = arith.constant 0 : index
    %c0_178 = arith.constant 0 : index
    %469 = vector.load %arg7[%c0_177, %c0_178] : memref<32x128xf32, #tpu.memory_space<vmem>>, vector<32x128xf32>
    %cst_179 = arith.constant dense<0.000000e+00> : vector<4x128xf32>
    %470 = tpu.matmul %173, %469, %cst_179 {dimension_numbers = #tpu.dot_dimension_numbers<[1], [0], [0], [1], [0, 0, 1, 1], [], []>} : vector<4x32xf32>, vector<32x128xf32>, vector<4x128xf32> -> vector<4x128xf32>
    %471 = arith.addf %468, %470 : vector<4x128xf32>
    %cst_180 = arith.constant 0.000000e+00 : f32
    %472 = vector.broadcast %cst_180 : f32 to vector<4x32xf32>
    %cst_181 = arith.constant 0.000000e+00 : f32
    %473 = vector.broadcast %cst_181 : f32 to vector<4x32xf32>
    %cst_182 = arith.constant dense<0.000000e+00> : vector<4x128xf32>
    %474 = tpu.matmul %472, %422, %cst_182 {dimension_numbers = #tpu.dot_dimension_numbers<[1], [0], [0], [1], [0, 0, 1, 1], [], []>} : vector<4x32xf32>, vector<32x128xf32>, vector<4x128xf32> -> vector<4x128xf32>
    %475 = arith.addf %429, %474 : vector<4x128xf32>
    %cst_183 = arith.constant 5.000000e-01 : f32
    %476 = vector.broadcast %cst_183 : f32 to vector<4x128xf32>
    %477 = arith.mulf %476, %475 : vector<4x128xf32>
    %478 = math.tanh %477 : vector<4x128xf32>
    %479 = vector.extract_strided_slice %478 {offsets = [0, 0], sizes = [4, 32], strides = [1, 1]} : vector<4x128xf32> to vector<4x32xf32>
    %cst_184 = arith.constant 5.000000e-01 : f32
    %480 = vector.broadcast %cst_184 : f32 to vector<4x32xf32>
    %481 = arith.mulf %480, %479 : vector<4x32xf32>
    %cst_185 = arith.constant 5.000000e-01 : f32
    %482 = vector.broadcast %cst_185 : f32 to vector<4x32xf32>
    %483 = arith.addf %481, %482 : vector<4x32xf32>
    %484 = vector.extract_strided_slice %478 {offsets = [0, 32], sizes = [4, 32], strides = [1, 1]} : vector<4x128xf32> to vector<4x32xf32>
    %cst_186 = arith.constant 5.000000e-01 : f32
    %485 = vector.broadcast %cst_186 : f32 to vector<4x32xf32>
    %486 = arith.mulf %485, %484 : vector<4x32xf32>
    %cst_187 = arith.constant 5.000000e-01 : f32
    %487 = vector.broadcast %cst_187 : f32 to vector<4x32xf32>
    %488 = arith.addf %486, %487 : vector<4x32xf32>
    %489 = vector.extract_strided_slice %478 {offsets = [0, 64], sizes = [4, 32], strides = [1, 1]} : vector<4x128xf32> to vector<4x32xf32>
    %490 = vector.extract_strided_slice %478 {offsets = [0, 96], sizes = [4, 32], strides = [1, 1]} : vector<4x128xf32> to vector<4x32xf32>
    %cst_188 = arith.constant 5.000000e-01 : f32
    %491 = vector.broadcast %cst_188 : f32 to vector<4x32xf32>
    %492 = arith.mulf %491, %490 : vector<4x32xf32>
    %cst_189 = arith.constant 5.000000e-01 : f32
    %493 = vector.broadcast %cst_189 : f32 to vector<4x32xf32>
    %494 = arith.addf %492, %493 : vector<4x32xf32>
    %495 = arith.mulf %488, %473 : vector<4x32xf32>
    %496 = arith.mulf %483, %489 : vector<4x32xf32>
    %497 = arith.addf %495, %496 : vector<4x32xf32>
    %498 = math.tanh %497 : vector<4x32xf32>
    %499 = arith.mulf %494, %498 : vector<4x32xf32>
    %500 = arith.subf %499, %472 : vector<4x32xf32>
    %501 = arith.mulf %11, %500 : vector<4x32xf32>
    %502 = arith.addf %472, %501 : vector<4x32xf32>
    %503 = arith.subf %497, %473 : vector<4x32xf32>
    %504 = arith.mulf %11, %503 : vector<4x32xf32>
    %505 = arith.addf %473, %504 : vector<4x32xf32>
    %506 = arith.mulf %11, %499 : vector<4x32xf32>
    %cst_190 = arith.constant dense<0.000000e+00> : vector<4x128xf32>
    %507 = tpu.matmul %502, %422, %cst_190 {dimension_numbers = #tpu.dot_dimension_numbers<[1], [0], [0], [1], [0, 0, 1, 1], [], []>} : vector<4x32xf32>, vector<32x128xf32>, vector<4x128xf32> -> vector<4x128xf32>
    %508 = arith.addf %435, %507 : vector<4x128xf32>
    %cst_191 = arith.constant 5.000000e-01 : f32
    %509 = vector.broadcast %cst_191 : f32 to vector<4x128xf32>
    %510 = arith.mulf %509, %508 : vector<4x128xf32>
    %511 = math.tanh %510 : vector<4x128xf32>
    %512 = vector.extract_strided_slice %511 {offsets = [0, 0], sizes = [4, 32], strides = [1, 1]} : vector<4x128xf32> to vector<4x32xf32>
    %cst_192 = arith.constant 5.000000e-01 : f32
    %513 = vector.broadcast %cst_192 : f32 to vector<4x32xf32>
    %514 = arith.mulf %513, %512 : vector<4x32xf32>
    %cst_193 = arith.constant 5.000000e-01 : f32
    %515 = vector.broadcast %cst_193 : f32 to vector<4x32xf32>
    %516 = arith.addf %514, %515 : vector<4x32xf32>
    %517 = vector.extract_strided_slice %511 {offsets = [0, 32], sizes = [4, 32], strides = [1, 1]} : vector<4x128xf32> to vector<4x32xf32>
    %cst_194 = arith.constant 5.000000e-01 : f32
    %518 = vector.broadcast %cst_194 : f32 to vector<4x32xf32>
    %519 = arith.mulf %518, %517 : vector<4x32xf32>
    %cst_195 = arith.constant 5.000000e-01 : f32
    %520 = vector.broadcast %cst_195 : f32 to vector<4x32xf32>
    %521 = arith.addf %519, %520 : vector<4x32xf32>
    %522 = vector.extract_strided_slice %511 {offsets = [0, 64], sizes = [4, 32], strides = [1, 1]} : vector<4x128xf32> to vector<4x32xf32>
    %523 = vector.extract_strided_slice %511 {offsets = [0, 96], sizes = [4, 32], strides = [1, 1]} : vector<4x128xf32> to vector<4x32xf32>
    %cst_196 = arith.constant 5.000000e-01 : f32
    %524 = vector.broadcast %cst_196 : f32 to vector<4x32xf32>
    %525 = arith.mulf %524, %523 : vector<4x32xf32>
    %cst_197 = arith.constant 5.000000e-01 : f32
    %526 = vector.broadcast %cst_197 : f32 to vector<4x32xf32>
    %527 = arith.addf %525, %526 : vector<4x32xf32>
    %528 = arith.mulf %521, %505 : vector<4x32xf32>
    %529 = arith.mulf %516, %522 : vector<4x32xf32>
    %530 = arith.addf %528, %529 : vector<4x32xf32>
    %531 = math.tanh %530 : vector<4x32xf32>
    %532 = arith.mulf %527, %531 : vector<4x32xf32>
    %533 = arith.subf %532, %502 : vector<4x32xf32>
    %534 = arith.mulf %19, %533 : vector<4x32xf32>
    %535 = arith.addf %502, %534 : vector<4x32xf32>
    %536 = arith.subf %530, %505 : vector<4x32xf32>
    %537 = arith.mulf %19, %536 : vector<4x32xf32>
    %538 = arith.addf %505, %537 : vector<4x32xf32>
    %539 = arith.mulf %19, %532 : vector<4x32xf32>
    %cst_198 = arith.constant dense<0.000000e+00> : vector<4x128xf32>
    %540 = tpu.matmul %535, %422, %cst_198 {dimension_numbers = #tpu.dot_dimension_numbers<[1], [0], [0], [1], [0, 0, 1, 1], [], []>} : vector<4x32xf32>, vector<32x128xf32>, vector<4x128xf32> -> vector<4x128xf32>
    %541 = arith.addf %441, %540 : vector<4x128xf32>
    %cst_199 = arith.constant 5.000000e-01 : f32
    %542 = vector.broadcast %cst_199 : f32 to vector<4x128xf32>
    %543 = arith.mulf %542, %541 : vector<4x128xf32>
    %544 = math.tanh %543 : vector<4x128xf32>
    %545 = vector.extract_strided_slice %544 {offsets = [0, 0], sizes = [4, 32], strides = [1, 1]} : vector<4x128xf32> to vector<4x32xf32>
    %cst_200 = arith.constant 5.000000e-01 : f32
    %546 = vector.broadcast %cst_200 : f32 to vector<4x32xf32>
    %547 = arith.mulf %546, %545 : vector<4x32xf32>
    %cst_201 = arith.constant 5.000000e-01 : f32
    %548 = vector.broadcast %cst_201 : f32 to vector<4x32xf32>
    %549 = arith.addf %547, %548 : vector<4x32xf32>
    %550 = vector.extract_strided_slice %544 {offsets = [0, 32], sizes = [4, 32], strides = [1, 1]} : vector<4x128xf32> to vector<4x32xf32>
    %cst_202 = arith.constant 5.000000e-01 : f32
    %551 = vector.broadcast %cst_202 : f32 to vector<4x32xf32>
    %552 = arith.mulf %551, %550 : vector<4x32xf32>
    %cst_203 = arith.constant 5.000000e-01 : f32
    %553 = vector.broadcast %cst_203 : f32 to vector<4x32xf32>
    %554 = arith.addf %552, %553 : vector<4x32xf32>
    %555 = vector.extract_strided_slice %544 {offsets = [0, 64], sizes = [4, 32], strides = [1, 1]} : vector<4x128xf32> to vector<4x32xf32>
    %556 = vector.extract_strided_slice %544 {offsets = [0, 96], sizes = [4, 32], strides = [1, 1]} : vector<4x128xf32> to vector<4x32xf32>
    %cst_204 = arith.constant 5.000000e-01 : f32
    %557 = vector.broadcast %cst_204 : f32 to vector<4x32xf32>
    %558 = arith.mulf %557, %556 : vector<4x32xf32>
    %cst_205 = arith.constant 5.000000e-01 : f32
    %559 = vector.broadcast %cst_205 : f32 to vector<4x32xf32>
    %560 = arith.addf %558, %559 : vector<4x32xf32>
    %561 = arith.mulf %554, %538 : vector<4x32xf32>
    %562 = arith.mulf %549, %555 : vector<4x32xf32>
    %563 = arith.addf %561, %562 : vector<4x32xf32>
    %564 = math.tanh %563 : vector<4x32xf32>
    %565 = arith.mulf %560, %564 : vector<4x32xf32>
    %566 = arith.subf %565, %535 : vector<4x32xf32>
    %567 = arith.mulf %27, %566 : vector<4x32xf32>
    %568 = arith.addf %535, %567 : vector<4x32xf32>
    %569 = arith.subf %563, %538 : vector<4x32xf32>
    %570 = arith.mulf %27, %569 : vector<4x32xf32>
    %571 = arith.addf %538, %570 : vector<4x32xf32>
    %572 = arith.mulf %27, %565 : vector<4x32xf32>
    %cst_206 = arith.constant dense<0.000000e+00> : vector<4x128xf32>
    %573 = tpu.matmul %568, %422, %cst_206 {dimension_numbers = #tpu.dot_dimension_numbers<[1], [0], [0], [1], [0, 0, 1, 1], [], []>} : vector<4x32xf32>, vector<32x128xf32>, vector<4x128xf32> -> vector<4x128xf32>
    %574 = arith.addf %447, %573 : vector<4x128xf32>
    %cst_207 = arith.constant 5.000000e-01 : f32
    %575 = vector.broadcast %cst_207 : f32 to vector<4x128xf32>
    %576 = arith.mulf %575, %574 : vector<4x128xf32>
    %577 = math.tanh %576 : vector<4x128xf32>
    %578 = vector.extract_strided_slice %577 {offsets = [0, 0], sizes = [4, 32], strides = [1, 1]} : vector<4x128xf32> to vector<4x32xf32>
    %cst_208 = arith.constant 5.000000e-01 : f32
    %579 = vector.broadcast %cst_208 : f32 to vector<4x32xf32>
    %580 = arith.mulf %579, %578 : vector<4x32xf32>
    %cst_209 = arith.constant 5.000000e-01 : f32
    %581 = vector.broadcast %cst_209 : f32 to vector<4x32xf32>
    %582 = arith.addf %580, %581 : vector<4x32xf32>
    %583 = vector.extract_strided_slice %577 {offsets = [0, 32], sizes = [4, 32], strides = [1, 1]} : vector<4x128xf32> to vector<4x32xf32>
    %cst_210 = arith.constant 5.000000e-01 : f32
    %584 = vector.broadcast %cst_210 : f32 to vector<4x32xf32>
    %585 = arith.mulf %584, %583 : vector<4x32xf32>
    %cst_211 = arith.constant 5.000000e-01 : f32
    %586 = vector.broadcast %cst_211 : f32 to vector<4x32xf32>
    %587 = arith.addf %585, %586 : vector<4x32xf32>
    %588 = vector.extract_strided_slice %577 {offsets = [0, 64], sizes = [4, 32], strides = [1, 1]} : vector<4x128xf32> to vector<4x32xf32>
    %589 = vector.extract_strided_slice %577 {offsets = [0, 96], sizes = [4, 32], strides = [1, 1]} : vector<4x128xf32> to vector<4x32xf32>
    %cst_212 = arith.constant 5.000000e-01 : f32
    %590 = vector.broadcast %cst_212 : f32 to vector<4x32xf32>
    %591 = arith.mulf %590, %589 : vector<4x32xf32>
    %cst_213 = arith.constant 5.000000e-01 : f32
    %592 = vector.broadcast %cst_213 : f32 to vector<4x32xf32>
    %593 = arith.addf %591, %592 : vector<4x32xf32>
    %594 = arith.mulf %587, %571 : vector<4x32xf32>
    %595 = arith.mulf %582, %588 : vector<4x32xf32>
    %596 = arith.addf %594, %595 : vector<4x32xf32>
    %597 = math.tanh %596 : vector<4x32xf32>
    %598 = arith.mulf %593, %597 : vector<4x32xf32>
    %599 = arith.subf %598, %568 : vector<4x32xf32>
    %600 = arith.mulf %35, %599 : vector<4x32xf32>
    %601 = arith.addf %568, %600 : vector<4x32xf32>
    %602 = arith.subf %596, %571 : vector<4x32xf32>
    %603 = arith.mulf %35, %602 : vector<4x32xf32>
    %604 = arith.addf %571, %603 : vector<4x32xf32>
    %605 = arith.mulf %35, %598 : vector<4x32xf32>
    %cst_214 = arith.constant dense<0.000000e+00> : vector<4x128xf32>
    %606 = tpu.matmul %601, %422, %cst_214 {dimension_numbers = #tpu.dot_dimension_numbers<[1], [0], [0], [1], [0, 0, 1, 1], [], []>} : vector<4x32xf32>, vector<32x128xf32>, vector<4x128xf32> -> vector<4x128xf32>
    %607 = arith.addf %453, %606 : vector<4x128xf32>
    %cst_215 = arith.constant 5.000000e-01 : f32
    %608 = vector.broadcast %cst_215 : f32 to vector<4x128xf32>
    %609 = arith.mulf %608, %607 : vector<4x128xf32>
    %610 = math.tanh %609 : vector<4x128xf32>
    %611 = vector.extract_strided_slice %610 {offsets = [0, 0], sizes = [4, 32], strides = [1, 1]} : vector<4x128xf32> to vector<4x32xf32>
    %cst_216 = arith.constant 5.000000e-01 : f32
    %612 = vector.broadcast %cst_216 : f32 to vector<4x32xf32>
    %613 = arith.mulf %612, %611 : vector<4x32xf32>
    %cst_217 = arith.constant 5.000000e-01 : f32
    %614 = vector.broadcast %cst_217 : f32 to vector<4x32xf32>
    %615 = arith.addf %613, %614 : vector<4x32xf32>
    %616 = vector.extract_strided_slice %610 {offsets = [0, 32], sizes = [4, 32], strides = [1, 1]} : vector<4x128xf32> to vector<4x32xf32>
    %cst_218 = arith.constant 5.000000e-01 : f32
    %617 = vector.broadcast %cst_218 : f32 to vector<4x32xf32>
    %618 = arith.mulf %617, %616 : vector<4x32xf32>
    %cst_219 = arith.constant 5.000000e-01 : f32
    %619 = vector.broadcast %cst_219 : f32 to vector<4x32xf32>
    %620 = arith.addf %618, %619 : vector<4x32xf32>
    %621 = vector.extract_strided_slice %610 {offsets = [0, 64], sizes = [4, 32], strides = [1, 1]} : vector<4x128xf32> to vector<4x32xf32>
    %622 = vector.extract_strided_slice %610 {offsets = [0, 96], sizes = [4, 32], strides = [1, 1]} : vector<4x128xf32> to vector<4x32xf32>
    %cst_220 = arith.constant 5.000000e-01 : f32
    %623 = vector.broadcast %cst_220 : f32 to vector<4x32xf32>
    %624 = arith.mulf %623, %622 : vector<4x32xf32>
    %cst_221 = arith.constant 5.000000e-01 : f32
    %625 = vector.broadcast %cst_221 : f32 to vector<4x32xf32>
    %626 = arith.addf %624, %625 : vector<4x32xf32>
    %627 = arith.mulf %620, %604 : vector<4x32xf32>
    %628 = arith.mulf %615, %621 : vector<4x32xf32>
    %629 = arith.addf %627, %628 : vector<4x32xf32>
    %630 = math.tanh %629 : vector<4x32xf32>
    %631 = arith.mulf %626, %630 : vector<4x32xf32>
    %632 = arith.subf %631, %601 : vector<4x32xf32>
    %633 = arith.mulf %43, %632 : vector<4x32xf32>
    %634 = arith.addf %601, %633 : vector<4x32xf32>
    %635 = arith.subf %629, %604 : vector<4x32xf32>
    %636 = arith.mulf %43, %635 : vector<4x32xf32>
    %637 = arith.addf %604, %636 : vector<4x32xf32>
    %638 = arith.mulf %43, %631 : vector<4x32xf32>
    %cst_222 = arith.constant dense<0.000000e+00> : vector<4x128xf32>
    %639 = tpu.matmul %634, %422, %cst_222 {dimension_numbers = #tpu.dot_dimension_numbers<[1], [0], [0], [1], [0, 0, 1, 1], [], []>} : vector<4x32xf32>, vector<32x128xf32>, vector<4x128xf32> -> vector<4x128xf32>
    %640 = arith.addf %459, %639 : vector<4x128xf32>
    %cst_223 = arith.constant 5.000000e-01 : f32
    %641 = vector.broadcast %cst_223 : f32 to vector<4x128xf32>
    %642 = arith.mulf %641, %640 : vector<4x128xf32>
    %643 = math.tanh %642 : vector<4x128xf32>
    %644 = vector.extract_strided_slice %643 {offsets = [0, 0], sizes = [4, 32], strides = [1, 1]} : vector<4x128xf32> to vector<4x32xf32>
    %cst_224 = arith.constant 5.000000e-01 : f32
    %645 = vector.broadcast %cst_224 : f32 to vector<4x32xf32>
    %646 = arith.mulf %645, %644 : vector<4x32xf32>
    %cst_225 = arith.constant 5.000000e-01 : f32
    %647 = vector.broadcast %cst_225 : f32 to vector<4x32xf32>
    %648 = arith.addf %646, %647 : vector<4x32xf32>
    %649 = vector.extract_strided_slice %643 {offsets = [0, 32], sizes = [4, 32], strides = [1, 1]} : vector<4x128xf32> to vector<4x32xf32>
    %cst_226 = arith.constant 5.000000e-01 : f32
    %650 = vector.broadcast %cst_226 : f32 to vector<4x32xf32>
    %651 = arith.mulf %650, %649 : vector<4x32xf32>
    %cst_227 = arith.constant 5.000000e-01 : f32
    %652 = vector.broadcast %cst_227 : f32 to vector<4x32xf32>
    %653 = arith.addf %651, %652 : vector<4x32xf32>
    %654 = vector.extract_strided_slice %643 {offsets = [0, 64], sizes = [4, 32], strides = [1, 1]} : vector<4x128xf32> to vector<4x32xf32>
    %655 = vector.extract_strided_slice %643 {offsets = [0, 96], sizes = [4, 32], strides = [1, 1]} : vector<4x128xf32> to vector<4x32xf32>
    %cst_228 = arith.constant 5.000000e-01 : f32
    %656 = vector.broadcast %cst_228 : f32 to vector<4x32xf32>
    %657 = arith.mulf %656, %655 : vector<4x32xf32>
    %cst_229 = arith.constant 5.000000e-01 : f32
    %658 = vector.broadcast %cst_229 : f32 to vector<4x32xf32>
    %659 = arith.addf %657, %658 : vector<4x32xf32>
    %660 = arith.mulf %653, %637 : vector<4x32xf32>
    %661 = arith.mulf %648, %654 : vector<4x32xf32>
    %662 = arith.addf %660, %661 : vector<4x32xf32>
    %663 = math.tanh %662 : vector<4x32xf32>
    %664 = arith.mulf %659, %663 : vector<4x32xf32>
    %665 = arith.subf %664, %634 : vector<4x32xf32>
    %666 = arith.mulf %51, %665 : vector<4x32xf32>
    %667 = arith.addf %634, %666 : vector<4x32xf32>
    %668 = arith.subf %662, %637 : vector<4x32xf32>
    %669 = arith.mulf %51, %668 : vector<4x32xf32>
    %670 = arith.addf %637, %669 : vector<4x32xf32>
    %671 = arith.mulf %51, %664 : vector<4x32xf32>
    %cst_230 = arith.constant dense<0.000000e+00> : vector<4x128xf32>
    %672 = tpu.matmul %667, %422, %cst_230 {dimension_numbers = #tpu.dot_dimension_numbers<[1], [0], [0], [1], [0, 0, 1, 1], [], []>} : vector<4x32xf32>, vector<32x128xf32>, vector<4x128xf32> -> vector<4x128xf32>
    %673 = arith.addf %465, %672 : vector<4x128xf32>
    %cst_231 = arith.constant 5.000000e-01 : f32
    %674 = vector.broadcast %cst_231 : f32 to vector<4x128xf32>
    %675 = arith.mulf %674, %673 : vector<4x128xf32>
    %676 = math.tanh %675 : vector<4x128xf32>
    %677 = vector.extract_strided_slice %676 {offsets = [0, 0], sizes = [4, 32], strides = [1, 1]} : vector<4x128xf32> to vector<4x32xf32>
    %cst_232 = arith.constant 5.000000e-01 : f32
    %678 = vector.broadcast %cst_232 : f32 to vector<4x32xf32>
    %679 = arith.mulf %678, %677 : vector<4x32xf32>
    %cst_233 = arith.constant 5.000000e-01 : f32
    %680 = vector.broadcast %cst_233 : f32 to vector<4x32xf32>
    %681 = arith.addf %679, %680 : vector<4x32xf32>
    %682 = vector.extract_strided_slice %676 {offsets = [0, 32], sizes = [4, 32], strides = [1, 1]} : vector<4x128xf32> to vector<4x32xf32>
    %cst_234 = arith.constant 5.000000e-01 : f32
    %683 = vector.broadcast %cst_234 : f32 to vector<4x32xf32>
    %684 = arith.mulf %683, %682 : vector<4x32xf32>
    %cst_235 = arith.constant 5.000000e-01 : f32
    %685 = vector.broadcast %cst_235 : f32 to vector<4x32xf32>
    %686 = arith.addf %684, %685 : vector<4x32xf32>
    %687 = vector.extract_strided_slice %676 {offsets = [0, 64], sizes = [4, 32], strides = [1, 1]} : vector<4x128xf32> to vector<4x32xf32>
    %688 = vector.extract_strided_slice %676 {offsets = [0, 96], sizes = [4, 32], strides = [1, 1]} : vector<4x128xf32> to vector<4x32xf32>
    %cst_236 = arith.constant 5.000000e-01 : f32
    %689 = vector.broadcast %cst_236 : f32 to vector<4x32xf32>
    %690 = arith.mulf %689, %688 : vector<4x32xf32>
    %cst_237 = arith.constant 5.000000e-01 : f32
    %691 = vector.broadcast %cst_237 : f32 to vector<4x32xf32>
    %692 = arith.addf %690, %691 : vector<4x32xf32>
    %693 = arith.mulf %686, %670 : vector<4x32xf32>
    %694 = arith.mulf %681, %687 : vector<4x32xf32>
    %695 = arith.addf %693, %694 : vector<4x32xf32>
    %696 = math.tanh %695 : vector<4x32xf32>
    %697 = arith.mulf %692, %696 : vector<4x32xf32>
    %698 = arith.subf %697, %667 : vector<4x32xf32>
    %699 = arith.mulf %59, %698 : vector<4x32xf32>
    %700 = arith.addf %667, %699 : vector<4x32xf32>
    %701 = arith.subf %695, %670 : vector<4x32xf32>
    %702 = arith.mulf %59, %701 : vector<4x32xf32>
    %703 = arith.addf %670, %702 : vector<4x32xf32>
    %704 = arith.mulf %59, %697 : vector<4x32xf32>
    %cst_238 = arith.constant dense<0.000000e+00> : vector<4x128xf32>
    %705 = tpu.matmul %700, %422, %cst_238 {dimension_numbers = #tpu.dot_dimension_numbers<[1], [0], [0], [1], [0, 0, 1, 1], [], []>} : vector<4x32xf32>, vector<32x128xf32>, vector<4x128xf32> -> vector<4x128xf32>
    %706 = arith.addf %471, %705 : vector<4x128xf32>
    %cst_239 = arith.constant 5.000000e-01 : f32
    %707 = vector.broadcast %cst_239 : f32 to vector<4x128xf32>
    %708 = arith.mulf %707, %706 : vector<4x128xf32>
    %709 = math.tanh %708 : vector<4x128xf32>
    %710 = vector.extract_strided_slice %709 {offsets = [0, 0], sizes = [4, 32], strides = [1, 1]} : vector<4x128xf32> to vector<4x32xf32>
    %cst_240 = arith.constant 5.000000e-01 : f32
    %711 = vector.broadcast %cst_240 : f32 to vector<4x32xf32>
    %712 = arith.mulf %711, %710 : vector<4x32xf32>
    %cst_241 = arith.constant 5.000000e-01 : f32
    %713 = vector.broadcast %cst_241 : f32 to vector<4x32xf32>
    %714 = arith.addf %712, %713 : vector<4x32xf32>
    %715 = vector.extract_strided_slice %709 {offsets = [0, 32], sizes = [4, 32], strides = [1, 1]} : vector<4x128xf32> to vector<4x32xf32>
    %cst_242 = arith.constant 5.000000e-01 : f32
    %716 = vector.broadcast %cst_242 : f32 to vector<4x32xf32>
    %717 = arith.mulf %716, %715 : vector<4x32xf32>
    %cst_243 = arith.constant 5.000000e-01 : f32
    %718 = vector.broadcast %cst_243 : f32 to vector<4x32xf32>
    %719 = arith.addf %717, %718 : vector<4x32xf32>
    %720 = vector.extract_strided_slice %709 {offsets = [0, 64], sizes = [4, 32], strides = [1, 1]} : vector<4x128xf32> to vector<4x32xf32>
    %721 = vector.extract_strided_slice %709 {offsets = [0, 96], sizes = [4, 32], strides = [1, 1]} : vector<4x128xf32> to vector<4x32xf32>
    %cst_244 = arith.constant 5.000000e-01 : f32
    %722 = vector.broadcast %cst_244 : f32 to vector<4x32xf32>
    %723 = arith.mulf %722, %721 : vector<4x32xf32>
    %cst_245 = arith.constant 5.000000e-01 : f32
    %724 = vector.broadcast %cst_245 : f32 to vector<4x32xf32>
    %725 = arith.addf %723, %724 : vector<4x32xf32>
    %726 = arith.mulf %719, %703 : vector<4x32xf32>
    %727 = arith.mulf %714, %720 : vector<4x32xf32>
    %728 = arith.addf %726, %727 : vector<4x32xf32>
    %729 = math.tanh %728 : vector<4x32xf32>
    %730 = arith.mulf %725, %729 : vector<4x32xf32>
    %731 = arith.subf %730, %700 : vector<4x32xf32>
    %732 = arith.mulf %67, %731 : vector<4x32xf32>
    %733 = arith.addf %700, %732 : vector<4x32xf32>
    %734 = arith.subf %728, %703 : vector<4x32xf32>
    %735 = arith.mulf %67, %734 : vector<4x32xf32>
    %736 = arith.addf %703, %735 : vector<4x32xf32>
    %737 = arith.mulf %67, %730 : vector<4x32xf32>
    %738 = vector.extract_strided_slice %733 {offsets = [0, 0], sizes = [4, 16], strides = [1, 1]} : vector<4x32xf32> to vector<4x16xf32>
    %c2_246 = arith.constant 2 : index
    %c0_247 = arith.constant 0 : index
    %c0_248 = arith.constant 0 : index
    %739 = vector.load %arg11[%c2_246, %c0_247, %c0_248] : memref<4x4x16xf32, #tpu.memory_space<vmem>>, vector<1x4x16xf32>
    %740 = vector.shape_cast %739 : vector<1x4x16xf32> to vector<4x16xf32>
    %741 = vector.shape_cast %738 : vector<4x16xf32> to vector<1x4x16xf32>
    tpu.vector_store %arg11[%c2_246, %c0_247, %c0_248], %741 {strides = array<i32>} : memref<4x4x16xf32, #tpu.memory_space<vmem>>, vector<1x4x16xf32>,
    %742 = vector.extract_strided_slice %736 {offsets = [0, 0], sizes = [4, 16], strides = [1, 1]} : vector<4x32xf32> to vector<4x16xf32>
    %c2_249 = arith.constant 2 : index
    %c0_250 = arith.constant 0 : index
    %c0_251 = arith.constant 0 : index
    %743 = vector.load %arg12[%c2_249, %c0_250, %c0_251] : memref<4x4x16xf32, #tpu.memory_space<vmem>>, vector<1x4x16xf32>
    %744 = vector.shape_cast %743 : vector<1x4x16xf32> to vector<4x16xf32>
    %745 = vector.shape_cast %742 : vector<4x16xf32> to vector<1x4x16xf32>
    tpu.vector_store %arg12[%c2_249, %c0_250, %c0_251], %745 {strides = array<i32>} : memref<4x4x16xf32, #tpu.memory_space<vmem>>, vector<1x4x16xf32>,
    %746 = vector.extract_strided_slice %733 {offsets = [0, 16], sizes = [4, 16], strides = [1, 1]} : vector<4x32xf32> to vector<4x16xf32>
    %c3_252 = arith.constant 3 : index
    %c0_253 = arith.constant 0 : index
    %c0_254 = arith.constant 0 : index
    %747 = vector.load %arg11[%c3_252, %c0_253, %c0_254] : memref<4x4x16xf32, #tpu.memory_space<vmem>>, vector<1x4x16xf32>
    %748 = vector.shape_cast %747 : vector<1x4x16xf32> to vector<4x16xf32>
    %749 = vector.shape_cast %746 : vector<4x16xf32> to vector<1x4x16xf32>
    tpu.vector_store %arg11[%c3_252, %c0_253, %c0_254], %749 {strides = array<i32>} : memref<4x4x16xf32, #tpu.memory_space<vmem>>, vector<1x4x16xf32>,
    %750 = vector.extract_strided_slice %736 {offsets = [0, 16], sizes = [4, 16], strides = [1, 1]} : vector<4x32xf32> to vector<4x16xf32>
    %c3_255 = arith.constant 3 : index
    %c0_256 = arith.constant 0 : index
    %c0_257 = arith.constant 0 : index
    %751 = vector.load %arg12[%c3_255, %c0_256, %c0_257] : memref<4x4x16xf32, #tpu.memory_space<vmem>>, vector<1x4x16xf32>
    %752 = vector.shape_cast %751 : vector<1x4x16xf32> to vector<4x16xf32>
    %753 = vector.shape_cast %750 : vector<4x16xf32> to vector<1x4x16xf32>
    tpu.vector_store %arg12[%c3_255, %c0_256, %c0_257], %753 {strides = array<i32>} : memref<4x4x16xf32, #tpu.memory_space<vmem>>, vector<1x4x16xf32>,
    %754 = vector.broadcast %69 : vector<1x32xf32> to vector<4x32xf32>
    %755 = arith.mulf %506, %754 : vector<4x32xf32>
    %756 = vector.broadcast %71 : vector<1x32xf32> to vector<4x32xf32>
    %757 = arith.mulf %737, %756 : vector<4x32xf32>
    %758 = arith.addf %755, %757 : vector<4x32xf32>
    %c0_258 = arith.constant 0 : index
    %c0_259 = arith.constant 0 : index
    %c0_260 = arith.constant 0 : index
    %759 = vector.load %arg10[%c0_258, %c0_259, %c0_260] : memref<8x4x32xf32, #tpu.memory_space<vmem>>, vector<1x4x32xf32>
    %760 = vector.shape_cast %759 : vector<1x4x32xf32> to vector<4x32xf32>
    %761 = vector.shape_cast %758 : vector<4x32xf32> to vector<1x4x32xf32>
    tpu.vector_store %arg10[%c0_258, %c0_259, %c0_260], %761 {strides = array<i32>} : memref<8x4x32xf32, #tpu.memory_space<vmem>>, vector<1x4x32xf32>,
    %762 = vector.broadcast %69 : vector<1x32xf32> to vector<4x32xf32>
    %763 = arith.mulf %539, %762 : vector<4x32xf32>
    %764 = vector.broadcast %71 : vector<1x32xf32> to vector<4x32xf32>
    %765 = arith.mulf %704, %764 : vector<4x32xf32>
    %766 = arith.addf %763, %765 : vector<4x32xf32>
    %c1_261 = arith.constant 1 : index
    %c0_262 = arith.constant 0 : index
    %c0_263 = arith.constant 0 : index
    %767 = vector.load %arg10[%c1_261, %c0_262, %c0_263] : memref<8x4x32xf32, #tpu.memory_space<vmem>>, vector<1x4x32xf32>
    %768 = vector.shape_cast %767 : vector<1x4x32xf32> to vector<4x32xf32>
    %769 = vector.shape_cast %766 : vector<4x32xf32> to vector<1x4x32xf32>
    tpu.vector_store %arg10[%c1_261, %c0_262, %c0_263], %769 {strides = array<i32>} : memref<8x4x32xf32, #tpu.memory_space<vmem>>, vector<1x4x32xf32>,
    %770 = vector.broadcast %69 : vector<1x32xf32> to vector<4x32xf32>
    %771 = arith.mulf %572, %770 : vector<4x32xf32>
    %772 = vector.broadcast %71 : vector<1x32xf32> to vector<4x32xf32>
    %773 = arith.mulf %671, %772 : vector<4x32xf32>
    %774 = arith.addf %771, %773 : vector<4x32xf32>
    %c2_264 = arith.constant 2 : index
    %c0_265 = arith.constant 0 : index
    %c0_266 = arith.constant 0 : index
    %775 = vector.load %arg10[%c2_264, %c0_265, %c0_266] : memref<8x4x32xf32, #tpu.memory_space<vmem>>, vector<1x4x32xf32>
    %776 = vector.shape_cast %775 : vector<1x4x32xf32> to vector<4x32xf32>
    %777 = vector.shape_cast %774 : vector<4x32xf32> to vector<1x4x32xf32>
    tpu.vector_store %arg10[%c2_264, %c0_265, %c0_266], %777 {strides = array<i32>} : memref<8x4x32xf32, #tpu.memory_space<vmem>>, vector<1x4x32xf32>,
    %778 = vector.broadcast %69 : vector<1x32xf32> to vector<4x32xf32>
    %779 = arith.mulf %605, %778 : vector<4x32xf32>
    %780 = vector.broadcast %71 : vector<1x32xf32> to vector<4x32xf32>
    %781 = arith.mulf %638, %780 : vector<4x32xf32>
    %782 = arith.addf %779, %781 : vector<4x32xf32>
    %c3_267 = arith.constant 3 : index
    %c0_268 = arith.constant 0 : index
    %c0_269 = arith.constant 0 : index
    %783 = vector.load %arg10[%c3_267, %c0_268, %c0_269] : memref<8x4x32xf32, #tpu.memory_space<vmem>>, vector<1x4x32xf32>
    %784 = vector.shape_cast %783 : vector<1x4x32xf32> to vector<4x32xf32>
    %785 = vector.shape_cast %782 : vector<4x32xf32> to vector<1x4x32xf32>
    tpu.vector_store %arg10[%c3_267, %c0_268, %c0_269], %785 {strides = array<i32>} : memref<8x4x32xf32, #tpu.memory_space<vmem>>, vector<1x4x32xf32>,
    %786 = vector.broadcast %69 : vector<1x32xf32> to vector<4x32xf32>
    %787 = arith.mulf %638, %786 : vector<4x32xf32>
    %788 = vector.broadcast %71 : vector<1x32xf32> to vector<4x32xf32>
    %789 = arith.mulf %605, %788 : vector<4x32xf32>
    %790 = arith.addf %787, %789 : vector<4x32xf32>
    %c4_270 = arith.constant 4 : index
    %c0_271 = arith.constant 0 : index
    %c0_272 = arith.constant 0 : index
    %791 = vector.load %arg10[%c4_270, %c0_271, %c0_272] : memref<8x4x32xf32, #tpu.memory_space<vmem>>, vector<1x4x32xf32>
    %792 = vector.shape_cast %791 : vector<1x4x32xf32> to vector<4x32xf32>
    %793 = vector.shape_cast %790 : vector<4x32xf32> to vector<1x4x32xf32>
    tpu.vector_store %arg10[%c4_270, %c0_271, %c0_272], %793 {strides = array<i32>} : memref<8x4x32xf32, #tpu.memory_space<vmem>>, vector<1x4x32xf32>,
    %794 = vector.broadcast %69 : vector<1x32xf32> to vector<4x32xf32>
    %795 = arith.mulf %671, %794 : vector<4x32xf32>
    %796 = vector.broadcast %71 : vector<1x32xf32> to vector<4x32xf32>
    %797 = arith.mulf %572, %796 : vector<4x32xf32>
    %798 = arith.addf %795, %797 : vector<4x32xf32>
    %c5_273 = arith.constant 5 : index
    %c0_274 = arith.constant 0 : index
    %c0_275 = arith.constant 0 : index
    %799 = vector.load %arg10[%c5_273, %c0_274, %c0_275] : memref<8x4x32xf32, #tpu.memory_space<vmem>>, vector<1x4x32xf32>
    %800 = vector.shape_cast %799 : vector<1x4x32xf32> to vector<4x32xf32>
    %801 = vector.shape_cast %798 : vector<4x32xf32> to vector<1x4x32xf32>
    tpu.vector_store %arg10[%c5_273, %c0_274, %c0_275], %801 {strides = array<i32>} : memref<8x4x32xf32, #tpu.memory_space<vmem>>, vector<1x4x32xf32>,
    %802 = vector.broadcast %69 : vector<1x32xf32> to vector<4x32xf32>
    %803 = arith.mulf %704, %802 : vector<4x32xf32>
    %804 = vector.broadcast %71 : vector<1x32xf32> to vector<4x32xf32>
    %805 = arith.mulf %539, %804 : vector<4x32xf32>
    %806 = arith.addf %803, %805 : vector<4x32xf32>
    %c6_276 = arith.constant 6 : index
    %c0_277 = arith.constant 0 : index
    %c0_278 = arith.constant 0 : index
    %807 = vector.load %arg10[%c6_276, %c0_277, %c0_278] : memref<8x4x32xf32, #tpu.memory_space<vmem>>, vector<1x4x32xf32>
    %808 = vector.shape_cast %807 : vector<1x4x32xf32> to vector<4x32xf32>
    %809 = vector.shape_cast %806 : vector<4x32xf32> to vector<1x4x32xf32>
    tpu.vector_store %arg10[%c6_276, %c0_277, %c0_278], %809 {strides = array<i32>} : memref<8x4x32xf32, #tpu.memory_space<vmem>>, vector<1x4x32xf32>,
    %810 = vector.broadcast %69 : vector<1x32xf32> to vector<4x32xf32>
    %811 = arith.mulf %737, %810 : vector<4x32xf32>
    %812 = vector.broadcast %71 : vector<1x32xf32> to vector<4x32xf32>
    %813 = arith.mulf %506, %812 : vector<4x32xf32>
    %814 = arith.addf %811, %813 : vector<4x32xf32>
    %c7_279 = arith.constant 7 : index
    %c0_280 = arith.constant 0 : index
    %c0_281 = arith.constant 0 : index
    %815 = vector.load %arg10[%c7_279, %c0_280, %c0_281] : memref<8x4x32xf32, #tpu.memory_space<vmem>>, vector<1x4x32xf32>
    %816 = vector.shape_cast %815 : vector<1x4x32xf32> to vector<4x32xf32>
    %817 = vector.shape_cast %814 : vector<4x32xf32> to vector<1x4x32xf32>
    tpu.vector_store %arg10[%c7_279, %c0_280, %c0_281], %817 {strides = array<i32>} : memref<8x4x32xf32, #tpu.memory_space<vmem>>, vector<1x4x32xf32>,
    %c0_282 = arith.constant 0 : index
    %c0_283 = arith.constant 0 : index
    %818 = vector.load %arg13[%c0_282, %c0_283] : memref<4x32xf32, #tpu.memory_space<vmem>>, vector<4x32xf32>
    tpu.vector_store %arg13[%c0_282, %c0_283], %733 {strides = array<i32>} : memref<4x32xf32, #tpu.memory_space<vmem>>, vector<4x32xf32>,
    return
  }
}

</mosaic_0001>

<llo_original>
// kernel: a_call__.1
$region0: #{a_call__.1}
  #allocation0 [shape = 'u32[]', space=smem, size = 0x4, offset = 0x4, fixed_abs, tag = 'smem constant byte address 0x4 - core index']
  #allocation1 [shape = 'u32[144,128]{1,0:T(1,128)}', space=vmem, size = 0x12000, scoped, tag = 'internal scratch']
  %s0 = inlined_call_operand.vmem [shape: s32[4,1], index: 0, kind: input, shape index: {}]
  %s1 = inlined_call_operand.vmem [shape: f32[8,4,16], index: 1, kind: input, shape index: {}]
  %s2 = inlined_call_operand.vmem [shape: f32[16,128], index: 2, kind: input, shape index: {}]
  %s3 = inlined_call_operand.hbm [shape: f32[16,128], index: 3, kind: input, shape index: {}]
  %s4 = inlined_call_operand.vmem [shape: f32[32,128], index: 4, kind: input, shape index: {}]
  %s5 = inlined_call_operand.vmem [shape: f32[1,128], index: 5, kind: input, shape index: {}]
  %s6 = inlined_call_operand.vmem [shape: f32[32,128], index: 6, kind: input, shape index: {}]
  %s7 = inlined_call_operand.hbm [shape: f32[32,128], index: 7, kind: input, shape index: {}]
  %s8 = inlined_call_operand.hbm [shape: f32[32,128], index: 8, kind: input, shape index: {}]
  %s9 = inlined_call_operand.vmem [shape: f32[1,128], index: 9, kind: input, shape index: {}]
  %s10 = inlined_call_operand.vmem [shape: f32[8,4,32], index: 10, kind: output, shape index: {0}]
  %s11 = inlined_call_operand.hbm [shape: f32[4,4,16], index: 11, kind: output, shape index: {1}]
  %s12 = inlined_call_operand.hbm [shape: f32[4,4,16], index: 12, kind: output, shape index: {2}]
  %s13 = inlined_call_operand.hbm [shape: f32[4,32], index: 13, kind: output, shape index: {3}]
  %14 = xla_tuple %s10, %s11, %s12, %s13
  %s15 = sld [smem:[#allocation0]]
  $region86: #{a_call__.1} parent=0
    _
  %s17 = ssub.s32 1, %s15
  %s18 = scalar_select 0, %s17, %s15
  $region1: #{a_call__.1} parent=0
    #allocation2 [shape = 'u8[8192]{0}', space=vmem, size = 0x2000, scoped, tag = 'input window, operand 3, single buffered']
    #allocation3 [shape = 's32[1]{0}', space=sflag, size = 0x4, scoped, tag = 'scoped memory for a_call__.1']
    #allocation4 [shape = 's32[1]{0}', space=sflag, size = 0x4, scoped, tag = 'scoped memory for a_call__.1']
    #allocation5 [shape = 'u8[16384]{0}', space=vmem, size = 0x4000, scoped, tag = 'input window, operand 7, single buffered']
    #allocation6 [shape = 's32[1]{0}', space=sflag, size = 0x4, scoped, tag = 'scoped memory for a_call__.1']
    #allocation7 [shape = 'u8[16384]{0}', space=vmem, size = 0x4000, scoped, tag = 'input window, operand 8, single buffered']
    #allocation8 [shape = 'u8[8192]{0}', space=vmem, size = 0x2000, scoped, tag = 'output window, operand 1, single buffered']
    #allocation9 [shape = 'u8[8192]{0}', space=vmem, size = 0x2000, scoped, tag = 'output window, operand 2, single buffered']
    #allocation10 [shape = 's32[1]{0}', space=sflag, size = 0x4, scoped, tag = 'scoped memory for a_call__.1']
    #allocation11 [shape = 'u8[2048]{0}', space=vmem, size = 0x800, scoped, tag = 'output window, operand 3, single buffered']
    %19 = vsyncpa [#allocation3], 0
    %20 = vsyncpa [#allocation6], 0
    %21 = vsyncpa [#allocation4], 0
    %22 = vsyncpa [#allocation10], 0
    // Predicated region
    $region2: #{a_call__.1} parent=1 // pred_check
      _
    $region3: #{a_call__.1} parent=1 // pred_check_branch
      %24 = sbr.rel (0) target = $region5
    $region4: #{a_call__.1} parent=1 // pred_region
      _
    $region5: #{a_call__.1} parent=1 // pred_fallthru
      _
    // Predicated region
    $region6: #{a_call__.1} parent=1 // pred_check
      _
    $region7: #{a_call__.1} parent=1 // pred_check_branch
      %26 = sbr.rel (0) target = $region9
    $region8: #{a_call__.1} parent=1 // pred_region
      _
    $region9: #{a_call__.1} parent=1 // pred_fallthru
      _
    // Predicated region
    $region10: #{a_call__.1} parent=1 // pred_check
      _
    $region11: #{a_call__.1} parent=1 // pred_check_branch
      %28 = sbr.rel (0) target = $region13
    $region12: #{a_call__.1} parent=1 // pred_region
      _
    $region13: #{a_call__.1} parent=1 // pred_fallthru
      _
    // Predicated region
    $region14: #{a_call__.1} parent=1 // pred_check
      _
    $region15: #{a_call__.1} parent=1 // pred_check_branch
      %30 = sbr.rel (0) target = $region17
    $region16: #{a_call__.1} parent=1 // pred_region
      %s32 = ssub.s32 256, 256
      %33 = vsyncadd [#allocation3], %s32
      %s34 = sshll.u32 [#allocation2], 4
      %s35 = int_to_ptr.vmem [resolvable:$true] %s34
      %40 = dma.hbm_to_vmem [thread:$0]  %s3, 256, %s35, [#allocation3], 128, 128, 8
    $region17: #{a_call__.1} parent=1 // pred_fallthru
      _
    // Predicated region
    $region18: #{a_call__.1} parent=1 // pred_check
      _
    $region19: #{a_call__.1} parent=1 // pred_check_branch
      %42 = sbr.rel (0) target = $region21
    $region20: #{a_call__.1} parent=1 // pred_region
      _
    $region21: #{a_call__.1} parent=1 // pred_fallthru
      _
    // Predicated region
    $region22: #{a_call__.1} parent=1 // pred_check
      _
    $region23: #{a_call__.1} parent=1 // pred_check_branch
      %44 = sbr.rel (0) target = $region25
    $region24: #{a_call__.1} parent=1 // pred_region
      _
    $region25: #{a_call__.1} parent=1 // pred_fallthru
      _
    // Predicated region
    $region26: #{a_call__.1} parent=1 // pred_check
      _
    $region27: #{a_call__.1} parent=1 // pred_check_branch
      %46 = sbr.rel (0) target = $region29
    $region28: #{a_call__.1} parent=1 // pred_region
      _
    $region29: #{a_call__.1} parent=1 // pred_fallthru
      _
    // Predicated region
    $region30: #{a_call__.1} parent=1 // pred_check
      _
    $region31: #{a_call__.1} parent=1 // pred_check_branch
      %48 = sbr.rel (0) target = $region33
    $region32: #{a_call__.1} parent=1 // pred_region
      %s50 = ssub.s32 512, 512
      %51 = vsyncadd [#allocation6], %s50
      %s52 = sshll.u32 [#allocation5], 4
      %s53 = int_to_ptr.vmem [resolvable:$true] %s52
      %58 = dma.hbm_to_vmem [thread:$0]  %s7, 512, %s53, [#allocation6], 128, 128, 8
    $region33: #{a_call__.1} parent=1 // pred_fallthru
      _
    // Predicated region
    $region34: #{a_call__.1} parent=1 // pred_check
      _
    $region35: #{a_call__.1} parent=1 // pred_check_branch
      %60 = sbr.rel (0) target = $region37
    $region36: #{a_call__.1} parent=1 // pred_region
      %s62 = ssub.s32 512, 512
      %63 = vsyncadd [#allocation6], %s62
      %s64 = sshll.u32 [#allocation7], 4
      %s65 = int_to_ptr.vmem [resolvable:$true] %s64
      %70 = dma.hbm_to_vmem [thread:$0]  %s8, 512, %s65, [#allocation6], 128, 128, 8
    $region37: #{a_call__.1} parent=1 // pred_fallthru
      _
    // Predicated region
    $region38: #{a_call__.1} parent=1 // pred_check
      _
    $region39: #{a_call__.1} parent=1 // pred_check_branch
      %72 = sbr.rel (0) target = $region41
    $region40: #{a_call__.1} parent=1 // pred_region
      _
    $region41: #{a_call__.1} parent=1 // pred_fallthru
      _
    // Predicated region
    $region42: #{a_call__.1} parent=1 // pred_check
      _
    $region43: #{a_call__.1} parent=1 // pred_check_branch
      %74 = sbr.rel (0) target = $region45
    $region44: #{a_call__.1} parent=1 // pred_region
      %75 = dma.done [#allocation3], 256
    $region45: #{a_call__.1} parent=1 // pred_fallthru
      _
    // Predicated region
    $region46: #{a_call__.1} parent=1 // pred_check
      _
    $region47: #{a_call__.1} parent=1 // pred_check_branch
      %77 = sbr.rel (0) target = $region49
    $region48: #{a_call__.1} parent=1 // pred_region
      %78 = dma.done [#allocation6], 512
    $region49: #{a_call__.1} parent=1 // pred_fallthru
      _
    // Predicated region
    $region50: #{a_call__.1} parent=1 // pred_check
      _
    $region51: #{a_call__.1} parent=1 // pred_check_branch
      %80 = sbr.rel (0) target = $region53
    $region52: #{a_call__.1} parent=1 // pred_region
      %81 = dma.done [#allocation6], 512
    $region53: #{a_call__.1} parent=1 // pred_fallthru
      _
    %v82 = vld [vmem:[%s0] sm:$0xf]
    %v83 = vlaneseq
    %v84 = vand.u32 %v83, 127
    %vm85 = vcmp.lt.s32.totalorder %v84, 16
    %v86 = vsel %vm85, 0, 7
    %87 = vset.pattern.permute.xlu0 0
    %88 = vperm.xlu0 %87, %v82
    %v89 = vpop.permute.xlu0 %88
    %vm90 = vcmp.lt.s32.totalorder %v86, %v89
    %v91 = vsel %vm90, 1, 0
    %v92 = vcvt.s32.f32 %v91
    %v93 = vsel %vm85, 1, 6
    %vm94 = vcmp.lt.s32.totalorder %v93, %v89
    %v95 = vsel %vm94, 1, 0
    %v96 = vcvt.s32.f32 %v95
    %v97 = vsel %vm85, 2, 5
    %vm98 = vcmp.lt.s32.totalorder %v97, %v89
    %v99 = vsel %vm98, 1, 0
    %v100 = vcvt.s32.f32 %v99
    %v101 = vsel %vm85, 3, 4
    %vm102 = vcmp.lt.s32.totalorder %v101, %v89
    %v103 = vsel %vm102, 1, 0
    %v104 = vcvt.s32.f32 %v103
    %v105 = vsel %vm85, 4, 3
    %vm106 = vcmp.lt.s32.totalorder %v105, %v89
    %v107 = vsel %vm106, 1, 0
    %v108 = vcvt.s32.f32 %v107
    %v109 = vsel %vm85, 5, 2
    %vm110 = vcmp.lt.s32.totalorder %v109, %v89
    %v111 = vsel %vm110, 1, 0
    %v112 = vcvt.s32.f32 %v111
    %v113 = vsel %vm85, 6, 1
    %vm114 = vcmp.lt.s32.totalorder %v113, %v89
    %v115 = vsel %vm114, 1, 0
    %v116 = vcvt.s32.f32 %v115
    %v117 = vsel %vm85, 7, 0
    %vm118 = vcmp.lt.s32.totalorder %v117, %v89
    %v119 = vsel %vm118, 1, 0
    %v120 = vcvt.s32.f32 %v119
    %v121 = vsel %vm85, 1, 0
    %v122 = vcvt.s32.f32 %v121
    %v123 = vsub.f32 1.0, %v122
    %v124 = vld [vmem:[%s1] sm:$0xf]
    %s125 = scalar_lea.vmem %s1, 4
    %v126 = vld [vmem:[%s125] sm:$0xf]
    %s127 = scalar_lea.vmem %s1, 8
    %v128 = vld [vmem:[%s127] sm:$0xf]
    %s129 = scalar_lea.vmem %s1, 12
    %v130 = vld [vmem:[%s129] sm:$0xf]
    %s131 = scalar_lea.vmem %s1, 16
    %v132 = vld [vmem:[%s131] sm:$0xf]
    %s133 = scalar_lea.vmem %s1, 20
    %v134 = vld [vmem:[%s133] sm:$0xf]
    %s135 = scalar_lea.vmem %s1, 24
    %v136 = vld [vmem:[%s135] sm:$0xf]
    %s137 = scalar_lea.vmem %s1, 28
    %v138 = vld [vmem:[%s137] sm:$0xf]
    %v139 = vld [vmem:[%s2] sm:$0xff]
    %v140 = vld [vmem:[%s2 + $0x8] sm:$0xff]
    %v141 = vld [vmem:[%s4] sm:$0xff]
    %v142 = vld [vmem:[%s4 + $0x8] sm:$0xff]
    %v143 = vld [vmem:[%s4 + $0x10] sm:$0xff]
    %v144 = vld [vmem:[%s4 + $0x18] sm:$0xff]
    %v145 = vld [vmem:[%s5] sm:$0x1]
    %v147 = vlaneseq
    %v148 = vshrl.u32 %v147, 7
    %v149 = vsub.s32 0, %v148
    %v150 = vrot.slane %v145, %v149
    %vm152 = vcmask 130048
    %v154 = vsel %vm152, %v124, 0
    %156 = vmatprep.subr.mxu0 0.0
    %157 = vmatpush1.msra.mxu0 %v139
    %158 = vmatprep.subr.mxu0 0.0
    %159 = vmatpush1.msra.mxu0 %v140
    %160 = vmatprep.subr.mxu0 0.0
    %161 = vmatpush1.msra.mxu0 0.0
    %162 = vmatprep.subr.mxu0 0.0
    %163 = vmatpush1.msra.mxu0 0.0
    %164 = vmatprep.subr.mxu0 0.0
    %165 = vmatpush1.msra.mxu0 0.0
    %166 = vmatprep.subr.mxu0 0.0
    %167 = vmatpush1.msra.mxu0 0.0
    %168 = vmatprep.subr.mxu0 0.0
    %169 = vmatpush1.msra.mxu0 0.0
    %170 = vmatprep.subr.mxu0 0.0
    %171 = vmatpush1.msra.mxu0 0.0
    %172 = vmatprep.subr.mxu0 0.0
    %173 = vmatpush1.msra.mxu0 0.0
    %174 = vmatprep.subr.mxu0 0.0
    %175 = vmatpush1.msra.mxu0 0.0
    %176 = vmatprep.subr.mxu0 0.0
    %177 = vmatpush1.msra.mxu0 0.0
    %178 = vmatprep.subr.mxu0 0.0
    %179 = vmatpush1.msra.mxu0 0.0
    %180 = vmatprep.subr.mxu0 0.0
    %181 = vmatpush1.msra.mxu0 0.0
    %182 = vmatprep.subr.mxu0 0.0
    %183 = vmatpush1.msra.mxu0 0.0
    %184 = vmatprep.subr.mxu0 0.0
    %185 = vmatpush1.msra.mxu0 0.0
    %186 = vmatprep.subr.mxu0 0.0
    %187 = vmatpush1.msra.mxu0 0.0
    %188 = vmatprep.subr.mxu0 0.0
    %189 = vmatpush1.msra.mxu0 0.0
    %190 = vmatprep.subr.mxu0 0.0
    %191 = vmatpush1.msra.mxu0 0.0
    %192 = vmatprep.subr.mxu0 0.0
    %193 = vmatpush1.msra.mxu0 0.0
    %194 = vmatprep.subr.mxu0 0.0
    %195 = vmatpush1.msra.mxu0 0.0
    %196 = vmatprep.subr.mxu0 0.0
    %197 = vmatpush1.msra.mxu0 0.0
    %198 = vmatprep.subr.mxu0 0.0
    %199 = vmatpush1.msra.mxu0 0.0
    %200 = vmatprep.subr.mxu0 0.0
    %201 = vmatpush1.msra.mxu0 0.0
    %202 = vmatprep.subr.mxu0 0.0
    %203 = vmatpush1.msra.mxu0 0.0
    %204 = vmatprep.subr.mxu0 0.0
    %205 = vmatpush1.msra.mxu0 0.0
    %206 = vmatprep.subr.mxu0 0.0
    %207 = vmatpush1.msra.mxu0 0.0
    %208 = vmatprep.subr.mxu0 0.0
    %209 = vmatpush1.msra.mxu0 0.0
    %210 = vmatprep.subr.mxu0 0.0
    %211 = vmatpush1.msra.mxu0 0.0
    %212 = vmatprep.subr.mxu0 0.0
    %213 = vmatpush1.msra.mxu0 0.0
    %214 = vmatprep.subr.mxu0 0.0
    %215 = vmatpush1.msra.mxu0 0.0
    %216 = vmatprep.subr.mxu0 0.0
    %217 = vmatpush1.msra.mxu0 0.0
    %218 = vmatprep.subr.mxu0 0.0
    %219 = vmatpush1.msra.mxu0 0.0
    %220 = vmatprep.mubr.f32.mxu0 0.0
    %221 = vmatmul.mubr.f32.gmra.mrb[0].mxu0 %v154
    %v222 = vpop.f32.mrb[0].mxu0
    %v223 = vadd.f32 %v150, %v222
    %v224 = vpop.f32.mrb[0].mxu0
    %225 = vdwg.mxu0
    %v226 = vld [vmem:[#allocation2] sm:$0xff]
    %v227 = vld [vmem:[#allocation2 + $0x8] sm:$0xff]
    %v229 = vsel %vm152, %v138, 0
    %231 = vmatprep.subr.mxu0 0.0
    %232 = vmatpush1.msra.mxu0 %v226
    %233 = vmatprep.subr.mxu0 0.0
    %234 = vmatpush1.msra.mxu0 %v227
    %235 = vmatprep.subr.mxu0 0.0
    %236 = vmatpush1.msra.mxu0 0.0
    %237 = vmatprep.subr.mxu0 0.0
    %238 = vmatpush1.msra.mxu0 0.0
    %239 = vmatprep.subr.mxu0 0.0
    %240 = vmatpush1.msra.mxu0 0.0
    %241 = vmatprep.subr.mxu0 0.0
    %242 = vmatpush1.msra.mxu0 0.0
    %243 = vmatprep.subr.mxu0 0.0
    %244 = vmatpush1.msra.mxu0 0.0
    %245 = vmatprep.subr.mxu0 0.0
    %246 = vmatpush1.msra.mxu0 0.0
    %247 = vmatprep.subr.mxu0 0.0
    %248 = vmatpush1.msra.mxu0 0.0
    %249 = vmatprep.subr.mxu0 0.0
    %250 = vmatpush1.msra.mxu0 0.0
    %251 = vmatprep.subr.mxu0 0.0
    %252 = vmatpush1.msra.mxu0 0.0
    %253 = vmatprep.subr.mxu0 0.0
    %254 = vmatpush1.msra.mxu0 0.0
    %255 = vmatprep.subr.mxu0 0.0
    %256 = vmatpush1.msra.mxu0 0.0
    %257 = vmatprep.subr.mxu0 0.0
    %258 = vmatpush1.msra.mxu0 0.0
    %259 = vmatprep.subr.mxu0 0.0
    %260 = vmatpush1.msra.mxu0 0.0
    %261 = vmatprep.subr.mxu0 0.0
    %262 = vmatpush1.msra.mxu0 0.0
    %263 = vmatprep.subr.mxu0 0.0
    %264 = vmatpush1.msra.mxu0 0.0
    %265 = vmatprep.subr.mxu0 0.0
    %266 = vmatpush1.msra.mxu0 0.0
    %267 = vmatprep.subr.mxu0 0.0
    %268 = vmatpush1.msra.mxu0 0.0
    %269 = vmatprep.subr.mxu0 0.0
    %270 = vmatpush1.msra.mxu0 0.0
    %271 = vmatprep.subr.mxu0 0.0
    %272 = vmatpush1.msra.mxu0 0.0
    %273 = vmatprep.subr.mxu0 0.0
    %274 = vmatpush1.msra.mxu0 0.0
    %275 = vmatprep.subr.mxu0 0.0
    %276 = vmatpush1.msra.mxu0 0.0
    %277 = vmatprep.subr.mxu0 0.0
    %278 = vmatpush1.msra.mxu0 0.0
    %279 = vmatprep.subr.mxu0 0.0
    %280 = vmatpush1.msra.mxu0 0.0
    %281 = vmatprep.subr.mxu0 0.0
    %282 = vmatpush1.msra.mxu0 0.0
    %283 = vmatprep.subr.mxu0 0.0
    %284 = vmatpush1.msra.mxu0 0.0
    %285 = vmatprep.subr.mxu0 0.0
    %286 = vmatpush1.msra.mxu0 0.0
    %287 = vmatprep.subr.mxu0 0.0
    %288 = vmatpush1.msra.mxu0 0.0
    %289 = vmatprep.subr.mxu0 0.0
    %290 = vmatpush1.msra.mxu0 0.0
    %291 = vmatprep.subr.mxu0 0.0
    %292 = vmatpush1.msra.mxu0 0.0
    %293 = vmatprep.subr.mxu0 0.0
    %294 = vmatpush1.msra.mxu0 0.0
    %295 = vmatprep.mubr.f32.mxu0 0.0
    %296 = vmatmul.mubr.f32.gmra.mrb[0].mxu0 %v229
    %v297 = vpop.f32.mrb[0].mxu0
    %v298 = vadd.f32 0.0, %v297
    %v299 = vpop.f32.mrb[0].mxu0
    %300 = vdwg.mxu0
    %v301 = vadd.f32 %v223, %v298
    %v303 = vsel %vm152, %v126, 0
    %305 = vmatprep.subr.mxu0 0.0
    %306 = vmatpush1.msra.mxu0 %v139
    %307 = vmatprep.subr.mxu0 0.0
    %308 = vmatpush1.msra.mxu0 %v140
    %309 = vmatprep.subr.mxu0 0.0
    %310 = vmatpush1.msra.mxu0 0.0
    %311 = vmatprep.subr.mxu0 0.0
    %312 = vmatpush1.msra.mxu0 0.0
    %313 = vmatprep.subr.mxu0 0.0
    %314 = vmatpush1.msra.mxu0 0.0
    %315 = vmatprep.subr.mxu0 0.0
    %316 = vmatpush1.msra.mxu0 0.0
    %317 = vmatprep.subr.mxu0 0.0
    %318 = vmatpush1.msra.mxu0 0.0
    %319 = vmatprep.subr.mxu0 0.0
    %320 = vmatpush1.msra.mxu0 0.0
    %321 = vmatprep.subr.mxu0 0.0
    %322 = vmatpush1.msra.mxu0 0.0
    %323 = vmatprep.subr.mxu0 0.0
    %324 = vmatpush1.msra.mxu0 0.0
    %325 = vmatprep.subr.mxu0 0.0
    %326 = vmatpush1.msra.mxu0 0.0
    %327 = vmatprep.subr.mxu0 0.0
    %328 = vmatpush1.msra.mxu0 0.0
    %329 = vmatprep.subr.mxu0 0.0
    %330 = vmatpush1.msra.mxu0 0.0
    %331 = vmatprep.subr.mxu0 0.0
    %332 = vmatpush1.msra.mxu0 0.0
    %333 = vmatprep.subr.mxu0 0.0
    %334 = vmatpush1.msra.mxu0 0.0
    %335 = vmatprep.subr.mxu0 0.0
    %336 = vmatpush1.msra.mxu0 0.0
    %337 = vmatprep.subr.mxu0 0.0
    %338 = vmatpush1.msra.mxu0 0.0
    %339 = vmatprep.subr.mxu0 0.0
    %340 = vmatpush1.msra.mxu0 0.0
    %341 = vmatprep.subr.mxu0 0.0
    %342 = vmatpush1.msra.mxu0 0.0
    %343 = vmatprep.subr.mxu0 0.0
    %344 = vmatpush1.msra.mxu0 0.0
    %345 = vmatprep.subr.mxu0 0.0
    %346 = vmatpush1.msra.mxu0 0.0
    %347 = vmatprep.subr.mxu0 0.0
    %348 = vmatpush1.msra.mxu0 0.0
    %349 = vmatprep.subr.mxu0 0.0
    %350 = vmatpush1.msra.mxu0 0.0
    %351 = vmatprep.subr.mxu0 0.0
    %352 = vmatpush1.msra.mxu0 0.0
    %353 = vmatprep.subr.mxu0 0.0
    %354 = vmatpush1.msra.mxu0 0.0
    %355 = vmatprep.subr.mxu0 0.0
    %356 = vmatpush1.msra.mxu0 0.0
    %357 = vmatprep.subr.mxu0 0.0
    %358 = vmatpush1.msra.mxu0 0.0
    %359 = vmatprep.subr.mxu0 0.0
    %360 = vmatpush1.msra.mxu0 0.0
    %361 = vmatprep.subr.mxu0 0.0
    %362 = vmatpush1.msra.mxu0 0.0
    %363 = vmatprep.subr.mxu0 0.0
    %364 = vmatpush1.msra.mxu0 0.0
    %365 = vmatprep.subr.mxu0 0.0
    %366 = vmatpush1.msra.mxu0 0.0
    %367 = vmatprep.subr.mxu0 0.0
    %368 = vmatpush1.msra.mxu0 0.0
    %369 = vmatprep.mubr.f32.mxu0 0.0
    %370 = vmatmul.mubr.f32.gmra.mrb[0].mxu0 %v303
    %v371 = vpop.f32.mrb[0].mxu0
    %v372 = vadd.f32 %v150, %v371
    %v373 = vpop.f32.mrb[0].mxu0
    %374 = vdwg.mxu0
    %v376 = vsel %vm152, %v136, 0
    %378 = vmatprep.subr.mxu0 0.0
    %379 = vmatpush1.msra.mxu0 %v226
    %380 = vmatprep.subr.mxu0 0.0
    %381 = vmatpush1.msra.mxu0 %v227
    %382 = vmatprep.subr.mxu0 0.0
    %383 = vmatpush1.msra.mxu0 0.0
    %384 = vmatprep.subr.mxu0 0.0
    %385 = vmatpush1.msra.mxu0 0.0
    %386 = vmatprep.subr.mxu0 0.0
    %387 = vmatpush1.msra.mxu0 0.0
    %388 = vmatprep.subr.mxu0 0.0
    %389 = vmatpush1.msra.mxu0 0.0
    %390 = vmatprep.subr.mxu0 0.0
    %391 = vmatpush1.msra.mxu0 0.0
    %392 = vmatprep.subr.mxu0 0.0
    %393 = vmatpush1.msra.mxu0 0.0
    %394 = vmatprep.subr.mxu0 0.0
    %395 = vmatpush1.msra.mxu0 0.0
    %396 = vmatprep.subr.mxu0 0.0
    %397 = vmatpush1.msra.mxu0 0.0
    %398 = vmatprep.subr.mxu0 0.0
    %399 = vmatpush1.msra.mxu0 0.0
    %400 = vmatprep.subr.mxu0 0.0
    %401 = vmatpush1.msra.mxu0 0.0
    %402 = vmatprep.subr.mxu0 0.0
    %403 = vmatpush1.msra.mxu0 0.0
    %404 = vmatprep.subr.mxu0 0.0
    %405 = vmatpush1.msra.mxu0 0.0
    %406 = vmatprep.subr.mxu0 0.0
    %407 = vmatpush1.msra.mxu0 0.0
    %408 = vmatprep.subr.mxu0 0.0
    %409 = vmatpush1.msra.mxu0 0.0
    %410 = vmatprep.subr.mxu0 0.0
    %411 = vmatpush1.msra.mxu0 0.0
    %412 = vmatprep.subr.mxu0 0.0
    %413 = vmatpush1.msra.mxu0 0.0
    %414 = vmatprep.subr.mxu0 0.0
    %415 = vmatpush1.msra.mxu0 0.0
    %416 = vmatprep.subr.mxu0 0.0
    %417 = vmatpush1.msra.mxu0 0.0
    %418 = vmatprep.subr.mxu0 0.0
    %419 = vmatpush1.msra.mxu0 0.0
    %420 = vmatprep.subr.mxu0 0.0
    %421 = vmatpush1.msra.mxu0 0.0
    %422 = vmatprep.subr.mxu0 0.0
    %423 = vmatpush1.msra.mxu0 0.0
    %424 = vmatprep.subr.mxu0 0.0
    %425 = vmatpush1.msra.mxu0 0.0
    %426 = vmatprep.subr.mxu0 0.0
    %427 = vmatpush1.msra.mxu0 0.0
    %428 = vmatprep.subr.mxu0 0.0
    %429 = vmatpush1.msra.mxu0 0.0
    %430 = vmatprep.subr.mxu0 0.0
    %431 = vmatpush1.msra.mxu0 0.0
    %432 = vmatprep.subr.mxu0 0.0
    %433 = vmatpush1.msra.mxu0 0.0
    %434 = vmatprep.subr.mxu0 0.0
    %435 = vmatpush1.msra.mxu0 0.0
    %436 = vmatprep.subr.mxu0 0.0
    %437 = vmatpush1.msra.mxu0 0.0
    %438 = vmatprep.subr.mxu0 0.0
    %439 = vmatpush1.msra.mxu0 0.0
    %440 = vmatprep.subr.mxu0 0.0
    %441 = vmatpush1.msra.mxu0 0.0
    %442 = vmatprep.mubr.f32.mxu0 0.0
    %443 = vmatmul.mubr.f32.gmra.mrb[0].mxu0 %v376
    %v444 = vpop.f32.mrb[0].mxu0
    %v445 = vadd.f32 0.0, %v444
    %v446 = vpop.f32.mrb[0].mxu0
    %447 = vdwg.mxu0
    %v448 = vadd.f32 %v372, %v445
    %v450 = vsel %vm152, %v128, 0
    %452 = vmatprep.subr.mxu0 0.0
    %453 = vmatpush1.msra.mxu0 %v139
    %454 = vmatprep.subr.mxu0 0.0
    %455 = vmatpush1.msra.mxu0 %v140
    %456 = vmatprep.subr.mxu0 0.0
    %457 = vmatpush1.msra.mxu0 0.0
    %458 = vmatprep.subr.mxu0 0.0
    %459 = vmatpush1.msra.mxu0 0.0
    %460 = vmatprep.subr.mxu0 0.0
    %461 = vmatpush1.msra.mxu0 0.0
    %462 = vmatprep.subr.mxu0 0.0
    %463 = vmatpush1.msra.mxu0 0.0
    %464 = vmatprep.subr.mxu0 0.0
    %465 = vmatpush1.msra.mxu0 0.0
    %466 = vmatprep.subr.mxu0 0.0
    %467 = vmatpush1.msra.mxu0 0.0
    %468 = vmatprep.subr.mxu0 0.0
    %469 = vmatpush1.msra.mxu0 0.0
    %470 = vmatprep.subr.mxu0 0.0
    %471 = vmatpush1.msra.mxu0 0.0
    %472 = vmatprep.subr.mxu0 0.0
    %473 = vmatpush1.msra.mxu0 0.0
    %474 = vmatprep.subr.mxu0 0.0
    %475 = vmatpush1.msra.mxu0 0.0
    %476 = vmatprep.subr.mxu0 0.0
    %477 = vmatpush1.msra.mxu0 0.0
    %478 = vmatprep.subr.mxu0 0.0
    %479 = vmatpush1.msra.mxu0 0.0
    %480 = vmatprep.subr.mxu0 0.0
    %481 = vmatpush1.msra.mxu0 0.0
    %482 = vmatprep.subr.mxu0 0.0
    %483 = vmatpush1.msra.mxu0 0.0
    %484 = vmatprep.subr.mxu0 0.0
    %485 = vmatpush1.msra.mxu0 0.0
    %486 = vmatprep.subr.mxu0 0.0
    %487 = vmatpush1.msra.mxu0 0.0
    %488 = vmatprep.subr.mxu0 0.0
    %489 = vmatpush1.msra.mxu0 0.0
    %490 = vmatprep.subr.mxu0 0.0
    %491 = vmatpush1.msra.mxu0 0.0
    %492 = vmatprep.subr.mxu0 0.0
    %493 = vmatpush1.msra.mxu0 0.0
    %494 = vmatprep.subr.mxu0 0.0
    %495 = vmatpush1.msra.mxu0 0.0
    %496 = vmatprep.subr.mxu0 0.0
    %497 = vmatpush1.msra.mxu0 0.0
    %498 = vmatprep.subr.mxu0 0.0
    %499 = vmatpush1.msra.mxu0 0.0
    %500 = vmatprep.subr.mxu0 0.0
    %501 = vmatpush1.msra.mxu0 0.0
    %502 = vmatprep.subr.mxu0 0.0
    %503 = vmatpush1.msra.mxu0 0.0
    %504 = vmatprep.subr.mxu0 0.0
    %505 = vmatpush1.msra.mxu0 0.0
    %506 = vmatprep.subr.mxu0 0.0
    %507 = vmatpush1.msra.mxu0 0.0
    %508 = vmatprep.subr.mxu0 0.0
    %509 = vmatpush1.msra.mxu0 0.0
    %510 = vmatprep.subr.mxu0 0.0
    %511 = vmatpush1.msra.mxu0 0.0
    %512 = vmatprep.subr.mxu0 0.0
    %513 = vmatpush1.msra.mxu0 0.0
    %514 = vmatprep.subr.mxu0 0.0
    %515 = vmatpush1.msra.mxu0 0.0
    %516 = vmatprep.mubr.f32.mxu0 0.0
    %517 = vmatmul.mubr.f32.gmra.mrb[0].mxu0 %v450
    %v518 = vpop.f32.mrb[0].mxu0
    %v519 = vadd.f32 %v150, %v518
    %v520 = vpop.f32.mrb[0].mxu0
    %521 = vdwg.mxu0
    %v523 = vsel %vm152, %v134, 0
    %525 = vmatprep.subr.mxu0 0.0
    %526 = vmatpush1.msra.mxu0 %v226
    %527 = vmatprep.subr.mxu0 0.0
    %528 = vmatpush1.msra.mxu0 %v227
    %529 = vmatprep.subr.mxu0 0.0
    %530 = vmatpush1.msra.mxu0 0.0
    %531 = vmatprep.subr.mxu0 0.0
    %532 = vmatpush1.msra.mxu0 0.0
    %533 = vmatprep.subr.mxu0 0.0
    %534 = vmatpush1.msra.mxu0 0.0
    %535 = vmatprep.subr.mxu0 0.0
    %536 = vmatpush1.msra.mxu0 0.0
    %537 = vmatprep.subr.mxu0 0.0
    %538 = vmatpush1.msra.mxu0 0.0
    %539 = vmatprep.subr.mxu0 0.0
    %540 = vmatpush1.msra.mxu0 0.0
    %541 = vmatprep.subr.mxu0 0.0
    %542 = vmatpush1.msra.mxu0 0.0
    %543 = vmatprep.subr.mxu0 0.0
    %544 = vmatpush1.msra.mxu0 0.0
    %545 = vmatprep.subr.mxu0 0.0
    %546 = vmatpush1.msra.mxu0 0.0
    %547 = vmatprep.subr.mxu0 0.0
    %548 = vmatpush1.msra.mxu0 0.0
    %549 = vmatprep.subr.mxu0 0.0
    %550 = vmatpush1.msra.mxu0 0.0
    %551 = vmatprep.subr.mxu0 0.0
    %552 = vmatpush1.msra.mxu0 0.0
    %553 = vmatprep.subr.mxu0 0.0
    %554 = vmatpush1.msra.mxu0 0.0
    %555 = vmatprep.subr.mxu0 0.0
    %556 = vmatpush1.msra.mxu0 0.0
    %557 = vmatprep.subr.mxu0 0.0
    %558 = vmatpush1.msra.mxu0 0.0
    %559 = vmatprep.subr.mxu0 0.0
    %560 = vmatpush1.msra.mxu0 0.0
    %561 = vmatprep.subr.mxu0 0.0
    %562 = vmatpush1.msra.mxu0 0.0
    %563 = vmatprep.subr.mxu0 0.0
    %564 = vmatpush1.msra.mxu0 0.0
    %565 = vmatprep.subr.mxu0 0.0
    %566 = vmatpush1.msra.mxu0 0.0
    %567 = vmatprep.subr.mxu0 0.0
    %568 = vmatpush1.msra.mxu0 0.0
    %569 = vmatprep.subr.mxu0 0.0
    %570 = vmatpush1.msra.mxu0 0.0
    %571 = vmatprep.subr.mxu0 0.0
    %572 = vmatpush1.msra.mxu0 0.0
    %573 = vmatprep.subr.mxu0 0.0
    %574 = vmatpush1.msra.mxu0 0.0
    %575 = vmatprep.subr.mxu0 0.0
    %576 = vmatpush1.msra.mxu0 0.0
    %577 = vmatprep.subr.mxu0 0.0
    %578 = vmatpush1.msra.mxu0 0.0
    %579 = vmatprep.subr.mxu0 0.0
    %580 = vmatpush1.msra.mxu0 0.0
    %581 = vmatprep.subr.mxu0 0.0
    %582 = vmatpush1.msra.mxu0 0.0
    %583 = vmatprep.subr.mxu0 0.0
    %584 = vmatpush1.msra.mxu0 0.0
    %585 = vmatprep.subr.mxu0 0.0
    %586 = vmatpush1.msra.mxu0 0.0
    %587 = vmatprep.subr.mxu0 0.0
    %588 = vmatpush1.msra.mxu0 0.0
    %589 = vmatprep.mubr.f32.mxu0 0.0
    %590 = vmatmul.mubr.f32.gmra.mrb[0].mxu0 %v523
    %v591 = vpop.f32.mrb[0].mxu0
    %v592 = vadd.f32 0.0, %v591
    %v593 = vpop.f32.mrb[0].mxu0
    %594 = vdwg.mxu0
    %v595 = vadd.f32 %v519, %v592
    %v597 = vsel %vm152, %v130, 0
    %599 = vmatprep.subr.mxu0 0.0
    %600 = vmatpush1.msra.mxu0 %v139
    %601 = vmatprep.subr.mxu0 0.0
    %602 = vmatpush1.msra.mxu0 %v140
    %603 = vmatprep.subr.mxu0 0.0
    %604 = vmatpush1.msra.mxu0 0.0
    %605 = vmatprep.subr.mxu0 0.0
    %606 = vmatpush1.msra.mxu0 0.0
    %607 = vmatprep.subr.mxu0 0.0
    %608 = vmatpush1.msra.mxu0 0.0
    %609 = vmatprep.subr.mxu0 0.0
    %610 = vmatpush1.msra.mxu0 0.0
    %611 = vmatprep.subr.mxu0 0.0
    %612 = vmatpush1.msra.mxu0 0.0
    %613 = vmatprep.subr.mxu0 0.0
    %614 = vmatpush1.msra.mxu0 0.0
    %615 = vmatprep.subr.mxu0 0.0
    %616 = vmatpush1.msra.mxu0 0.0
    %617 = vmatprep.subr.mxu0 0.0
    %618 = vmatpush1.msra.mxu0 0.0
    %619 = vmatprep.subr.mxu0 0.0
    %620 = vmatpush1.msra.mxu0 0.0
    %621 = vmatprep.subr.mxu0 0.0
    %622 = vmatpush1.msra.mxu0 0.0
    %623 = vmatprep.subr.mxu0 0.0
    %624 = vmatpush1.msra.mxu0 0.0
    %625 = vmatprep.subr.mxu0 0.0
    %626 = vmatpush1.msra.mxu0 0.0
    %627 = vmatprep.subr.mxu0 0.0
    %628 = vmatpush1.msra.mxu0 0.0
    %629 = vmatprep.subr.mxu0 0.0
    %630 = vmatpush1.msra.mxu0 0.0
    %631 = vmatprep.subr.mxu0 0.0
    %632 = vmatpush1.msra.mxu0 0.0
    %633 = vmatprep.subr.mxu0 0.0
    %634 = vmatpush1.msra.mxu0 0.0
    %635 = vmatprep.subr.mxu0 0.0
    %636 = vmatpush1.msra.mxu0 0.0
    %637 = vmatprep.subr.mxu0 0.0
    %638 = vmatpush1.msra.mxu0 0.0
    %639 = vmatprep.subr.mxu0 0.0
    %640 = vmatpush1.msra.mxu0 0.0
    %641 = vmatprep.subr.mxu0 0.0
    %642 = vmatpush1.msra.mxu0 0.0
    %643 = vmatprep.subr.mxu0 0.0
    %644 = vmatpush1.msra.mxu0 0.0
    %645 = vmatprep.subr.mxu0 0.0
    %646 = vmatpush1.msra.mxu0 0.0
    %647 = vmatprep.subr.mxu0 0.0
    %648 = vmatpush1.msra.mxu0 0.0
    %649 = vmatprep.subr.mxu0 0.0
    %650 = vmatpush1.msra.mxu0 0.0
    %651 = vmatprep.subr.mxu0 0.0
    %652 = vmatpush1.msra.mxu0 0.0
    %653 = vmatprep.subr.mxu0 0.0
    %654 = vmatpush1.msra.mxu0 0.0
    %655 = vmatprep.subr.mxu0 0.0
    %656 = vmatpush1.msra.mxu0 0.0
    %657 = vmatprep.subr.mxu0 0.0
    %658 = vmatpush1.msra.mxu0 0.0
    %659 = vmatprep.subr.mxu0 0.0
    %660 = vmatpush1.msra.mxu0 0.0
    %661 = vmatprep.subr.mxu0 0.0
    %662 = vmatpush1.msra.mxu0 0.0
    %663 = vmatprep.mubr.f32.mxu0 0.0
    %664 = vmatmul.mubr.f32.gmra.mrb[0].mxu0 %v597
    %v665 = vpop.f32.mrb[0].mxu0
    %v666 = vadd.f32 %v150, %v665
    %v667 = vpop.f32.mrb[0].mxu0
    %668 = vdwg.mxu0
    %v670 = vsel %vm152, %v132, 0
    %672 = vmatprep.subr.mxu0 0.0
    %673 = vmatpush1.msra.mxu0 %v226
    %674 = vmatprep.subr.mxu0 0.0
    %675 = vmatpush1.msra.mxu0 %v227
    %676 = vmatprep.subr.mxu0 0.0
    %677 = vmatpush1.msra.mxu0 0.0
    %678 = vmatprep.subr.mxu0 0.0
    %679 = vmatpush1.msra.mxu0 0.0
    %680 = vmatprep.subr.mxu0 0.0
    %681 = vmatpush1.msra.mxu0 0.0
    %682 = vmatprep.subr.mxu0 0.0
    %683 = vmatpush1.msra.mxu0 0.0
    %684 = vmatprep.subr.mxu0 0.0
    %685 = vmatpush1.msra.mxu0 0.0
    %686 = vmatprep.subr.mxu0 0.0
    %687 = vmatpush1.msra.mxu0 0.0
    %688 = vmatprep.subr.mxu0 0.0
    %689 = vmatpush1.msra.mxu0 0.0
    %690 = vmatprep.subr.mxu0 0.0
    %691 = vmatpush1.msra.mxu0 0.0
    %692 = vmatprep.subr.mxu0 0.0
    %693 = vmatpush1.msra.mxu0 0.0
    %694 = vmatprep.subr.mxu0 0.0
    %695 = vmatpush1.msra.mxu0 0.0
    %696 = vmatprep.subr.mxu0 0.0
    %697 = vmatpush1.msra.mxu0 0.0
    %698 = vmatprep.subr.mxu0 0.0
    %699 = vmatpush1.msra.mxu0 0.0
    %700 = vmatprep.subr.mxu0 0.0
    %701 = vmatpush1.msra.mxu0 0.0
    %702 = vmatprep.subr.mxu0 0.0
    %703 = vmatpush1.msra.mxu0 0.0
    %704 = vmatprep.subr.mxu0 0.0
    %705 = vmatpush1.msra.mxu0 0.0
    %706 = vmatprep.subr.mxu0 0.0
    %707 = vmatpush1.msra.mxu0 0.0
    %708 = vmatprep.subr.mxu0 0.0
    %709 = vmatpush1.msra.mxu0 0.0
    %710 = vmatprep.subr.mxu0 0.0
    %711 = vmatpush1.msra.mxu0 0.0
    %712 = vmatprep.subr.mxu0 0.0
    %713 = vmatpush1.msra.mxu0 0.0
    %714 = vmatprep.subr.mxu0 0.0
    %715 = vmatpush1.msra.mxu0 0.0
    %716 = vmatprep.subr.mxu0 0.0
    %717 = vmatpush1.msra.mxu0 0.0
    %718 = vmatprep.subr.mxu0 0.0
    %719 = vmatpush1.msra.mxu0 0.0
    %720 = vmatprep.subr.mxu0 0.0
    %721 = vmatpush1.msra.mxu0 0.0
    %722 = vmatprep.subr.mxu0 0.0
    %723 = vmatpush1.msra.mxu0 0.0
    %724 = vmatprep.subr.mxu0 0.0
    %725 = vmatpush1.msra.mxu0 0.0
    %726 = vmatprep.subr.mxu0 0.0
    %727 = vmatpush1.msra.mxu0 0.0
    %728 = vmatprep.subr.mxu0 0.0
    %729 = vmatpush1.msra.mxu0 0.0
    %730 = vmatprep.subr.mxu0 0.0
    %731 = vmatpush1.msra.mxu0 0.0
    %732 = vmatprep.subr.mxu0 0.0
    %733 = vmatpush1.msra.mxu0 0.0
    %734 = vmatprep.subr.mxu0 0.0
    %735 = vmatpush1.msra.mxu0 0.0
    %736 = vmatprep.mubr.f32.mxu0 0.0
    %737 = vmatmul.mubr.f32.gmra.mrb[0].mxu0 %v670
    %v738 = vpop.f32.mrb[0].mxu0
    %v739 = vadd.f32 0.0, %v738
    %v740 = vpop.f32.mrb[0].mxu0
    %741 = vdwg.mxu0
    %v742 = vadd.f32 %v666, %v739
    %743 = vmatprep.subr.mxu0 0.0
    %744 = vmatpush1.msra.mxu0 %v139
    %745 = vmatprep.subr.mxu0 0.0
    %746 = vmatpush1.msra.mxu0 %v140
    %747 = vmatprep.subr.mxu0 0.0
    %748 = vmatpush1.msra.mxu0 0.0
    %749 = vmatprep.subr.mxu0 0.0
    %750 = vmatpush1.msra.mxu0 0.0
    %751 = vmatprep.subr.mxu0 0.0
    %752 = vmatpush1.msra.mxu0 0.0
    %753 = vmatprep.subr.mxu0 0.0
    %754 = vmatpush1.msra.mxu0 0.0
    %755 = vmatprep.subr.mxu0 0.0
    %756 = vmatpush1.msra.mxu0 0.0
    %757 = vmatprep.subr.mxu0 0.0
    %758 = vmatpush1.msra.mxu0 0.0
    %759 = vmatprep.subr.mxu0 0.0
    %760 = vmatpush1.msra.mxu0 0.0
    %761 = vmatprep.subr.mxu0 0.0
    %762 = vmatpush1.msra.mxu0 0.0
    %763 = vmatprep.subr.mxu0 0.0
    %764 = vmatpush1.msra.mxu0 0.0
    %765 = vmatprep.subr.mxu0 0.0
    %766 = vmatpush1.msra.mxu0 0.0
    %767 = vmatprep.subr.mxu0 0.0
    %768 = vmatpush1.msra.mxu0 0.0
    %769 = vmatprep.subr.mxu0 0.0
    %770 = vmatpush1.msra.mxu0 0.0
    %771 = vmatprep.subr.mxu0 0.0
    %772 = vmatpush1.msra.mxu0 0.0
    %773 = vmatprep.subr.mxu0 0.0
    %774 = vmatpush1.msra.mxu0 0.0
    %775 = vmatprep.subr.mxu0 0.0
    %776 = vmatpush1.msra.mxu0 0.0
    %777 = vmatprep.subr.mxu0 0.0
    %778 = vmatpush1.msra.mxu0 0.0
    %779 = vmatprep.subr.mxu0 0.0
    %780 = vmatpush1.msra.mxu0 0.0
    %781 = vmatprep.subr.mxu0 0.0
    %782 = vmatpush1.msra.mxu0 0.0
    %783 = vmatprep.subr.mxu0 0.0
    %784 = vmatpush1.msra.mxu0 0.0
    %785 = vmatprep.subr.mxu0 0.0
    %786 = vmatpush1.msra.mxu0 0.0
    %787 = vmatprep.subr.mxu0 0.0
    %788 = vmatpush1.msra.mxu0 0.0
    %789 = vmatprep.subr.mxu0 0.0
    %790 = vmatpush1.msra.mxu0 0.0
    %791 = vmatprep.subr.mxu0 0.0
    %792 = vmatpush1.msra.mxu0 0.0
    %793 = vmatprep.subr.mxu0 0.0
    %794 = vmatpush1.msra.mxu0 0.0
    %795 = vmatprep.subr.mxu0 0.0
    %796 = vmatpush1.msra.mxu0 0.0
    %797 = vmatprep.subr.mxu0 0.0
    %798 = vmatpush1.msra.mxu0 0.0
    %799 = vmatprep.subr.mxu0 0.0
    %800 = vmatpush1.msra.mxu0 0.0
    %801 = vmatprep.subr.mxu0 0.0
    %802 = vmatpush1.msra.mxu0 0.0
    %803 = vmatprep.subr.mxu0 0.0
    %804 = vmatpush1.msra.mxu0 0.0
    %805 = vmatprep.subr.mxu0 0.0
    %806 = vmatpush1.msra.mxu0 0.0
    %807 = vmatprep.mubr.f32.mxu0 0.0
    %808 = vmatmul.mubr.f32.gmra.mrb[0].mxu0 %v670
    %v809 = vpop.f32.mrb[0].mxu0
    %v810 = vadd.f32 %v150, %v809
    %v811 = vpop.f32.mrb[0].mxu0
    %812 = vdwg.mxu0
    %813 = vmatprep.subr.mxu0 0.0
    %814 = vmatpush1.msra.mxu0 %v226
    %815 = vmatprep.subr.mxu0 0.0
    %816 = vmatpush1.msra.mxu0 %v227
    %817 = vmatprep.subr.mxu0 0.0
    %818 = vmatpush1.msra.mxu0 0.0
    %819 = vmatprep.subr.mxu0 0.0
    %820 = vmatpush1.msra.mxu0 0.0
    %821 = vmatprep.subr.mxu0 0.0
    %822 = vmatpush1.msra.mxu0 0.0
    %823 = vmatprep.subr.mxu0 0.0
    %824 = vmatpush1.msra.mxu0 0.0
    %825 = vmatprep.subr.mxu0 0.0
    %826 = vmatpush1.msra.mxu0 0.0
    %827 = vmatprep.subr.mxu0 0.0
    %828 = vmatpush1.msra.mxu0 0.0
    %829 = vmatprep.subr.mxu0 0.0
    %830 = vmatpush1.msra.mxu0 0.0
    %831 = vmatprep.subr.mxu0 0.0
    %832 = vmatpush1.msra.mxu0 0.0
    %833 = vmatprep.subr.mxu0 0.0
    %834 = vmatpush1.msra.mxu0 0.0
    %835 = vmatprep.subr.mxu0 0.0
    %836 = vmatpush1.msra.mxu0 0.0
    %837 = vmatprep.subr.mxu0 0.0
    %838 = vmatpush1.msra.mxu0 0.0
    %839 = vmatprep.subr.mxu0 0.0
    %840 = vmatpush1.msra.mxu0 0.0
    %841 = vmatprep.subr.mxu0 0.0
    %842 = vmatpush1.msra.mxu0 0.0
    %843 = vmatprep.subr.mxu0 0.0
    %844 = vmatpush1.msra.mxu0 0.0
    %845 = vmatprep.subr.mxu0 0.0
    %846 = vmatpush1.msra.mxu0 0.0
    %847 = vmatprep.subr.mxu0 0.0
    %848 = vmatpush1.msra.mxu0 0.0
    %849 = vmatprep.subr.mxu0 0.0
    %850 = vmatpush1.msra.mxu0 0.0
    %851 = vmatprep.subr.mxu0 0.0
    %852 = vmatpush1.msra.mxu0 0.0
    %853 = vmatprep.subr.mxu0 0.0
    %854 = vmatpush1.msra.mxu0 0.0
    %855 = vmatprep.subr.mxu0 0.0
    %856 = vmatpush1.msra.mxu0 0.0
    %857 = vmatprep.subr.mxu0 0.0
    %858 = vmatpush1.msra.mxu0 0.0
    %859 = vmatprep.subr.mxu0 0.0
    %860 = vmatpush1.msra.mxu0 0.0
    %861 = vmatprep.subr.mxu0 0.0
    %862 = vmatpush1.msra.mxu0 0.0
    %863 = vmatprep.subr.mxu0 0.0
    %864 = vmatpush1.msra.mxu0 0.0
    %865 = vmatprep.subr.mxu0 0.0
    %866 = vmatpush1.msra.mxu0 0.0
    %867 = vmatprep.subr.mxu0 0.0
    %868 = vmatpush1.msra.mxu0 0.0
    %869 = vmatprep.subr.mxu0 0.0
    %870 = vmatpush1.msra.mxu0 0.0
    %871 = vmatprep.subr.mxu0 0.0
    %872 = vmatpush1.msra.mxu0 0.0
    %873 = vmatprep.subr.mxu0 0.0
    %874 = vmatpush1.msra.mxu0 0.0
    %875 = vmatprep.subr.mxu0 0.0
    %876 = vmatpush1.msra.mxu0 0.0
    %877 = vmatprep.mubr.f32.mxu0 0.0
    %878 = vmatmul.mubr.f32.gmra.mrb[0].mxu0 %v597
    %v879 = vpop.f32.mrb[0].mxu0
    %v880 = vadd.f32 0.0, %v879
    %v881 = vpop.f32.mrb[0].mxu0
    %882 = vdwg.mxu0
    %v883 = vadd.f32 %v810, %v880
    %884 = vmatprep.subr.mxu0 0.0
    %885 = vmatpush1.msra.mxu0 %v139
    %886 = vmatprep.subr.mxu0 0.0
    %887 = vmatpush1.msra.mxu0 %v140
    %888 = vmatprep.subr.mxu0 0.0
    %889 = vmatpush1.msra.mxu0 0.0
    %890 = vmatprep.subr.mxu0 0.0
    %891 = vmatpush1.msra.mxu0 0.0
    %892 = vmatprep.subr.mxu0 0.0
    %893 = vmatpush1.msra.mxu0 0.0
    %894 = vmatprep.subr.mxu0 0.0
    %895 = vmatpush1.msra.mxu0 0.0
    %896 = vmatprep.subr.mxu0 0.0
    %897 = vmatpush1.msra.mxu0 0.0
    %898 = vmatprep.subr.mxu0 0.0
    %899 = vmatpush1.msra.mxu0 0.0
    %900 = vmatprep.subr.mxu0 0.0
    %901 = vmatpush1.msra.mxu0 0.0
    %902 = vmatprep.subr.mxu0 0.0
    %903 = vmatpush1.msra.mxu0 0.0
    %904 = vmatprep.subr.mxu0 0.0
    %905 = vmatpush1.msra.mxu0 0.0
    %906 = vmatprep.subr.mxu0 0.0
    %907 = vmatpush1.msra.mxu0 0.0
    %908 = vmatprep.subr.mxu0 0.0
    %909 = vmatpush1.msra.mxu0 0.0
    %910 = vmatprep.subr.mxu0 0.0
    %911 = vmatpush1.msra.mxu0 0.0
    %912 = vmatprep.subr.mxu0 0.0
    %913 = vmatpush1.msra.mxu0 0.0
    %914 = vmatprep.subr.mxu0 0.0
    %915 = vmatpush1.msra.mxu0 0.0
    %916 = vmatprep.subr.mxu0 0.0
    %917 = vmatpush1.msra.mxu0 0.0
    %918 = vmatprep.subr.mxu0 0.0
    %919 = vmatpush1.msra.mxu0 0.0
    %920 = vmatprep.subr.mxu0 0.0
    %921 = vmatpush1.msra.mxu0 0.0
    %922 = vmatprep.subr.mxu0 0.0
    %923 = vmatpush1.msra.mxu0 0.0
    %924 = vmatprep.subr.mxu0 0.0
    %925 = vmatpush1.msra.mxu0 0.0
    %926 = vmatprep.subr.mxu0 0.0
    %927 = vmatpush1.msra.mxu0 0.0
    %928 = vmatprep.subr.mxu0 0.0
    %929 = vmatpush1.msra.mxu0 0.0
    %930 = vmatprep.subr.mxu0 0.0
    %931 = vmatpush1.msra.mxu0 0.0
    %932 = vmatprep.subr.mxu0 0.0
    %933 = vmatpush1.msra.mxu0 0.0
    %934 = vmatprep.subr.mxu0 0.0
    %935 = vmatpush1.msra.mxu0 0.0
    %936 = vmatprep.subr.mxu0 0.0
    %937 = vmatpush1.msra.mxu0 0.0
    %938 = vmatprep.subr.mxu0 0.0
    %939 = vmatpush1.msra.mxu0 0.0
    %940 = vmatprep.subr.mxu0 0.0
    %941 = vmatpush1.msra.mxu0 0.0
    %942 = vmatprep.subr.mxu0 0.0
    %943 = vmatpush1.msra.mxu0 0.0
    %944 = vmatprep.subr.mxu0 0.0
    %945 = vmatpush1.msra.mxu0 0.0
    %946 = vmatprep.subr.mxu0 0.0
    %947 = vmatpush1.msra.mxu0 0.0
    %948 = vmatprep.mubr.f32.mxu0 0.0
    %949 = vmatmul.mubr.f32.gmra.mrb[0].mxu0 %v523
    %v950 = vpop.f32.mrb[0].mxu0
    %v951 = vadd.f32 %v150, %v950
    %v952 = vpop.f32.mrb[0].mxu0
    %953 = vdwg.mxu0
    %954 = vmatprep.subr.mxu0 0.0
    %955 = vmatpush1.msra.mxu0 %v226
    %956 = vmatprep.subr.mxu0 0.0
    %957 = vmatpush1.msra.mxu0 %v227
    %958 = vmatprep.subr.mxu0 0.0
    %959 = vmatpush1.msra.mxu0 0.0
    %960 = vmatprep.subr.mxu0 0.0
    %961 = vmatpush1.msra.mxu0 0.0
    %962 = vmatprep.subr.mxu0 0.0
    %963 = vmatpush1.msra.mxu0 0.0
    %964 = vmatprep.subr.mxu0 0.0
    %965 = vmatpush1.msra.mxu0 0.0
    %966 = vmatprep.subr.mxu0 0.0
    %967 = vmatpush1.msra.mxu0 0.0
    %968 = vmatprep.subr.mxu0 0.0
    %969 = vmatpush1.msra.mxu0 0.0
    %970 = vmatprep.subr.mxu0 0.0
    %971 = vmatpush1.msra.mxu0 0.0
    %972 = vmatprep.subr.mxu0 0.0
    %973 = vmatpush1.msra.mxu0 0.0
    %974 = vmatprep.subr.mxu0 0.0
    %975 = vmatpush1.msra.mxu0 0.0
    %976 = vmatprep.subr.mxu0 0.0
    %977 = vmatpush1.msra.mxu0 0.0
    %978 = vmatprep.subr.mxu0 0.0
    %979 = vmatpush1.msra.mxu0 0.0
    %980 = vmatprep.subr.mxu0 0.0
    %981 = vmatpush1.msra.mxu0 0.0
    %982 = vmatprep.subr.mxu0 0.0
    %983 = vmatpush1.msra.mxu0 0.0
    %984 = vmatprep.subr.mxu0 0.0
    %985 = vmatpush1.msra.mxu0 0.0
    %986 = vmatprep.subr.mxu0 0.0
    %987 = vmatpush1.msra.mxu0 0.0
    %988 = vmatprep.subr.mxu0 0.0
    %989 = vmatpush1.msra.mxu0 0.0
    %990 = vmatprep.subr.mxu0 0.0
    %991 = vmatpush1.msra.mxu0 0.0
    %992 = vmatprep.subr.mxu0 0.0
    %993 = vmatpush1.msra.mxu0 0.0
    %994 = vmatprep.subr.mxu0 0.0
    %995 = vmatpush1.msra.mxu0 0.0
    %996 = vmatprep.subr.mxu0 0.0
    %997 = vmatpush1.msra.mxu0 0.0
    %998 = vmatprep.subr.mxu0 0.0
    %999 = vmatpush1.msra.mxu0 0.0
    %1000 = vmatprep.subr.mxu0 0.0
    %1001 = vmatpush1.msra.mxu0 0.0
    %1002 = vmatprep.subr.mxu0 0.0
    %1003 = vmatpush1.msra.mxu0 0.0
    %1004 = vmatprep.subr.mxu0 0.0
    %1005 = vmatpush1.msra.mxu0 0.0
    %1006 = vmatprep.subr.mxu0 0.0
    %1007 = vmatpush1.msra.mxu0 0.0
    %1008 = vmatprep.subr.mxu0 0.0
    %1009 = vmatpush1.msra.mxu0 0.0
    %1010 = vmatprep.subr.mxu0 0.0
    %1011 = vmatpush1.msra.mxu0 0.0
    %1012 = vmatprep.subr.mxu0 0.0
    %1013 = vmatpush1.msra.mxu0 0.0
    %1014 = vmatprep.subr.mxu0 0.0
    %1015 = vmatpush1.msra.mxu0 0.0
    %1016 = vmatprep.subr.mxu0 0.0
    %1017 = vmatpush1.msra.mxu0 0.0
    %1018 = vmatprep.mubr.f32.mxu0 0.0
    %1019 = vmatmul.mubr.f32.gmra.mrb[0].mxu0 %v450
    %v1020 = vpop.f32.mrb[0].mxu0
    %v1021 = vadd.f32 0.0, %v1020
    %v1022 = vpop.f32.mrb[0].mxu0
    %1023 = vdwg.mxu0
    %v1024 = vadd.f32 %v951, %v1021
    %1025 = vmatprep.subr.mxu0 0.0
    %1026 = vmatpush1.msra.mxu0 %v139
    %1027 = vmatprep.subr.mxu0 0.0
    %1028 = vmatpush1.msra.mxu0 %v140
    %1029 = vmatprep.subr.mxu0 0.0
    %1030 = vmatpush1.msra.mxu0 0.0
    %1031 = vmatprep.subr.mxu0 0.0
    %1032 = vmatpush1.msra.mxu0 0.0
    %1033 = vmatprep.subr.mxu0 0.0
    %1034 = vmatpush1.msra.mxu0 0.0
    %1035 = vmatprep.subr.mxu0 0.0
    %1036 = vmatpush1.msra.mxu0 0.0
    %1037 = vmatprep.subr.mxu0 0.0
    %1038 = vmatpush1.msra.mxu0 0.0
    %1039 = vmatprep.subr.mxu0 0.0
    %1040 = vmatpush1.msra.mxu0 0.0
    %1041 = vmatprep.subr.mxu0 0.0
    %1042 = vmatpush1.msra.mxu0 0.0
    %1043 = vmatprep.subr.mxu0 0.0
    %1044 = vmatpush1.msra.mxu0 0.0
    %1045 = vmatprep.subr.mxu0 0.0
    %1046 = vmatpush1.msra.mxu0 0.0
    %1047 = vmatprep.subr.mxu0 0.0
    %1048 = vmatpush1.msra.mxu0 0.0
    %1049 = vmatprep.subr.mxu0 0.0
    %1050 = vmatpush1.msra.mxu0 0.0
    %1051 = vmatprep.subr.mxu0 0.0
    %1052 = vmatpush1.msra.mxu0 0.0
    %1053 = vmatprep.subr.mxu0 0.0
    %1054 = vmatpush1.msra.mxu0 0.0
    %1055 = vmatprep.subr.mxu0 0.0
    %1056 = vmatpush1.msra.mxu0 0.0
    %1057 = vmatprep.subr.mxu0 0.0
    %1058 = vmatpush1.msra.mxu0 0.0
    %1059 = vmatprep.subr.mxu0 0.0
    %1060 = vmatpush1.msra.mxu0 0.0
    %1061 = vmatprep.subr.mxu0 0.0
    %1062 = vmatpush1.msra.mxu0 0.0
    %1063 = vmatprep.subr.mxu0 0.0
    %1064 = vmatpush1.msra.mxu0 0.0
    %1065 = vmatprep.subr.mxu0 0.0
    %1066 = vmatpush1.msra.mxu0 0.0
    %1067 = vmatprep.subr.mxu0 0.0
    %1068 = vmatpush1.msra.mxu0 0.0
    %1069 = vmatprep.subr.mxu0 0.0
    %1070 = vmatpush1.msra.mxu0 0.0
    %1071 = vmatprep.subr.mxu0 0.0
    %1072 = vmatpush1.msra.mxu0 0.0
    %1073 = vmatprep.subr.mxu0 0.0
    %1074 = vmatpush1.msra.mxu0 0.0
    %1075 = vmatprep.subr.mxu0 0.0
    %1076 = vmatpush1.msra.mxu0 0.0
    %1077 = vmatprep.subr.mxu0 0.0
    %1078 = vmatpush1.msra.mxu0 0.0
    %1079 = vmatprep.subr.mxu0 0.0
    %1080 = vmatpush1.msra.mxu0 0.0
    %1081 = vmatprep.subr.mxu0 0.0
    %1082 = vmatpush1.msra.mxu0 0.0
    %1083 = vmatprep.subr.mxu0 0.0
    %1084 = vmatpush1.msra.mxu0 0.0
    %1085 = vmatprep.subr.mxu0 0.0
    %1086 = vmatpush1.msra.mxu0 0.0
    %1087 = vmatprep.subr.mxu0 0.0
    %1088 = vmatpush1.msra.mxu0 0.0
    %1089 = vmatprep.mubr.f32.mxu0 0.0
    %1090 = vmatmul.mubr.f32.gmra.mrb[0].mxu0 %v376
    %v1091 = vpop.f32.mrb[0].mxu0
    %v1092 = vadd.f32 %v150, %v1091
    %v1093 = vpop.f32.mrb[0].mxu0
    %1094 = vdwg.mxu0
    %1095 = vmatprep.subr.mxu0 0.0
    %1096 = vmatpush1.msra.mxu0 %v226
    %1097 = vmatprep.subr.mxu0 0.0
    %1098 = vmatpush1.msra.mxu0 %v227
    %1099 = vmatprep.subr.mxu0 0.0
    %1100 = vmatpush1.msra.mxu0 0.0
    %1101 = vmatprep.subr.mxu0 0.0
    %1102 = vmatpush1.msra.mxu0 0.0
    %1103 = vmatprep.subr.mxu0 0.0
    %1104 = vmatpush1.msra.mxu0 0.0
    %1105 = vmatprep.subr.mxu0 0.0
    %1106 = vmatpush1.msra.mxu0 0.0
    %1107 = vmatprep.subr.mxu0 0.0
    %1108 = vmatpush1.msra.mxu0 0.0
    %1109 = vmatprep.subr.mxu0 0.0
    %1110 = vmatpush1.msra.mxu0 0.0
    %1111 = vmatprep.subr.mxu0 0.0
    %1112 = vmatpush1.msra.mxu0 0.0
    %1113 = vmatprep.subr.mxu0 0.0
    %1114 = vmatpush1.msra.mxu0 0.0
    %1115 = vmatprep.subr.mxu0 0.0
    %1116 = vmatpush1.msra.mxu0 0.0
    %1117 = vmatprep.subr.mxu0 0.0
    %1118 = vmatpush1.msra.mxu0 0.0
    %1119 = vmatprep.subr.mxu0 0.0
    %1120 = vmatpush1.msra.mxu0 0.0
    %1121 = vmatprep.subr.mxu0 0.0
    %1122 = vmatpush1.msra.mxu0 0.0
    %1123 = vmatprep.subr.mxu0 0.0
    %1124 = vmatpush1.msra.mxu0 0.0
    %1125 = vmatprep.subr.mxu0 0.0
    %1126 = vmatpush1.msra.mxu0 0.0
    %1127 = vmatprep.subr.mxu0 0.0
    %1128 = vmatpush1.msra.mxu0 0.0
    %1129 = vmatprep.subr.mxu0 0.0
    %1130 = vmatpush1.msra.mxu0 0.0
    %1131 = vmatprep.subr.mxu0 0.0
    %1132 = vmatpush1.msra.mxu0 0.0
    %1133 = vmatprep.subr.mxu0 0.0
    %1134 = vmatpush1.msra.mxu0 0.0
    %1135 = vmatprep.subr.mxu0 0.0
    %1136 = vmatpush1.msra.mxu0 0.0
    %1137 = vmatprep.subr.mxu0 0.0
    %1138 = vmatpush1.msra.mxu0 0.0
    %1139 = vmatprep.subr.mxu0 0.0
    %1140 = vmatpush1.msra.mxu0 0.0
    %1141 = vmatprep.subr.mxu0 0.0
    %1142 = vmatpush1.msra.mxu0 0.0
    %1143 = vmatprep.subr.mxu0 0.0
    %1144 = vmatpush1.msra.mxu0 0.0
    %1145 = vmatprep.subr.mxu0 0.0
    %1146 = vmatpush1.msra.mxu0 0.0
    %1147 = vmatprep.subr.mxu0 0.0
    %1148 = vmatpush1.msra.mxu0 0.0
    %1149 = vmatprep.subr.mxu0 0.0
    %1150 = vmatpush1.msra.mxu0 0.0
    %1151 = vmatprep.subr.mxu0 0.0
    %1152 = vmatpush1.msra.mxu0 0.0
    %1153 = vmatprep.subr.mxu0 0.0
    %1154 = vmatpush1.msra.mxu0 0.0
    %1155 = vmatprep.subr.mxu0 0.0
    %1156 = vmatpush1.msra.mxu0 0.0
    %1157 = vmatprep.subr.mxu0 0.0
    %1158 = vmatpush1.msra.mxu0 0.0
    %1159 = vmatprep.mubr.f32.mxu0 0.0
    %1160 = vmatmul.mubr.f32.gmra.mrb[0].mxu0 %v303
    %v1161 = vpop.f32.mrb[0].mxu0
    %v1162 = vadd.f32 0.0, %v1161
    %v1163 = vpop.f32.mrb[0].mxu0
    %1164 = vdwg.mxu0
    %v1165 = vadd.f32 %v1092, %v1162
    %1166 = vmatprep.subr.mxu0 0.0
    %1167 = vmatpush1.msra.mxu0 %v139
    %1168 = vmatprep.subr.mxu0 0.0
    %1169 = vmatpush1.msra.mxu0 %v140
    %1170 = vmatprep.subr.mxu0 0.0
    %1171 = vmatpush1.msra.mxu0 0.0
    %1172 = vmatprep.subr.mxu0 0.0
    %1173 = vmatpush1.msra.mxu0 0.0
    %1174 = vmatprep.subr.mxu0 0.0
    %1175 = vmatpush1.msra.mxu0 0.0
    %1176 = vmatprep.subr.mxu0 0.0
    %1177 = vmatpush1.msra.mxu0 0.0
    %1178 = vmatprep.subr.mxu0 0.0
    %1179 = vmatpush1.msra.mxu0 0.0
    %1180 = vmatprep.subr.mxu0 0.0
    %1181 = vmatpush1.msra.mxu0 0.0
    %1182 = vmatprep.subr.mxu0 0.0
    %1183 = vmatpush1.msra.mxu0 0.0
    %1184 = vmatprep.subr.mxu0 0.0
    %1185 = vmatpush1.msra.mxu0 0.0
    %1186 = vmatprep.subr.mxu0 0.0
    %1187 = vmatpush1.msra.mxu0 0.0
    %1188 = vmatprep.subr.mxu0 0.0
    %1189 = vmatpush1.msra.mxu0 0.0
    %1190 = vmatprep.subr.mxu0 0.0
    %1191 = vmatpush1.msra.mxu0 0.0
    %1192 = vmatprep.subr.mxu0 0.0
    %1193 = vmatpush1.msra.mxu0 0.0
    %1194 = vmatprep.subr.mxu0 0.0
    %1195 = vmatpush1.msra.mxu0 0.0
    %1196 = vmatprep.subr.mxu0 0.0
    %1197 = vmatpush1.msra.mxu0 0.0
    %1198 = vmatprep.subr.mxu0 0.0
    %1199 = vmatpush1.msra.mxu0 0.0
    %1200 = vmatprep.subr.mxu0 0.0
    %1201 = vmatpush1.msra.mxu0 0.0
    %1202 = vmatprep.subr.mxu0 0.0
    %1203 = vmatpush1.msra.mxu0 0.0
    %1204 = vmatprep.subr.mxu0 0.0
    %1205 = vmatpush1.msra.mxu0 0.0
    %1206 = vmatprep.subr.mxu0 0.0
    %1207 = vmatpush1.msra.mxu0 0.0
    %1208 = vmatprep.subr.mxu0 0.0
    %1209 = vmatpush1.msra.mxu0 0.0
    %1210 = vmatprep.subr.mxu0 0.0
    %1211 = vmatpush1.msra.mxu0 0.0
    %1212 = vmatprep.subr.mxu0 0.0
    %1213 = vmatpush1.msra.mxu0 0.0
    %1214 = vmatprep.subr.mxu0 0.0
    %1215 = vmatpush1.msra.mxu0 0.0
    %1216 = vmatprep.subr.mxu0 0.0
    %1217 = vmatpush1.msra.mxu0 0.0
    %1218 = vmatprep.subr.mxu0 0.0
    %1219 = vmatpush1.msra.mxu0 0.0
    %1220 = vmatprep.subr.mxu0 0.0
    %1221 = vmatpush1.msra.mxu0 0.0
    %1222 = vmatprep.subr.mxu0 0.0
    %1223 = vmatpush1.msra.mxu0 0.0
    %1224 = vmatprep.subr.mxu0 0.0
    %1225 = vmatpush1.msra.mxu0 0.0
    %1226 = vmatprep.subr.mxu0 0.0
    %1227 = vmatpush1.msra.mxu0 0.0
    %1228 = vmatprep.subr.mxu0 0.0
    %1229 = vmatpush1.msra.mxu0 0.0
    %1230 = vmatprep.mubr.f32.mxu0 0.0
    %1231 = vmatmul.mubr.f32.gmra.mrb[0].mxu0 %v229
    %v1232 = vpop.f32.mrb[0].mxu0
    %v1233 = vadd.f32 %v150, %v1232
    %v1234 = vpop.f32.mrb[0].mxu0
    %1235 = vdwg.mxu0
    %1236 = vmatprep.subr.mxu0 0.0
    %1237 = vmatpush1.msra.mxu0 %v226
    %1238 = vmatprep.subr.mxu0 0.0
    %1239 = vmatpush1.msra.mxu0 %v227
    %1240 = vmatprep.subr.mxu0 0.0
    %1241 = vmatpush1.msra.mxu0 0.0
    %1242 = vmatprep.subr.mxu0 0.0
    %1243 = vmatpush1.msra.mxu0 0.0
    %1244 = vmatprep.subr.mxu0 0.0
    %1245 = vmatpush1.msra.mxu0 0.0
    %1246 = vmatprep.subr.mxu0 0.0
    %1247 = vmatpush1.msra.mxu0 0.0
    %1248 = vmatprep.subr.mxu0 0.0
    %1249 = vmatpush1.msra.mxu0 0.0
    %1250 = vmatprep.subr.mxu0 0.0
    %1251 = vmatpush1.msra.mxu0 0.0
    %1252 = vmatprep.subr.mxu0 0.0
    %1253 = vmatpush1.msra.mxu0 0.0
    %1254 = vmatprep.subr.mxu0 0.0
    %1255 = vmatpush1.msra.mxu0 0.0
    %1256 = vmatprep.subr.mxu0 0.0
    %1257 = vmatpush1.msra.mxu0 0.0
    %1258 = vmatprep.subr.mxu0 0.0
    %1259 = vmatpush1.msra.mxu0 0.0
    %1260 = vmatprep.subr.mxu0 0.0
    %1261 = vmatpush1.msra.mxu0 0.0
    %1262 = vmatprep.subr.mxu0 0.0
    %1263 = vmatpush1.msra.mxu0 0.0
    %1264 = vmatprep.subr.mxu0 0.0
    %1265 = vmatpush1.msra.mxu0 0.0
    %1266 = vmatprep.subr.mxu0 0.0
    %1267 = vmatpush1.msra.mxu0 0.0
    %1268 = vmatprep.subr.mxu0 0.0
    %1269 = vmatpush1.msra.mxu0 0.0
    %1270 = vmatprep.subr.mxu0 0.0
    %1271 = vmatpush1.msra.mxu0 0.0
    %1272 = vmatprep.subr.mxu0 0.0
    %1273 = vmatpush1.msra.mxu0 0.0
    %1274 = vmatprep.subr.mxu0 0.0
    %1275 = vmatpush1.msra.mxu0 0.0
    %1276 = vmatprep.subr.mxu0 0.0
    %1277 = vmatpush1.msra.mxu0 0.0
    %1278 = vmatprep.subr.mxu0 0.0
    %1279 = vmatpush1.msra.mxu0 0.0
    %1280 = vmatprep.subr.mxu0 0.0
    %1281 = vmatpush1.msra.mxu0 0.0
    %1282 = vmatprep.subr.mxu0 0.0
    %1283 = vmatpush1.msra.mxu0 0.0
    %1284 = vmatprep.subr.mxu0 0.0
    %1285 = vmatpush1.msra.mxu0 0.0
    %1286 = vmatprep.subr.mxu0 0.0
    %1287 = vmatpush1.msra.mxu0 0.0
    %1288 = vmatprep.subr.mxu0 0.0
    %1289 = vmatpush1.msra.mxu0 0.0
    %1290 = vmatprep.subr.mxu0 0.0
    %1291 = vmatpush1.msra.mxu0 0.0
    %1292 = vmatprep.subr.mxu0 0.0
    %1293 = vmatpush1.msra.mxu0 0.0
    %1294 = vmatprep.subr.mxu0 0.0
    %1295 = vmatpush1.msra.mxu0 0.0
    %1296 = vmatprep.subr.mxu0 0.0
    %1297 = vmatpush1.msra.mxu0 0.0
    %1298 = vmatprep.subr.mxu0 0.0
    %1299 = vmatpush1.msra.mxu0 0.0
    %1300 = vmatprep.mubr.f32.mxu0 0.0
    %1301 = vmatmul.mubr.f32.gmra.mrb[0].mxu0 %v154
    %v1302 = vpop.f32.mrb[0].mxu0
    %v1303 = vadd.f32 0.0, %v1302
    %v1304 = vpop.f32.mrb[0].mxu0
    %1305 = vdwg.mxu0
    %v1306 = vadd.f32 %v1233, %v1303
    %vm1307 = vcmask 261120
    %v1309 = vsel %vm1307, 0.0, 0
    %1311 = vmatprep.subr.mxu0 0.0
    %1312 = vmatpush1.msra.mxu0 %v141
    %1313 = vmatprep.subr.mxu0 0.0
    %1314 = vmatpush1.msra.mxu0 %v142
    %1315 = vmatprep.subr.mxu0 0.0
    %1316 = vmatpush1.msra.mxu0 %v143
    %1317 = vmatprep.subr.mxu0 0.0
    %1318 = vmatpush1.msra.mxu0 %v144
    %1319 = vmatprep.subr.mxu0 0.0
    %1320 = vmatpush1.msra.mxu0 0.0
    %1321 = vmatprep.subr.mxu0 0.0
    %1322 = vmatpush1.msra.mxu0 0.0
    %1323 = vmatprep.subr.mxu0 0.0
    %1324 = vmatpush1.msra.mxu0 0.0
    %1325 = vmatprep.subr.mxu0 0.0
    %1326 = vmatpush1.msra.mxu0 0.0
    %1327 = vmatprep.subr.mxu0 0.0
    %1328 = vmatpush1.msra.mxu0 0.0
    %1329 = vmatprep.subr.mxu0 0.0
    %1330 = vmatpush1.msra.mxu0 0.0
    %1331 = vmatprep.subr.mxu0 0.0
    %1332 = vmatpush1.msra.mxu0 0.0
    %1333 = vmatprep.subr.mxu0 0.0
    %1334 = vmatpush1.msra.mxu0 0.0
    %1335 = vmatprep.subr.mxu0 0.0
    %1336 = vmatpush1.msra.mxu0 0.0
    %1337 = vmatprep.subr.mxu0 0.0
    %1338 = vmatpush1.msra.mxu0 0.0
    %1339 = vmatprep.subr.mxu0 0.0
    %1340 = vmatpush1.msra.mxu0 0.0
    %1341 = vmatprep.subr.mxu0 0.0
    %1342 = vmatpush1.msra.mxu0 0.0
    %1343 = vmatprep.subr.mxu0 0.0
    %1344 = vmatpush1.msra.mxu0 0.0
    %1345 = vmatprep.subr.mxu0 0.0
    %1346 = vmatpush1.msra.mxu0 0.0
    %1347 = vmatprep.subr.mxu0 0.0
    %1348 = vmatpush1.msra.mxu0 0.0
    %1349 = vmatprep.subr.mxu0 0.0
    %1350 = vmatpush1.msra.mxu0 0.0
    %1351 = vmatprep.subr.mxu0 0.0
    %1352 = vmatpush1.msra.mxu0 0.0
    %1353 = vmatprep.subr.mxu0 0.0
    %1354 = vmatpush1.msra.mxu0 0.0
    %1355 = vmatprep.subr.mxu0 0.0
    %1356 = vmatpush1.msra.mxu0 0.0
    %1357 = vmatprep.subr.mxu0 0.0
    %1358 = vmatpush1.msra.mxu0 0.0
    %1359 = vmatprep.subr.mxu0 0.0
    %1360 = vmatpush1.msra.mxu0 0.0
    %1361 = vmatprep.subr.mxu0 0.0
    %1362 = vmatpush1.msra.mxu0 0.0
    %1363 = vmatprep.subr.mxu0 0.0
    %1364 = vmatpush1.msra.mxu0 0.0
    %1365 = vmatprep.subr.mxu0 0.0
    %1366 = vmatpush1.msra.mxu0 0.0
    %1367 = vmatprep.subr.mxu0 0.0
    %1368 = vmatpush1.msra.mxu0 0.0
    %1369 = vmatprep.subr.mxu0 0.0
    %1370 = vmatpush1.msra.mxu0 0.0
    %1371 = vmatprep.subr.mxu0 0.0
    %1372 = vmatpush1.msra.mxu0 0.0
    %1373 = vmatprep.subr.mxu0 0.0
    %1374 = vmatpush1.msra.mxu0 0.0
    %1375 = vmatprep.mubr.f32.mxu0 0.0
    %1376 = vmatmul.mubr.f32.gmra.mrb[0].mxu0 %v1309
    %v1377 = vpop.f32.mrb[0].mxu0
    %v1378 = vadd.f32 0.0, %v1377
    %v1379 = vpop.f32.mrb[0].mxu0
    %1380 = vdwg.mxu0
    %v1381 = vadd.f32 %v301, %v1378
    %v1382 = vmul.f32 %v1381, 0.5
    %v1383 = vtanh.pop %v1382
    %v1384 = vmul.f32 %v1383, 0.5
    %v1385 = vadd.f32 %v1384, 0.5
    %v1386 = vmul.f32 %v1385, 0.0
    %1388 = vrot.lane.b32.xlu0 %v1383, 64
    %v1389 = vpop.permute.xlu0 %1388
    %v1391 = vmul.f32 %v1385, %v1389
    %1393 = vrot.lane.b32.xlu0 %v1391, 32
    %v1394 = vpop.permute.xlu0 %1393
    %v1396 = vadd.f32 %v1386, %v1394
    %v1397 = vtanh.pop %v1396
    %1399 = vrot.lane.b32.xlu0 %v1397, 64
    %v1400 = vpop.permute.xlu0 %1399
    %v1402 = vmul.f32 %v1385, %v1400
    %1404 = vrot.lane.b32.xlu0 %v1402, 32
    %v1405 = vpop.permute.xlu0 %1404
    %v1407 = vmul.f32 %v92, %v1405
    %v1408 = vadd.f32 %v1407, 0.0
    %1410 = vrot.lane.b32.xlu0 %v1396, 96
    %v1411 = vpop.permute.xlu0 %1410
    %v1413 = vmul.f32 %v92, %v1411
    %v1414 = vadd.f32 %v1413, 0.0
    %v1416 = vsel %vm1307, %v1408, 0
    %1418 = vmatprep.subr.mxu0 0.0
    %1419 = vmatpush1.msra.mxu0 %v141
    %1420 = vmatprep.subr.mxu0 0.0
    %1421 = vmatpush1.msra.mxu0 %v142
    %1422 = vmatprep.subr.mxu0 0.0
    %1423 = vmatpush1.msra.mxu0 %v143
    %1424 = vmatprep.subr.mxu0 0.0
    %1425 = vmatpush1.msra.mxu0 %v144
    %1426 = vmatprep.subr.mxu0 0.0
    %1427 = vmatpush1.msra.mxu0 0.0
    %1428 = vmatprep.subr.mxu0 0.0
    %1429 = vmatpush1.msra.mxu0 0.0
    %1430 = vmatprep.subr.mxu0 0.0
    %1431 = vmatpush1.msra.mxu0 0.0
    %1432 = vmatprep.subr.mxu0 0.0
    %1433 = vmatpush1.msra.mxu0 0.0
    %1434 = vmatprep.subr.mxu0 0.0
    %1435 = vmatpush1.msra.mxu0 0.0
    %1436 = vmatprep.subr.mxu0 0.0
    %1437 = vmatpush1.msra.mxu0 0.0
    %1438 = vmatprep.subr.mxu0 0.0
    %1439 = vmatpush1.msra.mxu0 0.0
    %1440 = vmatprep.subr.mxu0 0.0
    %1441 = vmatpush1.msra.mxu0 0.0
    %1442 = vmatprep.subr.mxu0 0.0
    %1443 = vmatpush1.msra.mxu0 0.0
    %1444 = vmatprep.subr.mxu0 0.0
    %1445 = vmatpush1.msra.mxu0 0.0
    %1446 = vmatprep.subr.mxu0 0.0
    %1447 = vmatpush1.msra.mxu0 0.0
    %1448 = vmatprep.subr.mxu0 0.0
    %1449 = vmatpush1.msra.mxu0 0.0
    %1450 = vmatprep.subr.mxu0 0.0
    %1451 = vmatpush1.msra.mxu0 0.0
    %1452 = vmatprep.subr.mxu0 0.0
    %1453 = vmatpush1.msra.mxu0 0.0
    %1454 = vmatprep.subr.mxu0 0.0
    %1455 = vmatpush1.msra.mxu0 0.0
    %1456 = vmatprep.subr.mxu0 0.0
    %1457 = vmatpush1.msra.mxu0 0.0
    %1458 = vmatprep.subr.mxu0 0.0
    %1459 = vmatpush1.msra.mxu0 0.0
    %1460 = vmatprep.subr.mxu0 0.0
    %1461 = vmatpush1.msra.mxu0 0.0
    %1462 = vmatprep.subr.mxu0 0.0
    %1463 = vmatpush1.msra.mxu0 0.0
    %1464 = vmatprep.subr.mxu0 0.0
    %1465 = vmatpush1.msra.mxu0 0.0
    %1466 = vmatprep.subr.mxu0 0.0
    %1467 = vmatpush1.msra.mxu0 0.0
    %1468 = vmatprep.subr.mxu0 0.0
    %1469 = vmatpush1.msra.mxu0 0.0
    %1470 = vmatprep.subr.mxu0 0.0
    %1471 = vmatpush1.msra.mxu0 0.0
    %1472 = vmatprep.subr.mxu0 0.0
    %1473 = vmatpush1.msra.mxu0 0.0
    %1474 = vmatprep.subr.mxu0 0.0
    %1475 = vmatpush1.msra.mxu0 0.0
    %1476 = vmatprep.subr.mxu0 0.0
    %1477 = vmatpush1.msra.mxu0 0.0
    %1478 = vmatprep.subr.mxu0 0.0
    %1479 = vmatpush1.msra.mxu0 0.0
    %1480 = vmatprep.subr.mxu0 0.0
    %1481 = vmatpush1.msra.mxu0 0.0
    %1482 = vmatprep.mubr.f32.mxu0 0.0
    %1483 = vmatmul.mubr.f32.gmra.mrb[0].mxu0 %v1416
    %v1484 = vpop.f32.mrb[0].mxu0
    %v1485 = vadd.f32 0.0, %v1484
    %v1486 = vpop.f32.mrb[0].mxu0
    %1487 = vdwg.mxu0
    %v1488 = vadd.f32 %v448, %v1485
    %v1489 = vmul.f32 %v1488, 0.5
    %v1490 = vtanh.pop %v1489
    %v1491 = vmul.f32 %v1490, 0.5
    %v1492 = vadd.f32 %v1491, 0.5
    %1494 = vrot.lane.b32.xlu0 %v1414, 32
    %v1495 = vpop.permute.xlu0 %1494
    %v1497 = vmul.f32 %v1492, %v1495
    %1499 = vrot.lane.b32.xlu0 %v1490, 64
    %v1500 = vpop.permute.xlu0 %1499
    %v1502 = vmul.f32 %v1492, %v1500
    %1504 = vrot.lane.b32.xlu0 %v1502, 32
    %v1505 = vpop.permute.xlu0 %1504
    %v1507 = vadd.f32 %v1497, %v1505
    %v1508 = vtanh.pop %v1507
    %1510 = vrot.lane.b32.xlu0 %v1508, 64
    %v1511 = vpop.permute.xlu0 %1510
    %v1513 = vmul.f32 %v1492, %v1511
    %1514 = vrot.lane.b32.xlu0 %v1408, 96
    %v1515 = vpop.permute.xlu0 %1514
    %v1517 = vsub.f32 %v1513, %v1515
    %1519 = vrot.lane.b32.xlu0 %v1517, 32
    %v1520 = vpop.permute.xlu0 %1519
    %v1522 = vmul.f32 %v96, %v1520
    %v1523 = vadd.f32 %v1408, %v1522
    %v1524 = vsub.f32 %v1507, %v1495
    %1526 = vrot.lane.b32.xlu0 %v1524, 96
    %v1527 = vpop.permute.xlu0 %1526
    %v1529 = vmul.f32 %v96, %v1527
    %v1530 = vadd.f32 %v1414, %v1529
    %1532 = vrot.lane.b32.xlu0 %v1513, 32
    %v1533 = vpop.permute.xlu0 %1532
    %v1535 = vmul.f32 %v96, %v1533
    %v1537 = vsel %vm1307, %v1523, 0
    %1539 = vmatprep.subr.mxu0 0.0
    %1540 = vmatpush1.msra.mxu0 %v141
    %1541 = vmatprep.subr.mxu0 0.0
    %1542 = vmatpush1.msra.mxu0 %v142
    %1543 = vmatprep.subr.mxu0 0.0
    %1544 = vmatpush1.msra.mxu0 %v143
    %1545 = vmatprep.subr.mxu0 0.0
    %1546 = vmatpush1.msra.mxu0 %v144
    %1547 = vmatprep.subr.mxu0 0.0
    %1548 = vmatpush1.msra.mxu0 0.0
    %1549 = vmatprep.subr.mxu0 0.0
    %1550 = vmatpush1.msra.mxu0 0.0
    %1551 = vmatprep.subr.mxu0 0.0
    %1552 = vmatpush1.msra.mxu0 0.0
    %1553 = vmatprep.subr.mxu0 0.0
    %1554 = vmatpush1.msra.mxu0 0.0
    %1555 = vmatprep.subr.mxu0 0.0
    %1556 = vmatpush1.msra.mxu0 0.0
    %1557 = vmatprep.subr.mxu0 0.0
    %1558 = vmatpush1.msra.mxu0 0.0
    %1559 = vmatprep.subr.mxu0 0.0
    %1560 = vmatpush1.msra.mxu0 0.0
    %1561 = vmatprep.subr.mxu0 0.0
    %1562 = vmatpush1.msra.mxu0 0.0
    %1563 = vmatprep.subr.mxu0 0.0
    %1564 = vmatpush1.msra.mxu0 0.0
    %1565 = vmatprep.subr.mxu0 0.0
    %1566 = vmatpush1.msra.mxu0 0.0
    %1567 = vmatprep.subr.mxu0 0.0
    %1568 = vmatpush1.msra.mxu0 0.0
    %1569 = vmatprep.subr.mxu0 0.0
    %1570 = vmatpush1.msra.mxu0 0.0
    %1571 = vmatprep.subr.mxu0 0.0
    %1572 = vmatpush1.msra.mxu0 0.0
    %1573 = vmatprep.subr.mxu0 0.0
    %1574 = vmatpush1.msra.mxu0 0.0
    %1575 = vmatprep.subr.mxu0 0.0
    %1576 = vmatpush1.msra.mxu0 0.0
    %1577 = vmatprep.subr.mxu0 0.0
    %1578 = vmatpush1.msra.mxu0 0.0
    %1579 = vmatprep.subr.mxu0 0.0
    %1580 = vmatpush1.msra.mxu0 0.0
    %1581 = vmatprep.subr.mxu0 0.0
    %1582 = vmatpush1.msra.mxu0 0.0
    %1583 = vmatprep.subr.mxu0 0.0
    %1584 = vmatpush1.msra.mxu0 0.0
    %1585 = vmatprep.subr.mxu0 0.0
    %1586 = vmatpush1.msra.mxu0 0.0
    %1587 = vmatprep.subr.mxu0 0.0
    %1588 = vmatpush1.msra.mxu0 0.0
    %1589 = vmatprep.subr.mxu0 0.0
    %1590 = vmatpush1.msra.mxu0 0.0
    %1591 = vmatprep.subr.mxu0 0.0
    %1592 = vmatpush1.msra.mxu0 0.0
    %1593 = vmatprep.subr.mxu0 0.0
    %1594 = vmatpush1.msra.mxu0 0.0
    %1595 = vmatprep.subr.mxu0 0.0
    %1596 = vmatpush1.msra.mxu0 0.0
    %1597 = vmatprep.subr.mxu0 0.0
    %1598 = vmatpush1.msra.mxu0 0.0
    %1599 = vmatprep.subr.mxu0 0.0
    %1600 = vmatpush1.msra.mxu0 0.0
    %1601 = vmatprep.subr.mxu0 0.0
    %1602 = vmatpush1.msra.mxu0 0.0
    %1603 = vmatprep.mubr.f32.mxu0 0.0
    %1604 = vmatmul.mubr.f32.gmra.mrb[0].mxu0 %v1537
    %v1605 = vpop.f32.mrb[0].mxu0
    %v1606 = vadd.f32 0.0, %v1605
    %v1607 = vpop.f32.mrb[0].mxu0
    %1608 = vdwg.mxu0
    %v1609 = vadd.f32 %v595, %v1606
    %v1610 = vmul.f32 %v1609, 0.5
    %v1611 = vtanh.pop %v1610
    %v1612 = vmul.f32 %v1611, 0.5
    %v1613 = vadd.f32 %v1612, 0.5
    %1615 = vrot.lane.b32.xlu0 %v1530, 32
    %v1616 = vpop.permute.xlu0 %1615
    %v1618 = vmul.f32 %v1613, %v1616
    %1620 = vrot.lane.b32.xlu0 %v1611, 64
    %v1621 = vpop.permute.xlu0 %1620
    %v1623 = vmul.f32 %v1613, %v1621
    %1625 = vrot.lane.b32.xlu0 %v1623, 32
    %v1626 = vpop.permute.xlu0 %1625
    %v1628 = vadd.f32 %v1618, %v1626
    %v1629 = vtanh.pop %v1628
    %1631 = vrot.lane.b32.xlu0 %v1629, 64
    %v1632 = vpop.permute.xlu0 %1631
    %v1634 = vmul.f32 %v1613, %v1632
    %1635 = vrot.lane.b32.xlu0 %v1523, 96
    %v1636 = vpop.permute.xlu0 %1635
    %v1638 = vsub.f32 %v1634, %v1636
    %1640 = vrot.lane.b32.xlu0 %v1638, 32
    %v1641 = vpop.permute.xlu0 %1640
    %v1643 = vmul.f32 %v100, %v1641
    %v1644 = vadd.f32 %v1523, %v1643
    %v1645 = vsub.f32 %v1628, %v1616
    %1647 = vrot.lane.b32.xlu0 %v1645, 96
    %v1648 = vpop.permute.xlu0 %1647
    %v1650 = vmul.f32 %v100, %v1648
    %v1651 = vadd.f32 %v1530, %v1650
    %1653 = vrot.lane.b32.xlu0 %v1634, 32
    %v1654 = vpop.permute.xlu0 %1653
    %v1656 = vmul.f32 %v100, %v1654
    %v1658 = vsel %vm1307, %v1644, 0
    %1660 = vmatprep.subr.mxu0 0.0
    %1661 = vmatpush1.msra.mxu0 %v141
    %1662 = vmatprep.subr.mxu0 0.0
    %1663 = vmatpush1.msra.mxu0 %v142
    %1664 = vmatprep.subr.mxu0 0.0
    %1665 = vmatpush1.msra.mxu0 %v143
    %1666 = vmatprep.subr.mxu0 0.0
    %1667 = vmatpush1.msra.mxu0 %v144
    %1668 = vmatprep.subr.mxu0 0.0
    %1669 = vmatpush1.msra.mxu0 0.0
    %1670 = vmatprep.subr.mxu0 0.0
    %1671 = vmatpush1.msra.mxu0 0.0
    %1672 = vmatprep.subr.mxu0 0.0
    %1673 = vmatpush1.msra.mxu0 0.0
    %1674 = vmatprep.subr.mxu0 0.0
    %1675 = vmatpush1.msra.mxu0 0.0
    %1676 = vmatprep.subr.mxu0 0.0
    %1677 = vmatpush1.msra.mxu0 0.0
    %1678 = vmatprep.subr.mxu0 0.0
    %1679 = vmatpush1.msra.mxu0 0.0
    %1680 = vmatprep.subr.mxu0 0.0
    %1681 = vmatpush1.msra.mxu0 0.0
    %1682 = vmatprep.subr.mxu0 0.0
    %1683 = vmatpush1.msra.mxu0 0.0
    %1684 = vmatprep.subr.mxu0 0.0
    %1685 = vmatpush1.msra.mxu0 0.0
    %1686 = vmatprep.subr.mxu0 0.0
    %1687 = vmatpush1.msra.mxu0 0.0
    %1688 = vmatprep.subr.mxu0 0.0
    %1689 = vmatpush1.msra.mxu0 0.0
    %1690 = vmatprep.subr.mxu0 0.0
    %1691 = vmatpush1.msra.mxu0 0.0
    %1692 = vmatprep.subr.mxu0 0.0
    %1693 = vmatpush1.msra.mxu0 0.0
    %1694 = vmatprep.subr.mxu0 0.0
    %1695 = vmatpush1.msra.mxu0 0.0
    %1696 = vmatprep.subr.mxu0 0.0
    %1697 = vmatpush1.msra.mxu0 0.0
    %1698 = vmatprep.subr.mxu0 0.0
    %1699 = vmatpush1.msra.mxu0 0.0
    %1700 = vmatprep.subr.mxu0 0.0
    %1701 = vmatpush1.msra.mxu0 0.0
    %1702 = vmatprep.subr.mxu0 0.0
    %1703 = vmatpush1.msra.mxu0 0.0
    %1704 = vmatprep.subr.mxu0 0.0
    %1705 = vmatpush1.msra.mxu0 0.0
    %1706 = vmatprep.subr.mxu0 0.0
    %1707 = vmatpush1.msra.mxu0 0.0
    %1708 = vmatprep.subr.mxu0 0.0
    %1709 = vmatpush1.msra.mxu0 0.0
    %1710 = vmatprep.subr.mxu0 0.0
    %1711 = vmatpush1.msra.mxu0 0.0
    %1712 = vmatprep.subr.mxu0 0.0
    %1713 = vmatpush1.msra.mxu0 0.0
    %1714 = vmatprep.subr.mxu0 0.0
    %1715 = vmatpush1.msra.mxu0 0.0
    %1716 = vmatprep.subr.mxu0 0.0
    %1717 = vmatpush1.msra.mxu0 0.0
    %1718 = vmatprep.subr.mxu0 0.0
    %1719 = vmatpush1.msra.mxu0 0.0
    %1720 = vmatprep.subr.mxu0 0.0
    %1721 = vmatpush1.msra.mxu0 0.0
    %1722 = vmatprep.subr.mxu0 0.0
    %1723 = vmatpush1.msra.mxu0 0.0
    %1724 = vmatprep.mubr.f32.mxu0 0.0
    %1725 = vmatmul.mubr.f32.gmra.mrb[0].mxu0 %v1658
    %v1726 = vpop.f32.mrb[0].mxu0
    %v1727 = vadd.f32 0.0, %v1726
    %v1728 = vpop.f32.mrb[0].mxu0
    %1729 = vdwg.mxu0
    %v1730 = vadd.f32 %v742, %v1727
    %v1731 = vmul.f32 %v1730, 0.5
    %v1732 = vtanh.pop %v1731
    %v1733 = vmul.f32 %v1732, 0.5
    %v1734 = vadd.f32 %v1733, 0.5
    %1736 = vrot.lane.b32.xlu0 %v1651, 32
    %v1737 = vpop.permute.xlu0 %1736
    %v1739 = vmul.f32 %v1734, %v1737
    %1741 = vrot.lane.b32.xlu0 %v1732, 64
    %v1742 = vpop.permute.xlu0 %1741
    %v1744 = vmul.f32 %v1734, %v1742
    %1746 = vrot.lane.b32.xlu0 %v1744, 32
    %v1747 = vpop.permute.xlu0 %1746
    %v1749 = vadd.f32 %v1739, %v1747
    %v1750 = vtanh.pop %v1749
    %1752 = vrot.lane.b32.xlu0 %v1750, 64
    %v1753 = vpop.permute.xlu0 %1752
    %v1755 = vmul.f32 %v1734, %v1753
    %1756 = vrot.lane.b32.xlu0 %v1644, 96
    %v1757 = vpop.permute.xlu0 %1756
    %v1759 = vsub.f32 %v1755, %v1757
    %1761 = vrot.lane.b32.xlu0 %v1759, 32
    %v1762 = vpop.permute.xlu0 %1761
    %v1764 = vmul.f32 %v104, %v1762
    %v1765 = vadd.f32 %v1644, %v1764
    %v1766 = vsub.f32 %v1749, %v1737
    %1768 = vrot.lane.b32.xlu0 %v1766, 96
    %v1769 = vpop.permute.xlu0 %1768
    %v1771 = vmul.f32 %v104, %v1769
    %v1772 = vadd.f32 %v1651, %v1771
    %1774 = vrot.lane.b32.xlu0 %v1755, 32
    %v1775 = vpop.permute.xlu0 %1774
    %v1777 = vmul.f32 %v104, %v1775
    %v1779 = vsel %vm1307, %v1765, 0
    %1781 = vmatprep.subr.mxu0 0.0
    %1782 = vmatpush1.msra.mxu0 %v141
    %1783 = vmatprep.subr.mxu0 0.0
    %1784 = vmatpush1.msra.mxu0 %v142
    %1785 = vmatprep.subr.mxu0 0.0
    %1786 = vmatpush1.msra.mxu0 %v143
    %1787 = vmatprep.subr.mxu0 0.0
    %1788 = vmatpush1.msra.mxu0 %v144
    %1789 = vmatprep.subr.mxu0 0.0
    %1790 = vmatpush1.msra.mxu0 0.0
    %1791 = vmatprep.subr.mxu0 0.0
    %1792 = vmatpush1.msra.mxu0 0.0
    %1793 = vmatprep.subr.mxu0 0.0
    %1794 = vmatpush1.msra.mxu0 0.0
    %1795 = vmatprep.subr.mxu0 0.0
    %1796 = vmatpush1.msra.mxu0 0.0
    %1797 = vmatprep.subr.mxu0 0.0
    %1798 = vmatpush1.msra.mxu0 0.0
    %1799 = vmatprep.subr.mxu0 0.0
    %1800 = vmatpush1.msra.mxu0 0.0
    %1801 = vmatprep.subr.mxu0 0.0
    %1802 = vmatpush1.msra.mxu0 0.0
    %1803 = vmatprep.subr.mxu0 0.0
    %1804 = vmatpush1.msra.mxu0 0.0
    %1805 = vmatprep.subr.mxu0 0.0
    %1806 = vmatpush1.msra.mxu0 0.0
    %1807 = vmatprep.subr.mxu0 0.0
    %1808 = vmatpush1.msra.mxu0 0.0
    %1809 = vmatprep.subr.mxu0 0.0
    %1810 = vmatpush1.msra.mxu0 0.0
    %1811 = vmatprep.subr.mxu0 0.0
    %1812 = vmatpush1.msra.mxu0 0.0
    %1813 = vmatprep.subr.mxu0 0.0
    %1814 = vmatpush1.msra.mxu0 0.0
    %1815 = vmatprep.subr.mxu0 0.0
    %1816 = vmatpush1.msra.mxu0 0.0
    %1817 = vmatprep.subr.mxu0 0.0
    %1818 = vmatpush1.msra.mxu0 0.0
    %1819 = vmatprep.subr.mxu0 0.0
    %1820 = vmatpush1.msra.mxu0 0.0
    %1821 = vmatprep.subr.mxu0 0.0
    %1822 = vmatpush1.msra.mxu0 0.0
    %1823 = vmatprep.subr.mxu0 0.0
    %1824 = vmatpush1.msra.mxu0 0.0
    %1825 = vmatprep.subr.mxu0 0.0
    %1826 = vmatpush1.msra.mxu0 0.0
    %1827 = vmatprep.subr.mxu0 0.0
    %1828 = vmatpush1.msra.mxu0 0.0
    %1829 = vmatprep.subr.mxu0 0.0
    %1830 = vmatpush1.msra.mxu0 0.0
    %1831 = vmatprep.subr.mxu0 0.0
    %1832 = vmatpush1.msra.mxu0 0.0
    %1833 = vmatprep.subr.mxu0 0.0
    %1834 = vmatpush1.msra.mxu0 0.0
    %1835 = vmatprep.subr.mxu0 0.0
    %1836 = vmatpush1.msra.mxu0 0.0
    %1837 = vmatprep.subr.mxu0 0.0
    %1838 = vmatpush1.msra.mxu0 0.0
    %1839 = vmatprep.subr.mxu0 0.0
    %1840 = vmatpush1.msra.mxu0 0.0
    %1841 = vmatprep.subr.mxu0 0.0
    %1842 = vmatpush1.msra.mxu0 0.0
    %1843 = vmatprep.subr.mxu0 0.0
    %1844 = vmatpush1.msra.mxu0 0.0
    %1845 = vmatprep.mubr.f32.mxu0 0.0
    %1846 = vmatmul.mubr.f32.gmra.mrb[0].mxu0 %v1779
    %v1847 = vpop.f32.mrb[0].mxu0
    %v1848 = vadd.f32 0.0, %v1847
    %v1849 = vpop.f32.mrb[0].mxu0
    %1850 = vdwg.mxu0
    %v1851 = vadd.f32 %v883, %v1848
    %v1852 = vmul.f32 %v1851, 0.5
    %v1853 = vtanh.pop %v1852
    %v1854 = vmul.f32 %v1853, 0.5
    %v1855 = vadd.f32 %v1854, 0.5
    %1857 = vrot.lane.b32.xlu0 %v1772, 32
    %v1858 = vpop.permute.xlu0 %1857
    %v1860 = vmul.f32 %v1855, %v1858
    %1862 = vrot.lane.b32.xlu0 %v1853, 64
    %v1863 = vpop.permute.xlu0 %1862
    %v1865 = vmul.f32 %v1855, %v1863
    %1867 = vrot.lane.b32.xlu0 %v1865, 32
    %v1868 = vpop.permute.xlu0 %1867
    %v1870 = vadd.f32 %v1860, %v1868
    %v1871 = vtanh.pop %v1870
    %1873 = vrot.lane.b32.xlu0 %v1871, 64
    %v1874 = vpop.permute.xlu0 %1873
    %v1876 = vmul.f32 %v1855, %v1874
    %1877 = vrot.lane.b32.xlu0 %v1765, 96
    %v1878 = vpop.permute.xlu0 %1877
    %v1880 = vsub.f32 %v1876, %v1878
    %1882 = vrot.lane.b32.xlu0 %v1880, 32
    %v1883 = vpop.permute.xlu0 %1882
    %v1885 = vmul.f32 %v108, %v1883
    %v1886 = vadd.f32 %v1765, %v1885
    %v1887 = vsub.f32 %v1870, %v1858
    %1889 = vrot.lane.b32.xlu0 %v1887, 96
    %v1890 = vpop.permute.xlu0 %1889
    %v1892 = vmul.f32 %v108, %v1890
    %v1893 = vadd.f32 %v1772, %v1892
    %1895 = vrot.lane.b32.xlu0 %v1876, 32
    %v1896 = vpop.permute.xlu0 %1895
    %v1898 = vmul.f32 %v108, %v1896
    %v1900 = vsel %vm1307, %v1886, 0
    %1902 = vmatprep.subr.mxu0 0.0
    %1903 = vmatpush1.msra.mxu0 %v141
    %1904 = vmatprep.subr.mxu0 0.0
    %1905 = vmatpush1.msra.mxu0 %v142
    %1906 = vmatprep.subr.mxu0 0.0
    %1907 = vmatpush1.msra.mxu0 %v143
    %1908 = vmatprep.subr.mxu0 0.0
    %1909 = vmatpush1.msra.mxu0 %v144
    %1910 = vmatprep.subr.mxu0 0.0
    %1911 = vmatpush1.msra.mxu0 0.0
    %1912 = vmatprep.subr.mxu0 0.0
    %1913 = vmatpush1.msra.mxu0 0.0
    %1914 = vmatprep.subr.mxu0 0.0
    %1915 = vmatpush1.msra.mxu0 0.0
    %1916 = vmatprep.subr.mxu0 0.0
    %1917 = vmatpush1.msra.mxu0 0.0
    %1918 = vmatprep.subr.mxu0 0.0
    %1919 = vmatpush1.msra.mxu0 0.0
    %1920 = vmatprep.subr.mxu0 0.0
    %1921 = vmatpush1.msra.mxu0 0.0
    %1922 = vmatprep.subr.mxu0 0.0
    %1923 = vmatpush1.msra.mxu0 0.0
    %1924 = vmatprep.subr.mxu0 0.0
    %1925 = vmatpush1.msra.mxu0 0.0
    %1926 = vmatprep.subr.mxu0 0.0
    %1927 = vmatpush1.msra.mxu0 0.0
    %1928 = vmatprep.subr.mxu0 0.0
    %1929 = vmatpush1.msra.mxu0 0.0
    %1930 = vmatprep.subr.mxu0 0.0
    %1931 = vmatpush1.msra.mxu0 0.0
    %1932 = vmatprep.subr.mxu0 0.0
    %1933 = vmatpush1.msra.mxu0 0.0
    %1934 = vmatprep.subr.mxu0 0.0
    %1935 = vmatpush1.msra.mxu0 0.0
    %1936 = vmatprep.subr.mxu0 0.0
    %1937 = vmatpush1.msra.mxu0 0.0
    %1938 = vmatprep.subr.mxu0 0.0
    %1939 = vmatpush1.msra.mxu0 0.0
    %1940 = vmatprep.subr.mxu0 0.0
    %1941 = vmatpush1.msra.mxu0 0.0
    %1942 = vmatprep.subr.mxu0 0.0
    %1943 = vmatpush1.msra.mxu0 0.0
    %1944 = vmatprep.subr.mxu0 0.0
    %1945 = vmatpush1.msra.mxu0 0.0
    %1946 = vmatprep.subr.mxu0 0.0
    %1947 = vmatpush1.msra.mxu0 0.0
    %1948 = vmatprep.subr.mxu0 0.0
    %1949 = vmatpush1.msra.mxu0 0.0
    %1950 = vmatprep.subr.mxu0 0.0
    %1951 = vmatpush1.msra.mxu0 0.0
    %1952 = vmatprep.subr.mxu0 0.0
    %1953 = vmatpush1.msra.mxu0 0.0
    %1954 = vmatprep.subr.mxu0 0.0
    %1955 = vmatpush1.msra.mxu0 0.0
    %1956 = vmatprep.subr.mxu0 0.0
    %1957 = vmatpush1.msra.mxu0 0.0
    %1958 = vmatprep.subr.mxu0 0.0
    %1959 = vmatpush1.msra.mxu0 0.0
    %1960 = vmatprep.subr.mxu0 0.0
    %1961 = vmatpush1.msra.mxu0 0.0
    %1962 = vmatprep.subr.mxu0 0.0
    %1963 = vmatpush1.msra.mxu0 0.0
    %1964 = vmatprep.subr.mxu0 0.0
    %1965 = vmatpush1.msra.mxu0 0.0
    %1966 = vmatprep.mubr.f32.mxu0 0.0
    %1967 = vmatmul.mubr.f32.gmra.mrb[0].mxu0 %v1900
    %v1968 = vpop.f32.mrb[0].mxu0
    %v1969 = vadd.f32 0.0, %v1968
    %v1970 = vpop.f32.mrb[0].mxu0
    %1971 = vdwg.mxu0
    %v1972 = vadd.f32 %v1024, %v1969
    %v1973 = vmul.f32 %v1972, 0.5
    %v1974 = vtanh.pop %v1973
    %v1975 = vmul.f32 %v1974, 0.5
    %v1976 = vadd.f32 %v1975, 0.5
    %1978 = vrot.lane.b32.xlu0 %v1893, 32
    %v1979 = vpop.permute.xlu0 %1978
    %v1981 = vmul.f32 %v1976, %v1979
    %1983 = vrot.lane.b32.xlu0 %v1974, 64
    %v1984 = vpop.permute.xlu0 %1983
    %v1986 = vmul.f32 %v1976, %v1984
    %1988 = vrot.lane.b32.xlu0 %v1986, 32
    %v1989 = vpop.permute.xlu0 %1988
    %v1991 = vadd.f32 %v1981, %v1989
    %v1992 = vtanh.pop %v1991
    %1994 = vrot.lane.b32.xlu0 %v1992, 64
    %v1995 = vpop.permute.xlu0 %1994
    %v1997 = vmul.f32 %v1976, %v1995
    %1998 = vrot.lane.b32.xlu0 %v1886, 96
    %v1999 = vpop.permute.xlu0 %1998
    %v2001 = vsub.f32 %v1997, %v1999
    %2003 = vrot.lane.b32.xlu0 %v2001, 32
    %v2004 = vpop.permute.xlu0 %2003
    %v2006 = vmul.f32 %v112, %v2004
    %v2007 = vadd.f32 %v1886, %v2006
    %v2008 = vsub.f32 %v1991, %v1979
    %2010 = vrot.lane.b32.xlu0 %v2008, 96
    %v2011 = vpop.permute.xlu0 %2010
    %v2013 = vmul.f32 %v112, %v2011
    %v2014 = vadd.f32 %v1893, %v2013
    %2016 = vrot.lane.b32.xlu0 %v1997, 32
    %v2017 = vpop.permute.xlu0 %2016
    %v2019 = vmul.f32 %v112, %v2017
    %v2021 = vsel %vm1307, %v2007, 0
    %2023 = vmatprep.subr.mxu0 0.0
    %2024 = vmatpush1.msra.mxu0 %v141
    %2025 = vmatprep.subr.mxu0 0.0
    %2026 = vmatpush1.msra.mxu0 %v142
    %2027 = vmatprep.subr.mxu0 0.0
    %2028 = vmatpush1.msra.mxu0 %v143
    %2029 = vmatprep.subr.mxu0 0.0
    %2030 = vmatpush1.msra.mxu0 %v144
    %2031 = vmatprep.subr.mxu0 0.0
    %2032 = vmatpush1.msra.mxu0 0.0
    %2033 = vmatprep.subr.mxu0 0.0
    %2034 = vmatpush1.msra.mxu0 0.0
    %2035 = vmatprep.subr.mxu0 0.0
    %2036 = vmatpush1.msra.mxu0 0.0
    %2037 = vmatprep.subr.mxu0 0.0
    %2038 = vmatpush1.msra.mxu0 0.0
    %2039 = vmatprep.subr.mxu0 0.0
    %2040 = vmatpush1.msra.mxu0 0.0
    %2041 = vmatprep.subr.mxu0 0.0
    %2042 = vmatpush1.msra.mxu0 0.0
    %2043 = vmatprep.subr.mxu0 0.0
    %2044 = vmatpush1.msra.mxu0 0.0
    %2045 = vmatprep.subr.mxu0 0.0
    %2046 = vmatpush1.msra.mxu0 0.0
    %2047 = vmatprep.subr.mxu0 0.0
    %2048 = vmatpush1.msra.mxu0 0.0
    %2049 = vmatprep.subr.mxu0 0.0
    %2050 = vmatpush1.msra.mxu0 0.0
    %2051 = vmatprep.subr.mxu0 0.0
    %2052 = vmatpush1.msra.mxu0 0.0
    %2053 = vmatprep.subr.mxu0 0.0
    %2054 = vmatpush1.msra.mxu0 0.0
    %2055 = vmatprep.subr.mxu0 0.0
    %2056 = vmatpush1.msra.mxu0 0.0
    %2057 = vmatprep.subr.mxu0 0.0
    %2058 = vmatpush1.msra.mxu0 0.0
    %2059 = vmatprep.subr.mxu0 0.0
    %2060 = vmatpush1.msra.mxu0 0.0
    %2061 = vmatprep.subr.mxu0 0.0
    %2062 = vmatpush1.msra.mxu0 0.0
    %2063 = vmatprep.subr.mxu0 0.0
    %2064 = vmatpush1.msra.mxu0 0.0
    %2065 = vmatprep.subr.mxu0 0.0
    %2066 = vmatpush1.msra.mxu0 0.0
    %2067 = vmatprep.subr.mxu0 0.0
    %2068 = vmatpush1.msra.mxu0 0.0
    %2069 = vmatprep.subr.mxu0 0.0
    %2070 = vmatpush1.msra.mxu0 0.0
    %2071 = vmatprep.subr.mxu0 0.0
    %2072 = vmatpush1.msra.mxu0 0.0
    %2073 = vmatprep.subr.mxu0 0.0
    %2074 = vmatpush1.msra.mxu0 0.0
    %2075 = vmatprep.subr.mxu0 0.0
    %2076 = vmatpush1.msra.mxu0 0.0
    %2077 = vmatprep.subr.mxu0 0.0
    %2078 = vmatpush1.msra.mxu0 0.0
    %2079 = vmatprep.subr.mxu0 0.0
    %2080 = vmatpush1.msra.mxu0 0.0
    %2081 = vmatprep.subr.mxu0 0.0
    %2082 = vmatpush1.msra.mxu0 0.0
    %2083 = vmatprep.subr.mxu0 0.0
    %2084 = vmatpush1.msra.mxu0 0.0
    %2085 = vmatprep.subr.mxu0 0.0
    %2086 = vmatpush1.msra.mxu0 0.0
    %2087 = vmatprep.mubr.f32.mxu0 0.0
    %2088 = vmatmul.mubr.f32.gmra.mrb[0].mxu0 %v2021
    %v2089 = vpop.f32.mrb[0].mxu0
    %v2090 = vadd.f32 0.0, %v2089
    %v2091 = vpop.f32.mrb[0].mxu0
    %2092 = vdwg.mxu0
    %v2093 = vadd.f32 %v1165, %v2090
    %v2094 = vmul.f32 %v2093, 0.5
    %v2095 = vtanh.pop %v2094
    %v2096 = vmul.f32 %v2095, 0.5
    %v2097 = vadd.f32 %v2096, 0.5
    %2099 = vrot.lane.b32.xlu0 %v2014, 32
    %v2100 = vpop.permute.xlu0 %2099
    %v2102 = vmul.f32 %v2097, %v2100
    %2104 = vrot.lane.b32.xlu0 %v2095, 64
    %v2105 = vpop.permute.xlu0 %2104
    %v2107 = vmul.f32 %v2097, %v2105
    %2109 = vrot.lane.b32.xlu0 %v2107, 32
    %v2110 = vpop.permute.xlu0 %2109
    %v2112 = vadd.f32 %v2102, %v2110
    %v2113 = vtanh.pop %v2112
    %2115 = vrot.lane.b32.xlu0 %v2113, 64
    %v2116 = vpop.permute.xlu0 %2115
    %v2118 = vmul.f32 %v2097, %v2116
    %2119 = vrot.lane.b32.xlu0 %v2007, 96
    %v2120 = vpop.permute.xlu0 %2119
    %v2122 = vsub.f32 %v2118, %v2120
    %2124 = vrot.lane.b32.xlu0 %v2122, 32
    %v2125 = vpop.permute.xlu0 %2124
    %v2127 = vmul.f32 %v116, %v2125
    %v2128 = vadd.f32 %v2007, %v2127
    %v2129 = vsub.f32 %v2112, %v2100
    %2131 = vrot.lane.b32.xlu0 %v2129, 96
    %v2132 = vpop.permute.xlu0 %2131
    %v2134 = vmul.f32 %v116, %v2132
    %v2135 = vadd.f32 %v2014, %v2134
    %2137 = vrot.lane.b32.xlu0 %v2118, 32
    %v2138 = vpop.permute.xlu0 %2137
    %v2140 = vmul.f32 %v116, %v2138
    %v2142 = vsel %vm1307, %v2128, 0
    %2144 = vmatprep.subr.mxu0 0.0
    %2145 = vmatpush1.msra.mxu0 %v141
    %2146 = vmatprep.subr.mxu0 0.0
    %2147 = vmatpush1.msra.mxu0 %v142
    %2148 = vmatprep.subr.mxu0 0.0
    %2149 = vmatpush1.msra.mxu0 %v143
    %2150 = vmatprep.subr.mxu0 0.0
    %2151 = vmatpush1.msra.mxu0 %v144
    %2152 = vmatprep.subr.mxu0 0.0
    %2153 = vmatpush1.msra.mxu0 0.0
    %2154 = vmatprep.subr.mxu0 0.0
    %2155 = vmatpush1.msra.mxu0 0.0
    %2156 = vmatprep.subr.mxu0 0.0
    %2157 = vmatpush1.msra.mxu0 0.0
    %2158 = vmatprep.subr.mxu0 0.0
    %2159 = vmatpush1.msra.mxu0 0.0
    %2160 = vmatprep.subr.mxu0 0.0
    %2161 = vmatpush1.msra.mxu0 0.0
    %2162 = vmatprep.subr.mxu0 0.0
    %2163 = vmatpush1.msra.mxu0 0.0
    %2164 = vmatprep.subr.mxu0 0.0
    %2165 = vmatpush1.msra.mxu0 0.0
    %2166 = vmatprep.subr.mxu0 0.0
    %2167 = vmatpush1.msra.mxu0 0.0
    %2168 = vmatprep.subr.mxu0 0.0
    %2169 = vmatpush1.msra.mxu0 0.0
    %2170 = vmatprep.subr.mxu0 0.0
    %2171 = vmatpush1.msra.mxu0 0.0
    %2172 = vmatprep.subr.mxu0 0.0
    %2173 = vmatpush1.msra.mxu0 0.0
    %2174 = vmatprep.subr.mxu0 0.0
    %2175 = vmatpush1.msra.mxu0 0.0
    %2176 = vmatprep.subr.mxu0 0.0
    %2177 = vmatpush1.msra.mxu0 0.0
    %2178 = vmatprep.subr.mxu0 0.0
    %2179 = vmatpush1.msra.mxu0 0.0
    %2180 = vmatprep.subr.mxu0 0.0
    %2181 = vmatpush1.msra.mxu0 0.0
    %2182 = vmatprep.subr.mxu0 0.0
    %2183 = vmatpush1.msra.mxu0 0.0
    %2184 = vmatprep.subr.mxu0 0.0
    %2185 = vmatpush1.msra.mxu0 0.0
    %2186 = vmatprep.subr.mxu0 0.0
    %2187 = vmatpush1.msra.mxu0 0.0
    %2188 = vmatprep.subr.mxu0 0.0
    %2189 = vmatpush1.msra.mxu0 0.0
    %2190 = vmatprep.subr.mxu0 0.0
    %2191 = vmatpush1.msra.mxu0 0.0
    %2192 = vmatprep.subr.mxu0 0.0
    %2193 = vmatpush1.msra.mxu0 0.0
    %2194 = vmatprep.subr.mxu0 0.0
    %2195 = vmatpush1.msra.mxu0 0.0
    %2196 = vmatprep.subr.mxu0 0.0
    %2197 = vmatpush1.msra.mxu0 0.0
    %2198 = vmatprep.subr.mxu0 0.0
    %2199 = vmatpush1.msra.mxu0 0.0
    %2200 = vmatprep.subr.mxu0 0.0
    %2201 = vmatpush1.msra.mxu0 0.0
    %2202 = vmatprep.subr.mxu0 0.0
    %2203 = vmatpush1.msra.mxu0 0.0
    %2204 = vmatprep.subr.mxu0 0.0
    %2205 = vmatpush1.msra.mxu0 0.0
    %2206 = vmatprep.subr.mxu0 0.0
    %2207 = vmatpush1.msra.mxu0 0.0
    %2208 = vmatprep.mubr.f32.mxu0 0.0
    %2209 = vmatmul.mubr.f32.gmra.mrb[0].mxu0 %v2142
    %v2210 = vpop.f32.mrb[0].mxu0
    %v2211 = vadd.f32 0.0, %v2210
    %v2212 = vpop.f32.mrb[0].mxu0
    %2213 = vdwg.mxu0
    %v2214 = vadd.f32 %v1306, %v2211
    %v2215 = vmul.f32 %v2214, 0.5
    %v2216 = vtanh.pop %v2215
    %v2217 = vmul.f32 %v2216, 0.5
    %v2218 = vadd.f32 %v2217, 0.5
    %2220 = vrot.lane.b32.xlu0 %v2135, 32
    %v2221 = vpop.permute.xlu0 %2220
    %v2223 = vmul.f32 %v2218, %v2221
    %2225 = vrot.lane.b32.xlu0 %v2216, 64
    %v2226 = vpop.permute.xlu0 %2225
    %v2228 = vmul.f32 %v2218, %v2226
    %2230 = vrot.lane.b32.xlu0 %v2228, 32
    %v2231 = vpop.permute.xlu0 %2230
    %v2233 = vadd.f32 %v2223, %v2231
    %v2234 = vtanh.pop %v2233
    %2236 = vrot.lane.b32.xlu0 %v2234, 64
    %v2237 = vpop.permute.xlu0 %2236
    %v2239 = vmul.f32 %v2218, %v2237
    %2240 = vrot.lane.b32.xlu0 %v2128, 96
    %v2241 = vpop.permute.xlu0 %2240
    %v2243 = vsub.f32 %v2239, %v2241
    %2245 = vrot.lane.b32.xlu0 %v2243, 32
    %v2246 = vpop.permute.xlu0 %2245
    %v2248 = vmul.f32 %v120, %v2246
    %v2249 = vadd.f32 %v2128, %v2248
    %v2250 = vsub.f32 %v2233, %v2221
    %2252 = vrot.lane.b32.xlu0 %v2250, 96
    %v2253 = vpop.permute.xlu0 %2252
    %v2255 = vmul.f32 %v120, %v2253
    %v2256 = vadd.f32 %v2135, %v2255
    %2258 = vrot.lane.b32.xlu0 %v2239, 32
    %v2259 = vpop.permute.xlu0 %2258
    %v2261 = vmul.f32 %v120, %v2259
    %vm2262 = vcmask 125952
    %2263 = vst.msk [vmem:[#allocation8] sm:$0xf] %vm2262, %v2249
    %2264 = vst.msk [vmem:[#allocation9] sm:$0xf] %vm2262, %v2256
    %2266 = vrot.lane.b32.xlu0 %v2249, 112
    %v2267 = vpop.permute.xlu0 %2266
    %s2269 = scalar_lea.vmem [#allocation8], 4
    %2270 = vst.msk [vmem:[%s2269] sm:$0xf] %vm2262, %v2267
    %2272 = vrot.lane.b32.xlu0 %v2256, 112
    %v2273 = vpop.permute.xlu0 %2272
    %s2275 = scalar_lea.vmem [#allocation9], 4
    %2276 = vst.msk [vmem:[%s2275] sm:$0xf] %vm2262, %v2273
    %v2277 = vld [vmem:[%s6] sm:$0xff]
    %v2278 = vld [vmem:[%s6 + $0x8] sm:$0xff]
    %v2279 = vld [vmem:[%s6 + $0x10] sm:$0xff]
    %v2280 = vld [vmem:[%s6 + $0x18] sm:$0xff]
    %v2281 = vld [vmem:[#allocation7] sm:$0xff]
    %v2282 = vld [vmem:[#allocation7 + $0x8] sm:$0xff]
    %v2283 = vld [vmem:[#allocation7 + $0x10] sm:$0xff]
    %v2284 = vld [vmem:[#allocation7 + $0x18] sm:$0xff]
    %v2285 = vld [vmem:[%s9] sm:$0x1]
    %v2287 = vlaneseq
    %v2288 = vshrl.u32 %v2287, 7
    %v2289 = vsub.s32 0, %v2288
    %v2290 = vrot.slane %v2285, %v2289
    %v2293 = vsel %vm1307, %v1407, 0
    %2295 = vmatprep.subr.mxu0 0.0
    %2296 = vmatpush1.msra.mxu0 %v2277
    %2297 = vmatprep.subr.mxu0 0.0
    %2298 = vmatpush1.msra.mxu0 %v2278
    %2299 = vmatprep.subr.mxu0 0.0
    %2300 = vmatpush1.msra.mxu0 %v2279
    %2301 = vmatprep.subr.mxu0 0.0
    %2302 = vmatpush1.msra.mxu0 %v2280
    %2303 = vmatprep.subr.mxu0 0.0
    %2304 = vmatpush1.msra.mxu0 0.0
    %2305 = vmatprep.subr.mxu0 0.0
    %2306 = vmatpush1.msra.mxu0 0.0
    %2307 = vmatprep.subr.mxu0 0.0
    %2308 = vmatpush1.msra.mxu0 0.0
    %2309 = vmatprep.subr.mxu0 0.0
    %2310 = vmatpush1.msra.mxu0 0.0
    %2311 = vmatprep.subr.mxu0 0.0
    %2312 = vmatpush1.msra.mxu0 0.0
    %2313 = vmatprep.subr.mxu0 0.0
    %2314 = vmatpush1.msra.mxu0 0.0
    %2315 = vmatprep.subr.mxu0 0.0
    %2316 = vmatpush1.msra.mxu0 0.0
    %2317 = vmatprep.subr.mxu0 0.0
    %2318 = vmatpush1.msra.mxu0 0.0
    %2319 = vmatprep.subr.mxu0 0.0
    %2320 = vmatpush1.msra.mxu0 0.0
    %2321 = vmatprep.subr.mxu0 0.0
    %2322 = vmatpush1.msra.mxu0 0.0
    %2323 = vmatprep.subr.mxu0 0.0
    %2324 = vmatpush1.msra.mxu0 0.0
    %2325 = vmatprep.subr.mxu0 0.0
    %2326 = vmatpush1.msra.mxu0 0.0
    %2327 = vmatprep.subr.mxu0 0.0
    %2328 = vmatpush1.msra.mxu0 0.0
    %2329 = vmatprep.subr.mxu0 0.0
    %2330 = vmatpush1.msra.mxu0 0.0
    %2331 = vmatprep.subr.mxu0 0.0
    %2332 = vmatpush1.msra.mxu0 0.0
    %2333 = vmatprep.subr.mxu0 0.0
    %2334 = vmatpush1.msra.mxu0 0.0
    %2335 = vmatprep.subr.mxu0 0.0
    %2336 = vmatpush1.msra.mxu0 0.0
    %2337 = vmatprep.subr.mxu0 0.0
    %2338 = vmatpush1.msra.mxu0 0.0
    %2339 = vmatprep.subr.mxu0 0.0
    %2340 = vmatpush1.msra.mxu0 0.0
    %2341 = vmatprep.subr.mxu0 0.0
    %2342 = vmatpush1.msra.mxu0 0.0
    %2343 = vmatprep.subr.mxu0 0.0
    %2344 = vmatpush1.msra.mxu0 0.0
    %2345 = vmatprep.subr.mxu0 0.0
    %2346 = vmatpush1.msra.mxu0 0.0
    %2347 = vmatprep.subr.mxu0 0.0
    %2348 = vmatpush1.msra.mxu0 0.0
    %2349 = vmatprep.subr.mxu0 0.0
    %2350 = vmatpush1.msra.mxu0 0.0
    %2351 = vmatprep.subr.mxu0 0.0
    %2352 = vmatpush1.msra.mxu0 0.0
    %2353 = vmatprep.subr.mxu0 0.0
    %2354 = vmatpush1.msra.mxu0 0.0
    %2355 = vmatprep.subr.mxu0 0.0
    %2356 = vmatpush1.msra.mxu0 0.0
    %2357 = vmatprep.subr.mxu0 0.0
    %2358 = vmatpush1.msra.mxu0 0.0
    %2359 = vmatprep.mubr.f32.mxu0 0.0
    %2360 = vmatmul.mubr.f32.gmra.mrb[0].mxu0 %v2293
    %v2361 = vpop.f32.mrb[0].mxu0
    %v2362 = vadd.f32 %v2290, %v2361
    %v2363 = vpop.f32.mrb[0].mxu0
    %2364 = vdwg.mxu0
    %v2365 = vld [vmem:[#allocation5] sm:$0xff]
    %v2366 = vld [vmem:[#allocation5 + $0x8] sm:$0xff]
    %v2367 = vld [vmem:[#allocation5 + $0x10] sm:$0xff]
    %v2368 = vld [vmem:[#allocation5 + $0x18] sm:$0xff]
    %v2370 = vsel %vm1307, %v2261, 0
    %2372 = vmatprep.subr.mxu0 0.0
    %2373 = vmatpush1.msra.mxu0 %v2365
    %2374 = vmatprep.subr.mxu0 0.0
    %2375 = vmatpush1.msra.mxu0 %v2366
    %2376 = vmatprep.subr.mxu0 0.0
    %2377 = vmatpush1.msra.mxu0 %v2367
    %2378 = vmatprep.subr.mxu0 0.0
    %2379 = vmatpush1.msra.mxu0 %v2368
    %2380 = vmatprep.subr.mxu0 0.0
    %2381 = vmatpush1.msra.mxu0 0.0
    %2382 = vmatprep.subr.mxu0 0.0
    %2383 = vmatpush1.msra.mxu0 0.0
    %2384 = vmatprep.subr.mxu0 0.0
    %2385 = vmatpush1.msra.mxu0 0.0
    %2386 = vmatprep.subr.mxu0 0.0
    %2387 = vmatpush1.msra.mxu0 0.0
    %2388 = vmatprep.subr.mxu0 0.0
    %2389 = vmatpush1.msra.mxu0 0.0
    %2390 = vmatprep.subr.mxu0 0.0
    %2391 = vmatpush1.msra.mxu0 0.0
    %2392 = vmatprep.subr.mxu0 0.0
    %2393 = vmatpush1.msra.mxu0 0.0
    %2394 = vmatprep.subr.mxu0 0.0
    %2395 = vmatpush1.msra.mxu0 0.0
    %2396 = vmatprep.subr.mxu0 0.0
    %2397 = vmatpush1.msra.mxu0 0.0
    %2398 = vmatprep.subr.mxu0 0.0
    %2399 = vmatpush1.msra.mxu0 0.0
    %2400 = vmatprep.subr.mxu0 0.0
    %2401 = vmatpush1.msra.mxu0 0.0
    %2402 = vmatprep.subr.mxu0 0.0
    %2403 = vmatpush1.msra.mxu0 0.0
    %2404 = vmatprep.subr.mxu0 0.0
    %2405 = vmatpush1.msra.mxu0 0.0
    %2406 = vmatprep.subr.mxu0 0.0
    %2407 = vmatpush1.msra.mxu0 0.0
    %2408 = vmatprep.subr.mxu0 0.0
    %2409 = vmatpush1.msra.mxu0 0.0
    %2410 = vmatprep.subr.mxu0 0.0
    %2411 = vmatpush1.msra.mxu0 0.0
    %2412 = vmatprep.subr.mxu0 0.0
    %2413 = vmatpush1.msra.mxu0 0.0
    %2414 = vmatprep.subr.mxu0 0.0
    %2415 = vmatpush1.msra.mxu0 0.0
    %2416 = vmatprep.subr.mxu0 0.0
    %2417 = vmatpush1.msra.mxu0 0.0
    %2418 = vmatprep.subr.mxu0 0.0
    %2419 = vmatpush1.msra.mxu0 0.0
    %2420 = vmatprep.subr.mxu0 0.0
    %2421 = vmatpush1.msra.mxu0 0.0
    %2422 = vmatprep.subr.mxu0 0.0
    %2423 = vmatpush1.msra.mxu0 0.0
    %2424 = vmatprep.subr.mxu0 0.0
    %2425 = vmatpush1.msra.mxu0 0.0
    %2426 = vmatprep.subr.mxu0 0.0
    %2427 = vmatpush1.msra.mxu0 0.0
    %2428 = vmatprep.subr.mxu0 0.0
    %2429 = vmatpush1.msra.mxu0 0.0
    %2430 = vmatprep.subr.mxu0 0.0
    %2431 = vmatpush1.msra.mxu0 0.0
    %2432 = vmatprep.subr.mxu0 0.0
    %2433 = vmatpush1.msra.mxu0 0.0
    %2434 = vmatprep.subr.mxu0 0.0
    %2435 = vmatpush1.msra.mxu0 0.0
    %2436 = vmatprep.mubr.f32.mxu0 0.0
    %2437 = vmatmul.mubr.f32.gmra.mrb[0].mxu0 %v2370
    %v2438 = vpop.f32.mrb[0].mxu0
    %v2439 = vadd.f32 0.0, %v2438
    %v2440 = vpop.f32.mrb[0].mxu0
    %2441 = vdwg.mxu0
    %v2442 = vadd.f32 %v2362, %v2439
    %v2444 = vsel %vm1307, %v1535, 0
    %2446 = vmatprep.subr.mxu0 0.0
    %2447 = vmatpush1.msra.mxu0 %v2277
    %2448 = vmatprep.subr.mxu0 0.0
    %2449 = vmatpush1.msra.mxu0 %v2278
    %2450 = vmatprep.subr.mxu0 0.0
    %2451 = vmatpush1.msra.mxu0 %v2279
    %2452 = vmatprep.subr.mxu0 0.0
    %2453 = vmatpush1.msra.mxu0 %v2280
    %2454 = vmatprep.subr.mxu0 0.0
    %2455 = vmatpush1.msra.mxu0 0.0
    %2456 = vmatprep.subr.mxu0 0.0
    %2457 = vmatpush1.msra.mxu0 0.0
    %2458 = vmatprep.subr.mxu0 0.0
    %2459 = vmatpush1.msra.mxu0 0.0
    %2460 = vmatprep.subr.mxu0 0.0
    %2461 = vmatpush1.msra.mxu0 0.0
    %2462 = vmatprep.subr.mxu0 0.0
    %2463 = vmatpush1.msra.mxu0 0.0
    %2464 = vmatprep.subr.mxu0 0.0
    %2465 = vmatpush1.msra.mxu0 0.0
    %2466 = vmatprep.subr.mxu0 0.0
    %2467 = vmatpush1.msra.mxu0 0.0
    %2468 = vmatprep.subr.mxu0 0.0
    %2469 = vmatpush1.msra.mxu0 0.0
    %2470 = vmatprep.subr.mxu0 0.0
    %2471 = vmatpush1.msra.mxu0 0.0
    %2472 = vmatprep.subr.mxu0 0.0
    %2473 = vmatpush1.msra.mxu0 0.0
    %2474 = vmatprep.subr.mxu0 0.0
    %2475 = vmatpush1.msra.mxu0 0.0
    %2476 = vmatprep.subr.mxu0 0.0
    %2477 = vmatpush1.msra.mxu0 0.0
    %2478 = vmatprep.subr.mxu0 0.0
    %2479 = vmatpush1.msra.mxu0 0.0
    %2480 = vmatprep.subr.mxu0 0.0
    %2481 = vmatpush1.msra.mxu0 0.0
    %2482 = vmatprep.subr.mxu0 0.0
    %2483 = vmatpush1.msra.mxu0 0.0
    %2484 = vmatprep.subr.mxu0 0.0
    %2485 = vmatpush1.msra.mxu0 0.0
    %2486 = vmatprep.subr.mxu0 0.0
    %2487 = vmatpush1.msra.mxu0 0.0
    %2488 = vmatprep.subr.mxu0 0.0
    %2489 = vmatpush1.msra.mxu0 0.0
    %2490 = vmatprep.subr.mxu0 0.0
    %2491 = vmatpush1.msra.mxu0 0.0
    %2492 = vmatprep.subr.mxu0 0.0
    %2493 = vmatpush1.msra.mxu0 0.0
    %2494 = vmatprep.subr.mxu0 0.0
    %2495 = vmatpush1.msra.mxu0 0.0
    %2496 = vmatprep.subr.mxu0 0.0
    %2497 = vmatpush1.msra.mxu0 0.0
    %2498 = vmatprep.subr.mxu0 0.0
    %2499 = vmatpush1.msra.mxu0 0.0
    %2500 = vmatprep.subr.mxu0 0.0
    %2501 = vmatpush1.msra.mxu0 0.0
    %2502 = vmatprep.subr.mxu0 0.0
    %2503 = vmatpush1.msra.mxu0 0.0
    %2504 = vmatprep.subr.mxu0 0.0
    %2505 = vmatpush1.msra.mxu0 0.0
    %2506 = vmatprep.subr.mxu0 0.0
    %2507 = vmatpush1.msra.mxu0 0.0
    %2508 = vmatprep.subr.mxu0 0.0
    %2509 = vmatpush1.msra.mxu0 0.0
    %2510 = vmatprep.mubr.f32.mxu0 0.0
    %2511 = vmatmul.mubr.f32.gmra.mrb[0].mxu0 %v2444
    %v2512 = vpop.f32.mrb[0].mxu0
    %v2513 = vadd.f32 %v2290, %v2512
    %v2514 = vpop.f32.mrb[0].mxu0
    %2515 = vdwg.mxu0
    %v2517 = vsel %vm1307, %v2140, 0
    %2519 = vmatprep.subr.mxu0 0.0
    %2520 = vmatpush1.msra.mxu0 %v2365
    %2521 = vmatprep.subr.mxu0 0.0
    %2522 = vmatpush1.msra.mxu0 %v2366
    %2523 = vmatprep.subr.mxu0 0.0
    %2524 = vmatpush1.msra.mxu0 %v2367
    %2525 = vmatprep.subr.mxu0 0.0
    %2526 = vmatpush1.msra.mxu0 %v2368
    %2527 = vmatprep.subr.mxu0 0.0
    %2528 = vmatpush1.msra.mxu0 0.0
    %2529 = vmatprep.subr.mxu0 0.0
    %2530 = vmatpush1.msra.mxu0 0.0
    %2531 = vmatprep.subr.mxu0 0.0
    %2532 = vmatpush1.msra.mxu0 0.0
    %2533 = vmatprep.subr.mxu0 0.0
    %2534 = vmatpush1.msra.mxu0 0.0
    %2535 = vmatprep.subr.mxu0 0.0
    %2536 = vmatpush1.msra.mxu0 0.0
    %2537 = vmatprep.subr.mxu0 0.0
    %2538 = vmatpush1.msra.mxu0 0.0
    %2539 = vmatprep.subr.mxu0 0.0
    %2540 = vmatpush1.msra.mxu0 0.0
    %2541 = vmatprep.subr.mxu0 0.0
    %2542 = vmatpush1.msra.mxu0 0.0
    %2543 = vmatprep.subr.mxu0 0.0
    %2544 = vmatpush1.msra.mxu0 0.0
    %2545 = vmatprep.subr.mxu0 0.0
    %2546 = vmatpush1.msra.mxu0 0.0
    %2547 = vmatprep.subr.mxu0 0.0
    %2548 = vmatpush1.msra.mxu0 0.0
    %2549 = vmatprep.subr.mxu0 0.0
    %2550 = vmatpush1.msra.mxu0 0.0
    %2551 = vmatprep.subr.mxu0 0.0
    %2552 = vmatpush1.msra.mxu0 0.0
    %2553 = vmatprep.subr.mxu0 0.0
    %2554 = vmatpush1.msra.mxu0 0.0
    %2555 = vmatprep.subr.mxu0 0.0
    %2556 = vmatpush1.msra.mxu0 0.0
    %2557 = vmatprep.subr.mxu0 0.0
    %2558 = vmatpush1.msra.mxu0 0.0
    %2559 = vmatprep.subr.mxu0 0.0
    %2560 = vmatpush1.msra.mxu0 0.0
    %2561 = vmatprep.subr.mxu0 0.0
    %2562 = vmatpush1.msra.mxu0 0.0
    %2563 = vmatprep.subr.mxu0 0.0
    %2564 = vmatpush1.msra.mxu0 0.0
    %2565 = vmatprep.subr.mxu0 0.0
    %2566 = vmatpush1.msra.mxu0 0.0
    %2567 = vmatprep.subr.mxu0 0.0
    %2568 = vmatpush1.msra.mxu0 0.0
    %2569 = vmatprep.subr.mxu0 0.0
    %2570 = vmatpush1.msra.mxu0 0.0
    %2571 = vmatprep.subr.mxu0 0.0
    %2572 = vmatpush1.msra.mxu0 0.0
    %2573 = vmatprep.subr.mxu0 0.0
    %2574 = vmatpush1.msra.mxu0 0.0
    %2575 = vmatprep.subr.mxu0 0.0
    %2576 = vmatpush1.msra.mxu0 0.0
    %2577 = vmatprep.subr.mxu0 0.0
    %2578 = vmatpush1.msra.mxu0 0.0
    %2579 = vmatprep.subr.mxu0 0.0
    %2580 = vmatpush1.msra.mxu0 0.0
    %2581 = vmatprep.subr.mxu0 0.0
    %2582 = vmatpush1.msra.mxu0 0.0
    %2583 = vmatprep.mubr.f32.mxu0 0.0
    %2584 = vmatmul.mubr.f32.gmra.mrb[0].mxu0 %v2517
    %v2585 = vpop.f32.mrb[0].mxu0
    %v2586 = vadd.f32 0.0, %v2585
    %v2587 = vpop.f32.mrb[0].mxu0
    %2588 = vdwg.mxu0
    %v2589 = vadd.f32 %v2513, %v2586
    %v2591 = vsel %vm1307, %v1656, 0
    %2593 = vmatprep.subr.mxu0 0.0
    %2594 = vmatpush1.msra.mxu0 %v2277
    %2595 = vmatprep.subr.mxu0 0.0
    %2596 = vmatpush1.msra.mxu0 %v2278
    %2597 = vmatprep.subr.mxu0 0.0
    %2598 = vmatpush1.msra.mxu0 %v2279
    %2599 = vmatprep.subr.mxu0 0.0
    %2600 = vmatpush1.msra.mxu0 %v2280
    %2601 = vmatprep.subr.mxu0 0.0
    %2602 = vmatpush1.msra.mxu0 0.0
    %2603 = vmatprep.subr.mxu0 0.0
    %2604 = vmatpush1.msra.mxu0 0.0
    %2605 = vmatprep.subr.mxu0 0.0
    %2606 = vmatpush1.msra.mxu0 0.0
    %2607 = vmatprep.subr.mxu0 0.0
    %2608 = vmatpush1.msra.mxu0 0.0
    %2609 = vmatprep.subr.mxu0 0.0
    %2610 = vmatpush1.msra.mxu0 0.0
    %2611 = vmatprep.subr.mxu0 0.0
    %2612 = vmatpush1.msra.mxu0 0.0
    %2613 = vmatprep.subr.mxu0 0.0
    %2614 = vmatpush1.msra.mxu0 0.0
    %2615 = vmatprep.subr.mxu0 0.0
    %2616 = vmatpush1.msra.mxu0 0.0
    %2617 = vmatprep.subr.mxu0 0.0
    %2618 = vmatpush1.msra.mxu0 0.0
    %2619 = vmatprep.subr.mxu0 0.0
    %2620 = vmatpush1.msra.mxu0 0.0
    %2621 = vmatprep.subr.mxu0 0.0
    %2622 = vmatpush1.msra.mxu0 0.0
    %2623 = vmatprep.subr.mxu0 0.0
    %2624 = vmatpush1.msra.mxu0 0.0
    %2625 = vmatprep.subr.mxu0 0.0
    %2626 = vmatpush1.msra.mxu0 0.0
    %2627 = vmatprep.subr.mxu0 0.0
    %2628 = vmatpush1.msra.mxu0 0.0
    %2629 = vmatprep.subr.mxu0 0.0
    %2630 = vmatpush1.msra.mxu0 0.0
    %2631 = vmatprep.subr.mxu0 0.0
    %2632 = vmatpush1.msra.mxu0 0.0
    %2633 = vmatprep.subr.mxu0 0.0
    %2634 = vmatpush1.msra.mxu0 0.0
    %2635 = vmatprep.subr.mxu0 0.0
    %2636 = vmatpush1.msra.mxu0 0.0
    %2637 = vmatprep.subr.mxu0 0.0
    %2638 = vmatpush1.msra.mxu0 0.0
    %2639 = vmatprep.subr.mxu0 0.0
    %2640 = vmatpush1.msra.mxu0 0.0
    %2641 = vmatprep.subr.mxu0 0.0
    %2642 = vmatpush1.msra.mxu0 0.0
    %2643 = vmatprep.subr.mxu0 0.0
    %2644 = vmatpush1.msra.mxu0 0.0
    %2645 = vmatprep.subr.mxu0 0.0
    %2646 = vmatpush1.msra.mxu0 0.0
    %2647 = vmatprep.subr.mxu0 0.0
    %2648 = vmatpush1.msra.mxu0 0.0
    %2649 = vmatprep.subr.mxu0 0.0
    %2650 = vmatpush1.msra.mxu0 0.0
    %2651 = vmatprep.subr.mxu0 0.0
    %2652 = vmatpush1.msra.mxu0 0.0
    %2653 = vmatprep.subr.mxu0 0.0
    %2654 = vmatpush1.msra.mxu0 0.0
    %2655 = vmatprep.subr.mxu0 0.0
    %2656 = vmatpush1.msra.mxu0 0.0
    %2657 = vmatprep.mubr.f32.mxu0 0.0
    %2658 = vmatmul.mubr.f32.gmra.mrb[0].mxu0 %v2591
    %v2659 = vpop.f32.mrb[0].mxu0
    %v2660 = vadd.f32 %v2290, %v2659
    %v2661 = vpop.f32.mrb[0].mxu0
    %2662 = vdwg.mxu0
    %v2664 = vsel %vm1307, %v2019, 0
    %2666 = vmatprep.subr.mxu0 0.0
    %2667 = vmatpush1.msra.mxu0 %v2365
    %2668 = vmatprep.subr.mxu0 0.0
    %2669 = vmatpush1.msra.mxu0 %v2366
    %2670 = vmatprep.subr.mxu0 0.0
    %2671 = vmatpush1.msra.mxu0 %v2367
    %2672 = vmatprep.subr.mxu0 0.0
    %2673 = vmatpush1.msra.mxu0 %v2368
    %2674 = vmatprep.subr.mxu0 0.0
    %2675 = vmatpush1.msra.mxu0 0.0
    %2676 = vmatprep.subr.mxu0 0.0
    %2677 = vmatpush1.msra.mxu0 0.0
    %2678 = vmatprep.subr.mxu0 0.0
    %2679 = vmatpush1.msra.mxu0 0.0
    %2680 = vmatprep.subr.mxu0 0.0
    %2681 = vmatpush1.msra.mxu0 0.0
    %2682 = vmatprep.subr.mxu0 0.0
    %2683 = vmatpush1.msra.mxu0 0.0
    %2684 = vmatprep.subr.mxu0 0.0
    %2685 = vmatpush1.msra.mxu0 0.0
    %2686 = vmatprep.subr.mxu0 0.0
    %2687 = vmatpush1.msra.mxu0 0.0
    %2688 = vmatprep.subr.mxu0 0.0
    %2689 = vmatpush1.msra.mxu0 0.0
    %2690 = vmatprep.subr.mxu0 0.0
    %2691 = vmatpush1.msra.mxu0 0.0
    %2692 = vmatprep.subr.mxu0 0.0
    %2693 = vmatpush1.msra.mxu0 0.0
    %2694 = vmatprep.subr.mxu0 0.0
    %2695 = vmatpush1.msra.mxu0 0.0
    %2696 = vmatprep.subr.mxu0 0.0
    %2697 = vmatpush1.msra.mxu0 0.0
    %2698 = vmatprep.subr.mxu0 0.0
    %2699 = vmatpush1.msra.mxu0 0.0
    %2700 = vmatprep.subr.mxu0 0.0
    %2701 = vmatpush1.msra.mxu0 0.0
    %2702 = vmatprep.subr.mxu0 0.0
    %2703 = vmatpush1.msra.mxu0 0.0
    %2704 = vmatprep.subr.mxu0 0.0
    %2705 = vmatpush1.msra.mxu0 0.0
    %2706 = vmatprep.subr.mxu0 0.0
    %2707 = vmatpush1.msra.mxu0 0.0
    %2708 = vmatprep.subr.mxu0 0.0
    %2709 = vmatpush1.msra.mxu0 0.0
    %2710 = vmatprep.subr.mxu0 0.0
    %2711 = vmatpush1.msra.mxu0 0.0
    %2712 = vmatprep.subr.mxu0 0.0
    %2713 = vmatpush1.msra.mxu0 0.0
    %2714 = vmatprep.subr.mxu0 0.0
    %2715 = vmatpush1.msra.mxu0 0.0
    %2716 = vmatprep.subr.mxu0 0.0
    %2717 = vmatpush1.msra.mxu0 0.0
    %2718 = vmatprep.subr.mxu0 0.0
    %2719 = vmatpush1.msra.mxu0 0.0
    %2720 = vmatprep.subr.mxu0 0.0
    %2721 = vmatpush1.msra.mxu0 0.0
    %2722 = vmatprep.subr.mxu0 0.0
    %2723 = vmatpush1.msra.mxu0 0.0
    %2724 = vmatprep.subr.mxu0 0.0
    %2725 = vmatpush1.msra.mxu0 0.0
    %2726 = vmatprep.subr.mxu0 0.0
    %2727 = vmatpush1.msra.mxu0 0.0
    %2728 = vmatprep.subr.mxu0 0.0
    %2729 = vmatpush1.msra.mxu0 0.0
    %2730 = vmatprep.mubr.f32.mxu0 0.0
    %2731 = vmatmul.mubr.f32.gmra.mrb[0].mxu0 %v2664
    %v2732 = vpop.f32.mrb[0].mxu0
    %v2733 = vadd.f32 0.0, %v2732
    %v2734 = vpop.f32.mrb[0].mxu0
    %2735 = vdwg.mxu0
    %v2736 = vadd.f32 %v2660, %v2733
    %v2738 = vsel %vm1307, %v1777, 0
    %2740 = vmatprep.subr.mxu0 0.0
    %2741 = vmatpush1.msra.mxu0 %v2277
    %2742 = vmatprep.subr.mxu0 0.0
    %2743 = vmatpush1.msra.mxu0 %v2278
    %2744 = vmatprep.subr.mxu0 0.0
    %2745 = vmatpush1.msra.mxu0 %v2279
    %2746 = vmatprep.subr.mxu0 0.0
    %2747 = vmatpush1.msra.mxu0 %v2280
    %2748 = vmatprep.subr.mxu0 0.0
    %2749 = vmatpush1.msra.mxu0 0.0
    %2750 = vmatprep.subr.mxu0 0.0
    %2751 = vmatpush1.msra.mxu0 0.0
    %2752 = vmatprep.subr.mxu0 0.0
    %2753 = vmatpush1.msra.mxu0 0.0
    %2754 = vmatprep.subr.mxu0 0.0
    %2755 = vmatpush1.msra.mxu0 0.0
    %2756 = vmatprep.subr.mxu0 0.0
    %2757 = vmatpush1.msra.mxu0 0.0
    %2758 = vmatprep.subr.mxu0 0.0
    %2759 = vmatpush1.msra.mxu0 0.0
    %2760 = vmatprep.subr.mxu0 0.0
    %2761 = vmatpush1.msra.mxu0 0.0
    %2762 = vmatprep.subr.mxu0 0.0
    %2763 = vmatpush1.msra.mxu0 0.0
    %2764 = vmatprep.subr.mxu0 0.0
    %2765 = vmatpush1.msra.mxu0 0.0
    %2766 = vmatprep.subr.mxu0 0.0
    %2767 = vmatpush1.msra.mxu0 0.0
    %2768 = vmatprep.subr.mxu0 0.0
    %2769 = vmatpush1.msra.mxu0 0.0
    %2770 = vmatprep.subr.mxu0 0.0
    %2771 = vmatpush1.msra.mxu0 0.0
    %2772 = vmatprep.subr.mxu0 0.0
    %2773 = vmatpush1.msra.mxu0 0.0
    %2774 = vmatprep.subr.mxu0 0.0
    %2775 = vmatpush1.msra.mxu0 0.0
    %2776 = vmatprep.subr.mxu0 0.0
    %2777 = vmatpush1.msra.mxu0 0.0
    %2778 = vmatprep.subr.mxu0 0.0
    %2779 = vmatpush1.msra.mxu0 0.0
    %2780 = vmatprep.subr.mxu0 0.0
    %2781 = vmatpush1.msra.mxu0 0.0
    %2782 = vmatprep.subr.mxu0 0.0
    %2783 = vmatpush1.msra.mxu0 0.0
    %2784 = vmatprep.subr.mxu0 0.0
    %2785 = vmatpush1.msra.mxu0 0.0
    %2786 = vmatprep.subr.mxu0 0.0
    %2787 = vmatpush1.msra.mxu0 0.0
    %2788 = vmatprep.subr.mxu0 0.0
    %2789 = vmatpush1.msra.mxu0 0.0
    %2790 = vmatprep.subr.mxu0 0.0
    %2791 = vmatpush1.msra.mxu0 0.0
    %2792 = vmatprep.subr.mxu0 0.0
    %2793 = vmatpush1.msra.mxu0 0.0
    %2794 = vmatprep.subr.mxu0 0.0
    %2795 = vmatpush1.msra.mxu0 0.0
    %2796 = vmatprep.subr.mxu0 0.0
    %2797 = vmatpush1.msra.mxu0 0.0
    %2798 = vmatprep.subr.mxu0 0.0
    %2799 = vmatpush1.msra.mxu0 0.0
    %2800 = vmatprep.subr.mxu0 0.0
    %2801 = vmatpush1.msra.mxu0 0.0
    %2802 = vmatprep.subr.mxu0 0.0
    %2803 = vmatpush1.msra.mxu0 0.0
    %2804 = vmatprep.mubr.f32.mxu0 0.0
    %2805 = vmatmul.mubr.f32.gmra.mrb[0].mxu0 %v2738
    %v2806 = vpop.f32.mrb[0].mxu0
    %v2807 = vadd.f32 %v2290, %v2806
    %v2808 = vpop.f32.mrb[0].mxu0
    %2809 = vdwg.mxu0
    %v2811 = vsel %vm1307, %v1898, 0
    %2813 = vmatprep.subr.mxu0 0.0
    %2814 = vmatpush1.msra.mxu0 %v2365
    %2815 = vmatprep.subr.mxu0 0.0
    %2816 = vmatpush1.msra.mxu0 %v2366
    %2817 = vmatprep.subr.mxu0 0.0
    %2818 = vmatpush1.msra.mxu0 %v2367
    %2819 = vmatprep.subr.mxu0 0.0
    %2820 = vmatpush1.msra.mxu0 %v2368
    %2821 = vmatprep.subr.mxu0 0.0
    %2822 = vmatpush1.msra.mxu0 0.0
    %2823 = vmatprep.subr.mxu0 0.0
    %2824 = vmatpush1.msra.mxu0 0.0
    %2825 = vmatprep.subr.mxu0 0.0
    %2826 = vmatpush1.msra.mxu0 0.0
    %2827 = vmatprep.subr.mxu0 0.0
    %2828 = vmatpush1.msra.mxu0 0.0
    %2829 = vmatprep.subr.mxu0 0.0
    %2830 = vmatpush1.msra.mxu0 0.0
    %2831 = vmatprep.subr.mxu0 0.0
    %2832 = vmatpush1.msra.mxu0 0.0
    %2833 = vmatprep.subr.mxu0 0.0
    %2834 = vmatpush1.msra.mxu0 0.0
    %2835 = vmatprep.subr.mxu0 0.0
    %2836 = vmatpush1.msra.mxu0 0.0
    %2837 = vmatprep.subr.mxu0 0.0
    %2838 = vmatpush1.msra.mxu0 0.0
    %2839 = vmatprep.subr.mxu0 0.0
    %2840 = vmatpush1.msra.mxu0 0.0
    %2841 = vmatprep.subr.mxu0 0.0
    %2842 = vmatpush1.msra.mxu0 0.0
    %2843 = vmatprep.subr.mxu0 0.0
    %2844 = vmatpush1.msra.mxu0 0.0
    %2845 = vmatprep.subr.mxu0 0.0
    %2846 = vmatpush1.msra.mxu0 0.0
    %2847 = vmatprep.subr.mxu0 0.0
    %2848 = vmatpush1.msra.mxu0 0.0
    %2849 = vmatprep.subr.mxu0 0.0
    %2850 = vmatpush1.msra.mxu0 0.0
    %2851 = vmatprep.subr.mxu0 0.0
    %2852 = vmatpush1.msra.mxu0 0.0
    %2853 = vmatprep.subr.mxu0 0.0
    %2854 = vmatpush1.msra.mxu0 0.0
    %2855 = vmatprep.subr.mxu0 0.0
    %2856 = vmatpush1.msra.mxu0 0.0
    %2857 = vmatprep.subr.mxu0 0.0
    %2858 = vmatpush1.msra.mxu0 0.0
    %2859 = vmatprep.subr.mxu0 0.0
    %2860 = vmatpush1.msra.mxu0 0.0
    %2861 = vmatprep.subr.mxu0 0.0
    %2862 = vmatpush1.msra.mxu0 0.0
    %2863 = vmatprep.subr.mxu0 0.0
    %2864 = vmatpush1.msra.mxu0 0.0
    %2865 = vmatprep.subr.mxu0 0.0
    %2866 = vmatpush1.msra.mxu0 0.0
    %2867 = vmatprep.subr.mxu0 0.0
    %2868 = vmatpush1.msra.mxu0 0.0
    %2869 = vmatprep.subr.mxu0 0.0
    %2870 = vmatpush1.msra.mxu0 0.0
    %2871 = vmatprep.subr.mxu0 0.0
    %2872 = vmatpush1.msra.mxu0 0.0
    %2873 = vmatprep.subr.mxu0 0.0
    %2874 = vmatpush1.msra.mxu0 0.0
    %2875 = vmatprep.subr.mxu0 0.0
    %2876 = vmatpush1.msra.mxu0 0.0
    %2877 = vmatprep.mubr.f32.mxu0 0.0
    %2878 = vmatmul.mubr.f32.gmra.mrb[0].mxu0 %v2811
    %v2879 = vpop.f32.mrb[0].mxu0
    %v2880 = vadd.f32 0.0, %v2879
    %v2881 = vpop.f32.mrb[0].mxu0
    %2882 = vdwg.mxu0
    %v2883 = vadd.f32 %v2807, %v2880
    %2884 = vmatprep.subr.mxu0 0.0
    %2885 = vmatpush1.msra.mxu0 %v2277
    %2886 = vmatprep.subr.mxu0 0.0
    %2887 = vmatpush1.msra.mxu0 %v2278
    %2888 = vmatprep.subr.mxu0 0.0
    %2889 = vmatpush1.msra.mxu0 %v2279
    %2890 = vmatprep.subr.mxu0 0.0
    %2891 = vmatpush1.msra.mxu0 %v2280
    %2892 = vmatprep.subr.mxu0 0.0
    %2893 = vmatpush1.msra.mxu0 0.0
    %2894 = vmatprep.subr.mxu0 0.0
    %2895 = vmatpush1.msra.mxu0 0.0
    %2896 = vmatprep.subr.mxu0 0.0
    %2897 = vmatpush1.msra.mxu0 0.0
    %2898 = vmatprep.subr.mxu0 0.0
    %2899 = vmatpush1.msra.mxu0 0.0
    %2900 = vmatprep.subr.mxu0 0.0
    %2901 = vmatpush1.msra.mxu0 0.0
    %2902 = vmatprep.subr.mxu0 0.0
    %2903 = vmatpush1.msra.mxu0 0.0
    %2904 = vmatprep.subr.mxu0 0.0
    %2905 = vmatpush1.msra.mxu0 0.0
    %2906 = vmatprep.subr.mxu0 0.0
    %2907 = vmatpush1.msra.mxu0 0.0
    %2908 = vmatprep.subr.mxu0 0.0
    %2909 = vmatpush1.msra.mxu0 0.0
    %2910 = vmatprep.subr.mxu0 0.0
    %2911 = vmatpush1.msra.mxu0 0.0
    %2912 = vmatprep.subr.mxu0 0.0
    %2913 = vmatpush1.msra.mxu0 0.0
    %2914 = vmatprep.subr.mxu0 0.0
    %2915 = vmatpush1.msra.mxu0 0.0
    %2916 = vmatprep.subr.mxu0 0.0
    %2917 = vmatpush1.msra.mxu0 0.0
    %2918 = vmatprep.subr.mxu0 0.0
    %2919 = vmatpush1.msra.mxu0 0.0
    %2920 = vmatprep.subr.mxu0 0.0
    %2921 = vmatpush1.msra.mxu0 0.0
    %2922 = vmatprep.subr.mxu0 0.0
    %2923 = vmatpush1.msra.mxu0 0.0
    %2924 = vmatprep.subr.mxu0 0.0
    %2925 = vmatpush1.msra.mxu0 0.0
    %2926 = vmatprep.subr.mxu0 0.0
    %2927 = vmatpush1.msra.mxu0 0.0
    %2928 = vmatprep.subr.mxu0 0.0
    %2929 = vmatpush1.msra.mxu0 0.0
    %2930 = vmatprep.subr.mxu0 0.0
    %2931 = vmatpush1.msra.mxu0 0.0
    %2932 = vmatprep.subr.mxu0 0.0
    %2933 = vmatpush1.msra.mxu0 0.0
    %2934 = vmatprep.subr.mxu0 0.0
    %2935 = vmatpush1.msra.mxu0 0.0
    %2936 = vmatprep.subr.mxu0 0.0
    %2937 = vmatpush1.msra.mxu0 0.0
    %2938 = vmatprep.subr.mxu0 0.0
    %2939 = vmatpush1.msra.mxu0 0.0
    %2940 = vmatprep.subr.mxu0 0.0
    %2941 = vmatpush1.msra.mxu0 0.0
    %2942 = vmatprep.subr.mxu0 0.0
    %2943 = vmatpush1.msra.mxu0 0.0
    %2944 = vmatprep.subr.mxu0 0.0
    %2945 = vmatpush1.msra.mxu0 0.0
    %2946 = vmatprep.subr.mxu0 0.0
    %2947 = vmatpush1.msra.mxu0 0.0
    %2948 = vmatprep.mubr.f32.mxu0 0.0
    %2949 = vmatmul.mubr.f32.gmra.mrb[0].mxu0 %v2811
    %v2950 = vpop.f32.mrb[0].mxu0
    %v2951 = vadd.f32 %v2290, %v2950
    %v2952 = vpop.f32.mrb[0].mxu0
    %2953 = vdwg.mxu0
    %2954 = vmatprep.subr.mxu0 0.0
    %2955 = vmatpush1.msra.mxu0 %v2365
    %2956 = vmatprep.subr.mxu0 0.0
    %2957 = vmatpush1.msra.mxu0 %v2366
    %2958 = vmatprep.subr.mxu0 0.0
    %2959 = vmatpush1.msra.mxu0 %v2367
    %2960 = vmatprep.subr.mxu0 0.0
    %2961 = vmatpush1.msra.mxu0 %v2368
    %2962 = vmatprep.subr.mxu0 0.0
    %2963 = vmatpush1.msra.mxu0 0.0
    %2964 = vmatprep.subr.mxu0 0.0
    %2965 = vmatpush1.msra.mxu0 0.0
    %2966 = vmatprep.subr.mxu0 0.0
    %2967 = vmatpush1.msra.mxu0 0.0
    %2968 = vmatprep.subr.mxu0 0.0
    %2969 = vmatpush1.msra.mxu0 0.0
    %2970 = vmatprep.subr.mxu0 0.0
    %2971 = vmatpush1.msra.mxu0 0.0
    %2972 = vmatprep.subr.mxu0 0.0
    %2973 = vmatpush1.msra.mxu0 0.0
    %2974 = vmatprep.subr.mxu0 0.0
    %2975 = vmatpush1.msra.mxu0 0.0
    %2976 = vmatprep.subr.mxu0 0.0
    %2977 = vmatpush1.msra.mxu0 0.0
    %2978 = vmatprep.subr.mxu0 0.0
    %2979 = vmatpush1.msra.mxu0 0.0
    %2980 = vmatprep.subr.mxu0 0.0
    %2981 = vmatpush1.msra.mxu0 0.0
    %2982 = vmatprep.subr.mxu0 0.0
    %2983 = vmatpush1.msra.mxu0 0.0
    %2984 = vmatprep.subr.mxu0 0.0
    %2985 = vmatpush1.msra.mxu0 0.0
    %2986 = vmatprep.subr.mxu0 0.0
    %2987 = vmatpush1.msra.mxu0 0.0
    %2988 = vmatprep.subr.mxu0 0.0
    %2989 = vmatpush1.msra.mxu0 0.0
    %2990 = vmatprep.subr.mxu0 0.0
    %2991 = vmatpush1.msra.mxu0 0.0
    %2992 = vmatprep.subr.mxu0 0.0
    %2993 = vmatpush1.msra.mxu0 0.0
    %2994 = vmatprep.subr.mxu0 0.0
    %2995 = vmatpush1.msra.mxu0 0.0
    %2996 = vmatprep.subr.mxu0 0.0
    %2997 = vmatpush1.msra.mxu0 0.0
    %2998 = vmatprep.subr.mxu0 0.0
    %2999 = vmatpush1.msra.mxu0 0.0
    %3000 = vmatprep.subr.mxu0 0.0
    %3001 = vmatpush1.msra.mxu0 0.0
    %3002 = vmatprep.subr.mxu0 0.0
    %3003 = vmatpush1.msra.mxu0 0.0
    %3004 = vmatprep.subr.mxu0 0.0
    %3005 = vmatpush1.msra.mxu0 0.0
    %3006 = vmatprep.subr.mxu0 0.0
    %3007 = vmatpush1.msra.mxu0 0.0
    %3008 = vmatprep.subr.mxu0 0.0
    %3009 = vmatpush1.msra.mxu0 0.0
    %3010 = vmatprep.subr.mxu0 0.0
    %3011 = vmatpush1.msra.mxu0 0.0
    %3012 = vmatprep.subr.mxu0 0.0
    %3013 = vmatpush1.msra.mxu0 0.0
    %3014 = vmatprep.subr.mxu0 0.0
    %3015 = vmatpush1.msra.mxu0 0.0
    %3016 = vmatprep.subr.mxu0 0.0
    %3017 = vmatpush1.msra.mxu0 0.0
    %3018 = vmatprep.mubr.f32.mxu0 0.0
    %3019 = vmatmul.mubr.f32.gmra.mrb[0].mxu0 %v2738
    %v3020 = vpop.f32.mrb[0].mxu0
    %v3021 = vadd.f32 0.0, %v3020
    %v3022 = vpop.f32.mrb[0].mxu0
    %3023 = vdwg.mxu0
    %v3024 = vadd.f32 %v2951, %v3021
    %3025 = vmatprep.subr.mxu0 0.0
    %3026 = vmatpush1.msra.mxu0 %v2277
    %3027 = vmatprep.subr.mxu0 0.0
    %3028 = vmatpush1.msra.mxu0 %v2278
    %3029 = vmatprep.subr.mxu0 0.0
    %3030 = vmatpush1.msra.mxu0 %v2279
    %3031 = vmatprep.subr.mxu0 0.0
    %3032 = vmatpush1.msra.mxu0 %v2280
    %3033 = vmatprep.subr.mxu0 0.0
    %3034 = vmatpush1.msra.mxu0 0.0
    %3035 = vmatprep.subr.mxu0 0.0
    %3036 = vmatpush1.msra.mxu0 0.0
    %3037 = vmatprep.subr.mxu0 0.0
    %3038 = vmatpush1.msra.mxu0 0.0
    %3039 = vmatprep.subr.mxu0 0.0
    %3040 = vmatpush1.msra.mxu0 0.0
    %3041 = vmatprep.subr.mxu0 0.0
    %3042 = vmatpush1.msra.mxu0 0.0
    %3043 = vmatprep.subr.mxu0 0.0
    %3044 = vmatpush1.msra.mxu0 0.0
    %3045 = vmatprep.subr.mxu0 0.0
    %3046 = vmatpush1.msra.mxu0 0.0
    %3047 = vmatprep.subr.mxu0 0.0
    %3048 = vmatpush1.msra.mxu0 0.0
    %3049 = vmatprep.subr.mxu0 0.0
    %3050 = vmatpush1.msra.mxu0 0.0
    %3051 = vmatprep.subr.mxu0 0.0
    %3052 = vmatpush1.msra.mxu0 0.0
    %3053 = vmatprep.subr.mxu0 0.0
    %3054 = vmatpush1.msra.mxu0 0.0
    %3055 = vmatprep.subr.mxu0 0.0
    %3056 = vmatpush1.msra.mxu0 0.0
    %3057 = vmatprep.subr.mxu0 0.0
    %3058 = vmatpush1.msra.mxu0 0.0
    %3059 = vmatprep.subr.mxu0 0.0
    %3060 = vmatpush1.msra.mxu0 0.0
    %3061 = vmatprep.subr.mxu0 0.0
    %3062 = vmatpush1.msra.mxu0 0.0
    %3063 = vmatprep.subr.mxu0 0.0
    %3064 = vmatpush1.msra.mxu0 0.0
    %3065 = vmatprep.subr.mxu0 0.0
    %3066 = vmatpush1.msra.mxu0 0.0
    %3067 = vmatprep.subr.mxu0 0.0
    %3068 = vmatpush1.msra.mxu0 0.0
    %3069 = vmatprep.subr.mxu0 0.0
    %3070 = vmatpush1.msra.mxu0 0.0
    %3071 = vmatprep.subr.mxu0 0.0
    %3072 = vmatpush1.msra.mxu0 0.0
    %3073 = vmatprep.subr.mxu0 0.0
    %3074 = vmatpush1.msra.mxu0 0.0
    %3075 = vmatprep.subr.mxu0 0.0
    %3076 = vmatpush1.msra.mxu0 0.0
    %3077 = vmatprep.subr.mxu0 0.0
    %3078 = vmatpush1.msra.mxu0 0.0
    %3079 = vmatprep.subr.mxu0 0.0
    %3080 = vmatpush1.msra.mxu0 0.0
    %3081 = vmatprep.subr.mxu0 0.0
    %3082 = vmatpush1.msra.mxu0 0.0
    %3083 = vmatprep.subr.mxu0 0.0
    %3084 = vmatpush1.msra.mxu0 0.0
    %3085 = vmatprep.subr.mxu0 0.0
    %3086 = vmatpush1.msra.mxu0 0.0
    %3087 = vmatprep.subr.mxu0 0.0
    %3088 = vmatpush1.msra.mxu0 0.0
    %3089 = vmatprep.mubr.f32.mxu0 0.0
    %3090 = vmatmul.mubr.f32.gmra.mrb[0].mxu0 %v2664
    %v3091 = vpop.f32.mrb[0].mxu0
    %v3092 = vadd.f32 %v2290, %v3091
    %v3093 = vpop.f32.mrb[0].mxu0
    %3094 = vdwg.mxu0
    %3095 = vmatprep.subr.mxu0 0.0
    %3096 = vmatpush1.msra.mxu0 %v2365
    %3097 = vmatprep.subr.mxu0 0.0
    %3098 = vmatpush1.msra.mxu0 %v2366
    %3099 = vmatprep.subr.mxu0 0.0
    %3100 = vmatpush1.msra.mxu0 %v2367
    %3101 = vmatprep.subr.mxu0 0.0
    %3102 = vmatpush1.msra.mxu0 %v2368
    %3103 = vmatprep.subr.mxu0 0.0
    %3104 = vmatpush1.msra.mxu0 0.0
    %3105 = vmatprep.subr.mxu0 0.0
    %3106 = vmatpush1.msra.mxu0 0.0
    %3107 = vmatprep.subr.mxu0 0.0
    %3108 = vmatpush1.msra.mxu0 0.0
    %3109 = vmatprep.subr.mxu0 0.0
    %3110 = vmatpush1.msra.mxu0 0.0
    %3111 = vmatprep.subr.mxu0 0.0
    %3112 = vmatpush1.msra.mxu0 0.0
    %3113 = vmatprep.subr.mxu0 0.0
    %3114 = vmatpush1.msra.mxu0 0.0
    %3115 = vmatprep.subr.mxu0 0.0
    %3116 = vmatpush1.msra.mxu0 0.0
    %3117 = vmatprep.subr.mxu0 0.0
    %3118 = vmatpush1.msra.mxu0 0.0
    %3119 = vmatprep.subr.mxu0 0.0
    %3120 = vmatpush1.msra.mxu0 0.0
    %3121 = vmatprep.subr.mxu0 0.0
    %3122 = vmatpush1.msra.mxu0 0.0
    %3123 = vmatprep.subr.mxu0 0.0
    %3124 = vmatpush1.msra.mxu0 0.0
    %3125 = vmatprep.subr.mxu0 0.0
    %3126 = vmatpush1.msra.mxu0 0.0
    %3127 = vmatprep.subr.mxu0 0.0
    %3128 = vmatpush1.msra.mxu0 0.0
    %3129 = vmatprep.subr.mxu0 0.0
    %3130 = vmatpush1.msra.mxu0 0.0
    %3131 = vmatprep.subr.mxu0 0.0
    %3132 = vmatpush1.msra.mxu0 0.0
    %3133 = vmatprep.subr.mxu0 0.0
    %3134 = vmatpush1.msra.mxu0 0.0
    %3135 = vmatprep.subr.mxu0 0.0
    %3136 = vmatpush1.msra.mxu0 0.0
    %3137 = vmatprep.subr.mxu0 0.0
    %3138 = vmatpush1.msra.mxu0 0.0
    %3139 = vmatprep.subr.mxu0 0.0
    %3140 = vmatpush1.msra.mxu0 0.0
    %3141 = vmatprep.subr.mxu0 0.0
    %3142 = vmatpush1.msra.mxu0 0.0
    %3143 = vmatprep.subr.mxu0 0.0
    %3144 = vmatpush1.msra.mxu0 0.0
    %3145 = vmatprep.subr.mxu0 0.0
    %3146 = vmatpush1.msra.mxu0 0.0
    %3147 = vmatprep.subr.mxu0 0.0
    %3148 = vmatpush1.msra.mxu0 0.0
    %3149 = vmatprep.subr.mxu0 0.0
    %3150 = vmatpush1.msra.mxu0 0.0
    %3151 = vmatprep.subr.mxu0 0.0
    %3152 = vmatpush1.msra.mxu0 0.0
    %3153 = vmatprep.subr.mxu0 0.0
    %3154 = vmatpush1.msra.mxu0 0.0
    %3155 = vmatprep.subr.mxu0 0.0
    %3156 = vmatpush1.msra.mxu0 0.0
    %3157 = vmatprep.subr.mxu0 0.0
    %3158 = vmatpush1.msra.mxu0 0.0
    %3159 = vmatprep.mubr.f32.mxu0 0.0
    %3160 = vmatmul.mubr.f32.gmra.mrb[0].mxu0 %v2591
    %v3161 = vpop.f32.mrb[0].mxu0
    %v3162 = vadd.f32 0.0, %v3161
    %v3163 = vpop.f32.mrb[0].mxu0
    %3164 = vdwg.mxu0
    %v3165 = vadd.f32 %v3092, %v3162
    %3166 = vmatprep.subr.mxu0 0.0
    %3167 = vmatpush1.msra.mxu0 %v2277
    %3168 = vmatprep.subr.mxu0 0.0
    %3169 = vmatpush1.msra.mxu0 %v2278
    %3170 = vmatprep.subr.mxu0 0.0
    %3171 = vmatpush1.msra.mxu0 %v2279
    %3172 = vmatprep.subr.mxu0 0.0
    %3173 = vmatpush1.msra.mxu0 %v2280
    %3174 = vmatprep.subr.mxu0 0.0
    %3175 = vmatpush1.msra.mxu0 0.0
    %3176 = vmatprep.subr.mxu0 0.0
    %3177 = vmatpush1.msra.mxu0 0.0
    %3178 = vmatprep.subr.mxu0 0.0
    %3179 = vmatpush1.msra.mxu0 0.0
    %3180 = vmatprep.subr.mxu0 0.0
    %3181 = vmatpush1.msra.mxu0 0.0
    %3182 = vmatprep.subr.mxu0 0.0
    %3183 = vmatpush1.msra.mxu0 0.0
    %3184 = vmatprep.subr.mxu0 0.0
    %3185 = vmatpush1.msra.mxu0 0.0
    %3186 = vmatprep.subr.mxu0 0.0
    %3187 = vmatpush1.msra.mxu0 0.0
    %3188 = vmatprep.subr.mxu0 0.0
    %3189 = vmatpush1.msra.mxu0 0.0
    %3190 = vmatprep.subr.mxu0 0.0
    %3191 = vmatpush1.msra.mxu0 0.0
    %3192 = vmatprep.subr.mxu0 0.0
    %3193 = vmatpush1.msra.mxu0 0.0
    %3194 = vmatprep.subr.mxu0 0.0
    %3195 = vmatpush1.msra.mxu0 0.0
    %3196 = vmatprep.subr.mxu0 0.0
    %3197 = vmatpush1.msra.mxu0 0.0
    %3198 = vmatprep.subr.mxu0 0.0
    %3199 = vmatpush1.msra.mxu0 0.0
    %3200 = vmatprep.subr.mxu0 0.0
    %3201 = vmatpush1.msra.mxu0 0.0
    %3202 = vmatprep.subr.mxu0 0.0
    %3203 = vmatpush1.msra.mxu0 0.0
    %3204 = vmatprep.subr.mxu0 0.0
    %3205 = vmatpush1.msra.mxu0 0.0
    %3206 = vmatprep.subr.mxu0 0.0
    %3207 = vmatpush1.msra.mxu0 0.0
    %3208 = vmatprep.subr.mxu0 0.0
    %3209 = vmatpush1.msra.mxu0 0.0
    %3210 = vmatprep.subr.mxu0 0.0
    %3211 = vmatpush1.msra.mxu0 0.0
    %3212 = vmatprep.subr.mxu0 0.0
    %3213 = vmatpush1.msra.mxu0 0.0
    %3214 = vmatprep.subr.mxu0 0.0
    %3215 = vmatpush1.msra.mxu0 0.0
    %3216 = vmatprep.subr.mxu0 0.0
    %3217 = vmatpush1.msra.mxu0 0.0
    %3218 = vmatprep.subr.mxu0 0.0
    %3219 = vmatpush1.msra.mxu0 0.0
    %3220 = vmatprep.subr.mxu0 0.0
    %3221 = vmatpush1.msra.mxu0 0.0
    %3222 = vmatprep.subr.mxu0 0.0
    %3223 = vmatpush1.msra.mxu0 0.0
    %3224 = vmatprep.subr.mxu0 0.0
    %3225 = vmatpush1.msra.mxu0 0.0
    %3226 = vmatprep.subr.mxu0 0.0
    %3227 = vmatpush1.msra.mxu0 0.0
    %3228 = vmatprep.subr.mxu0 0.0
    %3229 = vmatpush1.msra.mxu0 0.0
    %3230 = vmatprep.mubr.f32.mxu0 0.0
    %3231 = vmatmul.mubr.f32.gmra.mrb[0].mxu0 %v2517
    %v3232 = vpop.f32.mrb[0].mxu0
    %v3233 = vadd.f32 %v2290, %v3232
    %v3234 = vpop.f32.mrb[0].mxu0
    %3235 = vdwg.mxu0
    %3236 = vmatprep.subr.mxu0 0.0
    %3237 = vmatpush1.msra.mxu0 %v2365
    %3238 = vmatprep.subr.mxu0 0.0
    %3239 = vmatpush1.msra.mxu0 %v2366
    %3240 = vmatprep.subr.mxu0 0.0
    %3241 = vmatpush1.msra.mxu0 %v2367
    %3242 = vmatprep.subr.mxu0 0.0
    %3243 = vmatpush1.msra.mxu0 %v2368
    %3244 = vmatprep.subr.mxu0 0.0
    %3245 = vmatpush1.msra.mxu0 0.0
    %3246 = vmatprep.subr.mxu0 0.0
    %3247 = vmatpush1.msra.mxu0 0.0
    %3248 = vmatprep.subr.mxu0 0.0
    %3249 = vmatpush1.msra.mxu0 0.0
    %3250 = vmatprep.subr.mxu0 0.0
    %3251 = vmatpush1.msra.mxu0 0.0
    %3252 = vmatprep.subr.mxu0 0.0
    %3253 = vmatpush1.msra.mxu0 0.0
    %3254 = vmatprep.subr.mxu0 0.0
    %3255 = vmatpush1.msra.mxu0 0.0
    %3256 = vmatprep.subr.mxu0 0.0
    %3257 = vmatpush1.msra.mxu0 0.0
    %3258 = vmatprep.subr.mxu0 0.0
    %3259 = vmatpush1.msra.mxu0 0.0
    %3260 = vmatprep.subr.mxu0 0.0
    %3261 = vmatpush1.msra.mxu0 0.0
    %3262 = vmatprep.subr.mxu0 0.0
    %3263 = vmatpush1.msra.mxu0 0.0
    %3264 = vmatprep.subr.mxu0 0.0
    %3265 = vmatpush1.msra.mxu0 0.0
    %3266 = vmatprep.subr.mxu0 0.0
    %3267 = vmatpush1.msra.mxu0 0.0
    %3268 = vmatprep.subr.mxu0 0.0
    %3269 = vmatpush1.msra.mxu0 0.0
    %3270 = vmatprep.subr.mxu0 0.0
    %3271 = vmatpush1.msra.mxu0 0.0
    %3272 = vmatprep.subr.mxu0 0.0
    %3273 = vmatpush1.msra.mxu0 0.0
    %3274 = vmatprep.subr.mxu0 0.0
    %3275 = vmatpush1.msra.mxu0 0.0
    %3276 = vmatprep.subr.mxu0 0.0
    %3277 = vmatpush1.msra.mxu0 0.0
    %3278 = vmatprep.subr.mxu0 0.0
    %3279 = vmatpush1.msra.mxu0 0.0
    %3280 = vmatprep.subr.mxu0 0.0
    %3281 = vmatpush1.msra.mxu0 0.0
    %3282 = vmatprep.subr.mxu0 0.0
    %3283 = vmatpush1.msra.mxu0 0.0
    %3284 = vmatprep.subr.mxu0 0.0
    %3285 = vmatpush1.msra.mxu0 0.0
    %3286 = vmatprep.subr.mxu0 0.0
    %3287 = vmatpush1.msra.mxu0 0.0
    %3288 = vmatprep.subr.mxu0 0.0
    %3289 = vmatpush1.msra.mxu0 0.0
    %3290 = vmatprep.subr.mxu0 0.0
    %3291 = vmatpush1.msra.mxu0 0.0
    %3292 = vmatprep.subr.mxu0 0.0
    %3293 = vmatpush1.msra.mxu0 0.0
    %3294 = vmatprep.subr.mxu0 0.0
    %3295 = vmatpush1.msra.mxu0 0.0
    %3296 = vmatprep.subr.mxu0 0.0
    %3297 = vmatpush1.msra.mxu0 0.0
    %3298 = vmatprep.subr.mxu0 0.0
    %3299 = vmatpush1.msra.mxu0 0.0
    %3300 = vmatprep.mubr.f32.mxu0 0.0
    %3301 = vmatmul.mubr.f32.gmra.mrb[0].mxu0 %v2444
    %v3302 = vpop.f32.mrb[0].mxu0
    %v3303 = vadd.f32 0.0, %v3302
    %v3304 = vpop.f32.mrb[0].mxu0
    %3305 = vdwg.mxu0
    %v3306 = vadd.f32 %v3233, %v3303
    %3307 = vmatprep.subr.mxu0 0.0
    %3308 = vmatpush1.msra.mxu0 %v2277
    %3309 = vmatprep.subr.mxu0 0.0
    %3310 = vmatpush1.msra.mxu0 %v2278
    %3311 = vmatprep.subr.mxu0 0.0
    %3312 = vmatpush1.msra.mxu0 %v2279
    %3313 = vmatprep.subr.mxu0 0.0
    %3314 = vmatpush1.msra.mxu0 %v2280
    %3315 = vmatprep.subr.mxu0 0.0
    %3316 = vmatpush1.msra.mxu0 0.0
    %3317 = vmatprep.subr.mxu0 0.0
    %3318 = vmatpush1.msra.mxu0 0.0
    %3319 = vmatprep.subr.mxu0 0.0
    %3320 = vmatpush1.msra.mxu0 0.0
    %3321 = vmatprep.subr.mxu0 0.0
    %3322 = vmatpush1.msra.mxu0 0.0
    %3323 = vmatprep.subr.mxu0 0.0
    %3324 = vmatpush1.msra.mxu0 0.0
    %3325 = vmatprep.subr.mxu0 0.0
    %3326 = vmatpush1.msra.mxu0 0.0
    %3327 = vmatprep.subr.mxu0 0.0
    %3328 = vmatpush1.msra.mxu0 0.0
    %3329 = vmatprep.subr.mxu0 0.0
    %3330 = vmatpush1.msra.mxu0 0.0
    %3331 = vmatprep.subr.mxu0 0.0
    %3332 = vmatpush1.msra.mxu0 0.0
    %3333 = vmatprep.subr.mxu0 0.0
    %3334 = vmatpush1.msra.mxu0 0.0
    %3335 = vmatprep.subr.mxu0 0.0
    %3336 = vmatpush1.msra.mxu0 0.0
    %3337 = vmatprep.subr.mxu0 0.0
    %3338 = vmatpush1.msra.mxu0 0.0
    %3339 = vmatprep.subr.mxu0 0.0
    %3340 = vmatpush1.msra.mxu0 0.0
    %3341 = vmatprep.subr.mxu0 0.0
    %3342 = vmatpush1.msra.mxu0 0.0
    %3343 = vmatprep.subr.mxu0 0.0
    %3344 = vmatpush1.msra.mxu0 0.0
    %3345 = vmatprep.subr.mxu0 0.0
    %3346 = vmatpush1.msra.mxu0 0.0
    %3347 = vmatprep.subr.mxu0 0.0
    %3348 = vmatpush1.msra.mxu0 0.0
    %3349 = vmatprep.subr.mxu0 0.0
    %3350 = vmatpush1.msra.mxu0 0.0
    %3351 = vmatprep.subr.mxu0 0.0
    %3352 = vmatpush1.msra.mxu0 0.0
    %3353 = vmatprep.subr.mxu0 0.0
    %3354 = vmatpush1.msra.mxu0 0.0
    %3355 = vmatprep.subr.mxu0 0.0
    %3356 = vmatpush1.msra.mxu0 0.0
    %3357 = vmatprep.subr.mxu0 0.0
    %3358 = vmatpush1.msra.mxu0 0.0
    %3359 = vmatprep.subr.mxu0 0.0
    %3360 = vmatpush1.msra.mxu0 0.0
    %3361 = vmatprep.subr.mxu0 0.0
    %3362 = vmatpush1.msra.mxu0 0.0
    %3363 = vmatprep.subr.mxu0 0.0
    %3364 = vmatpush1.msra.mxu0 0.0
    %3365 = vmatprep.subr.mxu0 0.0
    %3366 = vmatpush1.msra.mxu0 0.0
    %3367 = vmatprep.subr.mxu0 0.0
    %3368 = vmatpush1.msra.mxu0 0.0
    %3369 = vmatprep.subr.mxu0 0.0
    %3370 = vmatpush1.msra.mxu0 0.0
    %3371 = vmatprep.mubr.f32.mxu0 0.0
    %3372 = vmatmul.mubr.f32.gmra.mrb[0].mxu0 %v2370
    %v3373 = vpop.f32.mrb[0].mxu0
    %v3374 = vadd.f32 %v2290, %v3373
    %v3375 = vpop.f32.mrb[0].mxu0
    %3376 = vdwg.mxu0
    %3377 = vmatprep.subr.mxu0 0.0
    %3378 = vmatpush1.msra.mxu0 %v2365
    %3379 = vmatprep.subr.mxu0 0.0
    %3380 = vmatpush1.msra.mxu0 %v2366
    %3381 = vmatprep.subr.mxu0 0.0
    %3382 = vmatpush1.msra.mxu0 %v2367
    %3383 = vmatprep.subr.mxu0 0.0
    %3384 = vmatpush1.msra.mxu0 %v2368
    %3385 = vmatprep.subr.mxu0 0.0
    %3386 = vmatpush1.msra.mxu0 0.0
    %3387 = vmatprep.subr.mxu0 0.0
    %3388 = vmatpush1.msra.mxu0 0.0
    %3389 = vmatprep.subr.mxu0 0.0
    %3390 = vmatpush1.msra.mxu0 0.0
    %3391 = vmatprep.subr.mxu0 0.0
    %3392 = vmatpush1.msra.mxu0 0.0
    %3393 = vmatprep.subr.mxu0 0.0
    %3394 = vmatpush1.msra.mxu0 0.0
    %3395 = vmatprep.subr.mxu0 0.0
    %3396 = vmatpush1.msra.mxu0 0.0
    %3397 = vmatprep.subr.mxu0 0.0
    %3398 = vmatpush1.msra.mxu0 0.0
    %3399 = vmatprep.subr.mxu0 0.0
    %3400 = vmatpush1.msra.mxu0 0.0
    %3401 = vmatprep.subr.mxu0 0.0
    %3402 = vmatpush1.msra.mxu0 0.0
    %3403 = vmatprep.subr.mxu0 0.0
    %3404 = vmatpush1.msra.mxu0 0.0
    %3405 = vmatprep.subr.mxu0 0.0
    %3406 = vmatpush1.msra.mxu0 0.0
    %3407 = vmatprep.subr.mxu0 0.0
    %3408 = vmatpush1.msra.mxu0 0.0
    %3409 = vmatprep.subr.mxu0 0.0
    %3410 = vmatpush1.msra.mxu0 0.0
    %3411 = vmatprep.subr.mxu0 0.0
    %3412 = vmatpush1.msra.mxu0 0.0
    %3413 = vmatprep.subr.mxu0 0.0
    %3414 = vmatpush1.msra.mxu0 0.0
    %3415 = vmatprep.subr.mxu0 0.0
    %3416 = vmatpush1.msra.mxu0 0.0
    %3417 = vmatprep.subr.mxu0 0.0
    %3418 = vmatpush1.msra.mxu0 0.0
    %3419 = vmatprep.subr.mxu0 0.0
    %3420 = vmatpush1.msra.mxu0 0.0
    %3421 = vmatprep.subr.mxu0 0.0
    %3422 = vmatpush1.msra.mxu0 0.0
    %3423 = vmatprep.subr.mxu0 0.0
    %3424 = vmatpush1.msra.mxu0 0.0
    %3425 = vmatprep.subr.mxu0 0.0
    %3426 = vmatpush1.msra.mxu0 0.0
    %3427 = vmatprep.subr.mxu0 0.0
    %3428 = vmatpush1.msra.mxu0 0.0
    %3429 = vmatprep.subr.mxu0 0.0
    %3430 = vmatpush1.msra.mxu0 0.0
    %3431 = vmatprep.subr.mxu0 0.0
    %3432 = vmatpush1.msra.mxu0 0.0
    %3433 = vmatprep.subr.mxu0 0.0
    %3434 = vmatpush1.msra.mxu0 0.0
    %3435 = vmatprep.subr.mxu0 0.0
    %3436 = vmatpush1.msra.mxu0 0.0
    %3437 = vmatprep.subr.mxu0 0.0
    %3438 = vmatpush1.msra.mxu0 0.0
    %3439 = vmatprep.subr.mxu0 0.0
    %3440 = vmatpush1.msra.mxu0 0.0
    %3441 = vmatprep.mubr.f32.mxu0 0.0
    %3442 = vmatmul.mubr.f32.gmra.mrb[0].mxu0 %v2293
    %v3443 = vpop.f32.mrb[0].mxu0
    %v3444 = vadd.f32 0.0, %v3443
    %v3445 = vpop.f32.mrb[0].mxu0
    %3446 = vdwg.mxu0
    %v3447 = vadd.f32 %v3374, %v3444
    %3448 = vmatprep.subr.mxu0 0.0
    %3449 = vmatpush1.msra.mxu0 %v2281
    %3450 = vmatprep.subr.mxu0 0.0
    %3451 = vmatpush1.msra.mxu0 %v2282
    %3452 = vmatprep.subr.mxu0 0.0
    %3453 = vmatpush1.msra.mxu0 %v2283
    %3454 = vmatprep.subr.mxu0 0.0
    %3455 = vmatpush1.msra.mxu0 %v2284
    %3456 = vmatprep.subr.mxu0 0.0
    %3457 = vmatpush1.msra.mxu0 0.0
    %3458 = vmatprep.subr.mxu0 0.0
    %3459 = vmatpush1.msra.mxu0 0.0
    %3460 = vmatprep.subr.mxu0 0.0
    %3461 = vmatpush1.msra.mxu0 0.0
    %3462 = vmatprep.subr.mxu0 0.0
    %3463 = vmatpush1.msra.mxu0 0.0
    %3464 = vmatprep.subr.mxu0 0.0
    %3465 = vmatpush1.msra.mxu0 0.0
    %3466 = vmatprep.subr.mxu0 0.0
    %3467 = vmatpush1.msra.mxu0 0.0
    %3468 = vmatprep.subr.mxu0 0.0
    %3469 = vmatpush1.msra.mxu0 0.0
    %3470 = vmatprep.subr.mxu0 0.0
    %3471 = vmatpush1.msra.mxu0 0.0
    %3472 = vmatprep.subr.mxu0 0.0
    %3473 = vmatpush1.msra.mxu0 0.0
    %3474 = vmatprep.subr.mxu0 0.0
    %3475 = vmatpush1.msra.mxu0 0.0
    %3476 = vmatprep.subr.mxu0 0.0
    %3477 = vmatpush1.msra.mxu0 0.0
    %3478 = vmatprep.subr.mxu0 0.0
    %3479 = vmatpush1.msra.mxu0 0.0
    %3480 = vmatprep.subr.mxu0 0.0
    %3481 = vmatpush1.msra.mxu0 0.0
    %3482 = vmatprep.subr.mxu0 0.0
    %3483 = vmatpush1.msra.mxu0 0.0
    %3484 = vmatprep.subr.mxu0 0.0
    %3485 = vmatpush1.msra.mxu0 0.0
    %3486 = vmatprep.subr.mxu0 0.0
    %3487 = vmatpush1.msra.mxu0 0.0
    %3488 = vmatprep.subr.mxu0 0.0
    %3489 = vmatpush1.msra.mxu0 0.0
    %3490 = vmatprep.subr.mxu0 0.0
    %3491 = vmatpush1.msra.mxu0 0.0
    %3492 = vmatprep.subr.mxu0 0.0
    %3493 = vmatpush1.msra.mxu0 0.0
    %3494 = vmatprep.subr.mxu0 0.0
    %3495 = vmatpush1.msra.mxu0 0.0
    %3496 = vmatprep.subr.mxu0 0.0
    %3497 = vmatpush1.msra.mxu0 0.0
    %3498 = vmatprep.subr.mxu0 0.0
    %3499 = vmatpush1.msra.mxu0 0.0
    %3500 = vmatprep.subr.mxu0 0.0
    %3501 = vmatpush1.msra.mxu0 0.0
    %3502 = vmatprep.subr.mxu0 0.0
    %3503 = vmatpush1.msra.mxu0 0.0
    %3504 = vmatprep.subr.mxu0 0.0
    %3505 = vmatpush1.msra.mxu0 0.0
    %3506 = vmatprep.subr.mxu0 0.0
    %3507 = vmatpush1.msra.mxu0 0.0
    %3508 = vmatprep.subr.mxu0 0.0
    %3509 = vmatpush1.msra.mxu0 0.0
    %3510 = vmatprep.subr.mxu0 0.0
    %3511 = vmatpush1.msra.mxu0 0.0
    %3512 = vmatprep.mubr.f32.mxu0 0.0
    %3513 = vmatmul.mubr.f32.gmra.mrb[0].mxu0 %v1309
    %v3514 = vpop.f32.mrb[0].mxu0
    %v3515 = vadd.f32 0.0, %v3514
    %v3516 = vpop.f32.mrb[0].mxu0
    %3517 = vdwg.mxu0
    %v3518 = vadd.f32 %v2442, %v3515
    %v3519 = vmul.f32 %v3518, 0.5
    %v3520 = vtanh.pop %v3519
    %v3521 = vmul.f32 %v3520, 0.5
    %v3522 = vadd.f32 %v3521, 0.5
    %v3523 = vmul.f32 %v3522, 0.0
    %3525 = vrot.lane.b32.xlu0 %v3520, 64
    %v3526 = vpop.permute.xlu0 %3525
    %v3528 = vmul.f32 %v3522, %v3526
    %3530 = vrot.lane.b32.xlu0 %v3528, 32
    %v3531 = vpop.permute.xlu0 %3530
    %v3533 = vadd.f32 %v3523, %v3531
    %v3534 = vtanh.pop %v3533
    %3536 = vrot.lane.b32.xlu0 %v3534, 64
    %v3537 = vpop.permute.xlu0 %3536
    %v3539 = vmul.f32 %v3522, %v3537
    %3541 = vrot.lane.b32.xlu0 %v3539, 32
    %v3542 = vpop.permute.xlu0 %3541
    %v3544 = vmul.f32 %v92, %v3542
    %v3545 = vadd.f32 %v3544, 0.0
    %3547 = vrot.lane.b32.xlu0 %v3533, 96
    %v3548 = vpop.permute.xlu0 %3547
    %v3550 = vmul.f32 %v92, %v3548
    %v3551 = vadd.f32 %v3550, 0.0
    %v3553 = vsel %vm1307, %v3545, 0
    %3555 = vmatprep.subr.mxu0 0.0
    %3556 = vmatpush1.msra.mxu0 %v2281
    %3557 = vmatprep.subr.mxu0 0.0
    %3558 = vmatpush1.msra.mxu0 %v2282
    %3559 = vmatprep.subr.mxu0 0.0
    %3560 = vmatpush1.msra.mxu0 %v2283
    %3561 = vmatprep.subr.mxu0 0.0
    %3562 = vmatpush1.msra.mxu0 %v2284
    %3563 = vmatprep.subr.mxu0 0.0
    %3564 = vmatpush1.msra.mxu0 0.0
    %3565 = vmatprep.subr.mxu0 0.0
    %3566 = vmatpush1.msra.mxu0 0.0
    %3567 = vmatprep.subr.mxu0 0.0
    %3568 = vmatpush1.msra.mxu0 0.0
    %3569 = vmatprep.subr.mxu0 0.0
    %3570 = vmatpush1.msra.mxu0 0.0
    %3571 = vmatprep.subr.mxu0 0.0
    %3572 = vmatpush1.msra.mxu0 0.0
    %3573 = vmatprep.subr.mxu0 0.0
    %3574 = vmatpush1.msra.mxu0 0.0
    %3575 = vmatprep.subr.mxu0 0.0
    %3576 = vmatpush1.msra.mxu0 0.0
    %3577 = vmatprep.subr.mxu0 0.0
    %3578 = vmatpush1.msra.mxu0 0.0
    %3579 = vmatprep.subr.mxu0 0.0
    %3580 = vmatpush1.msra.mxu0 0.0
    %3581 = vmatprep.subr.mxu0 0.0
    %3582 = vmatpush1.msra.mxu0 0.0
    %3583 = vmatprep.subr.mxu0 0.0
    %3584 = vmatpush1.msra.mxu0 0.0
    %3585 = vmatprep.subr.mxu0 0.0
    %3586 = vmatpush1.msra.mxu0 0.0
    %3587 = vmatprep.subr.mxu0 0.0
    %3588 = vmatpush1.msra.mxu0 0.0
    %3589 = vmatprep.subr.mxu0 0.0
    %3590 = vmatpush1.msra.mxu0 0.0
    %3591 = vmatprep.subr.mxu0 0.0
    %3592 = vmatpush1.msra.mxu0 0.0
    %3593 = vmatprep.subr.mxu0 0.0
    %3594 = vmatpush1.msra.mxu0 0.0
    %3595 = vmatprep.subr.mxu0 0.0
    %3596 = vmatpush1.msra.mxu0 0.0
    %3597 = vmatprep.subr.mxu0 0.0
    %3598 = vmatpush1.msra.mxu0 0.0
    %3599 = vmatprep.subr.mxu0 0.0
    %3600 = vmatpush1.msra.mxu0 0.0
    %3601 = vmatprep.subr.mxu0 0.0
    %3602 = vmatpush1.msra.mxu0 0.0
    %3603 = vmatprep.subr.mxu0 0.0
    %3604 = vmatpush1.msra.mxu0 0.0
    %3605 = vmatprep.subr.mxu0 0.0
    %3606 = vmatpush1.msra.mxu0 0.0
    %3607 = vmatprep.subr.mxu0 0.0
    %3608 = vmatpush1.msra.mxu0 0.0
    %3609 = vmatprep.subr.mxu0 0.0
    %3610 = vmatpush1.msra.mxu0 0.0
    %3611 = vmatprep.subr.mxu0 0.0
    %3612 = vmatpush1.msra.mxu0 0.0
    %3613 = vmatprep.subr.mxu0 0.0
    %3614 = vmatpush1.msra.mxu0 0.0
    %3615 = vmatprep.subr.mxu0 0.0
    %3616 = vmatpush1.msra.mxu0 0.0
    %3617 = vmatprep.subr.mxu0 0.0
    %3618 = vmatpush1.msra.mxu0 0.0
    %3619 = vmatprep.mubr.f32.mxu0 0.0
    %3620 = vmatmul.mubr.f32.gmra.mrb[0].mxu0 %v3553
    %v3621 = vpop.f32.mrb[0].mxu0
    %v3622 = vadd.f32 0.0, %v3621
    %v3623 = vpop.f32.mrb[0].mxu0
    %3624 = vdwg.mxu0
    %v3625 = vadd.f32 %v2589, %v3622
    %v3626 = vmul.f32 %v3625, 0.5
    %v3627 = vtanh.pop %v3626
    %v3628 = vmul.f32 %v3627, 0.5
    %v3629 = vadd.f32 %v3628, 0.5
    %3631 = vrot.lane.b32.xlu0 %v3551, 32
    %v3632 = vpop.permute.xlu0 %3631
    %v3634 = vmul.f32 %v3629, %v3632
    %3636 = vrot.lane.b32.xlu0 %v3627, 64
    %v3637 = vpop.permute.xlu0 %3636
    %v3639 = vmul.f32 %v3629, %v3637
    %3641 = vrot.lane.b32.xlu0 %v3639, 32
    %v3642 = vpop.permute.xlu0 %3641
    %v3644 = vadd.f32 %v3634, %v3642
    %v3645 = vtanh.pop %v3644
    %3647 = vrot.lane.b32.xlu0 %v3645, 64
    %v3648 = vpop.permute.xlu0 %3647
    %v3650 = vmul.f32 %v3629, %v3648
    %3651 = vrot.lane.b32.xlu0 %v3545, 96
    %v3652 = vpop.permute.xlu0 %3651
    %v3654 = vsub.f32 %v3650, %v3652
    %3656 = vrot.lane.b32.xlu0 %v3654, 32
    %v3657 = vpop.permute.xlu0 %3656
    %v3659 = vmul.f32 %v96, %v3657
    %v3660 = vadd.f32 %v3545, %v3659
    %v3661 = vsub.f32 %v3644, %v3632
    %3663 = vrot.lane.b32.xlu0 %v3661, 96
    %v3664 = vpop.permute.xlu0 %3663
    %v3666 = vmul.f32 %v96, %v3664
    %v3667 = vadd.f32 %v3551, %v3666
    %3669 = vrot.lane.b32.xlu0 %v3650, 32
    %v3670 = vpop.permute.xlu0 %3669
    %v3672 = vmul.f32 %v96, %v3670
    %v3674 = vsel %vm1307, %v3660, 0
    %3676 = vmatprep.subr.mxu0 0.0
    %3677 = vmatpush1.msra.mxu0 %v2281
    %3678 = vmatprep.subr.mxu0 0.0
    %3679 = vmatpush1.msra.mxu0 %v2282
    %3680 = vmatprep.subr.mxu0 0.0
    %3681 = vmatpush1.msra.mxu0 %v2283
    %3682 = vmatprep.subr.mxu0 0.0
    %3683 = vmatpush1.msra.mxu0 %v2284
    %3684 = vmatprep.subr.mxu0 0.0
    %3685 = vmatpush1.msra.mxu0 0.0
    %3686 = vmatprep.subr.mxu0 0.0
    %3687 = vmatpush1.msra.mxu0 0.0
    %3688 = vmatprep.subr.mxu0 0.0
    %3689 = vmatpush1.msra.mxu0 0.0
    %3690 = vmatprep.subr.mxu0 0.0
    %3691 = vmatpush1.msra.mxu0 0.0
    %3692 = vmatprep.subr.mxu0 0.0
    %3693 = vmatpush1.msra.mxu0 0.0
    %3694 = vmatprep.subr.mxu0 0.0
    %3695 = vmatpush1.msra.mxu0 0.0
    %3696 = vmatprep.subr.mxu0 0.0
    %3697 = vmatpush1.msra.mxu0 0.0
    %3698 = vmatprep.subr.mxu0 0.0
    %3699 = vmatpush1.msra.mxu0 0.0
    %3700 = vmatprep.subr.mxu0 0.0
    %3701 = vmatpush1.msra.mxu0 0.0
    %3702 = vmatprep.subr.mxu0 0.0
    %3703 = vmatpush1.msra.mxu0 0.0
    %3704 = vmatprep.subr.mxu0 0.0
    %3705 = vmatpush1.msra.mxu0 0.0
    %3706 = vmatprep.subr.mxu0 0.0
    %3707 = vmatpush1.msra.mxu0 0.0
    %3708 = vmatprep.subr.mxu0 0.0
    %3709 = vmatpush1.msra.mxu0 0.0
    %3710 = vmatprep.subr.mxu0 0.0
    %3711 = vmatpush1.msra.mxu0 0.0
    %3712 = vmatprep.subr.mxu0 0.0
    %3713 = vmatpush1.msra.mxu0 0.0
    %3714 = vmatprep.subr.mxu0 0.0
    %3715 = vmatpush1.msra.mxu0 0.0
    %3716 = vmatprep.subr.mxu0 0.0
    %3717 = vmatpush1.msra.mxu0 0.0
    %3718 = vmatprep.subr.mxu0 0.0
    %3719 = vmatpush1.msra.mxu0 0.0
    %3720 = vmatprep.subr.mxu0 0.0
    %3721 = vmatpush1.msra.mxu0 0.0
    %3722 = vmatprep.subr.mxu0 0.0
    %3723 = vmatpush1.msra.mxu0 0.0
    %3724 = vmatprep.subr.mxu0 0.0
    %3725 = vmatpush1.msra.mxu0 0.0
    %3726 = vmatprep.subr.mxu0 0.0
    %3727 = vmatpush1.msra.mxu0 0.0
    %3728 = vmatprep.subr.mxu0 0.0
    %3729 = vmatpush1.msra.mxu0 0.0
    %3730 = vmatprep.subr.mxu0 0.0
    %3731 = vmatpush1.msra.mxu0 0.0
    %3732 = vmatprep.subr.mxu0 0.0
    %3733 = vmatpush1.msra.mxu0 0.0
    %3734 = vmatprep.subr.mxu0 0.0
    %3735 = vmatpush1.msra.mxu0 0.0
    %3736 = vmatprep.subr.mxu0 0.0
    %3737 = vmatpush1.msra.mxu0 0.0
    %3738 = vmatprep.subr.mxu0 0.0
    %3739 = vmatpush1.msra.mxu0 0.0
    %3740 = vmatprep.mubr.f32.mxu0 0.0
    %3741 = vmatmul.mubr.f32.gmra.mrb[0].mxu0 %v3674
    %v3742 = vpop.f32.mrb[0].mxu0
    %v3743 = vadd.f32 0.0, %v3742
    %v3744 = vpop.f32.mrb[0].mxu0
    %3745 = vdwg.mxu0
    %v3746 = vadd.f32 %v2736, %v3743
    %v3747 = vmul.f32 %v3746, 0.5
    %v3748 = vtanh.pop %v3747
    %v3749 = vmul.f32 %v3748, 0.5
    %v3750 = vadd.f32 %v3749, 0.5
    %3752 = vrot.lane.b32.xlu0 %v3667, 32
    %v3753 = vpop.permute.xlu0 %3752
    %v3755 = vmul.f32 %v3750, %v3753
    %3757 = vrot.lane.b32.xlu0 %v3748, 64
    %v3758 = vpop.permute.xlu0 %3757
    %v3760 = vmul.f32 %v3750, %v3758
    %3762 = vrot.lane.b32.xlu0 %v3760, 32
    %v3763 = vpop.permute.xlu0 %3762
    %v3765 = vadd.f32 %v3755, %v3763
    %v3766 = vtanh.pop %v3765
    %3768 = vrot.lane.b32.xlu0 %v3766, 64
    %v3769 = vpop.permute.xlu0 %3768
    %v3771 = vmul.f32 %v3750, %v3769
    %3772 = vrot.lane.b32.xlu0 %v3660, 96
    %v3773 = vpop.permute.xlu0 %3772
    %v3775 = vsub.f32 %v3771, %v3773
    %3777 = vrot.lane.b32.xlu0 %v3775, 32
    %v3778 = vpop.permute.xlu0 %3777
    %v3780 = vmul.f32 %v100, %v3778
    %v3781 = vadd.f32 %v3660, %v3780
    %v3782 = vsub.f32 %v3765, %v3753
    %3784 = vrot.lane.b32.xlu0 %v3782, 96
    %v3785 = vpop.permute.xlu0 %3784
    %v3787 = vmul.f32 %v100, %v3785
    %v3788 = vadd.f32 %v3667, %v3787
    %3790 = vrot.lane.b32.xlu0 %v3771, 32
    %v3791 = vpop.permute.xlu0 %3790
    %v3793 = vmul.f32 %v100, %v3791
    %v3795 = vsel %vm1307, %v3781, 0
    %3797 = vmatprep.subr.mxu0 0.0
    %3798 = vmatpush1.msra.mxu0 %v2281
    %3799 = vmatprep.subr.mxu0 0.0
    %3800 = vmatpush1.msra.mxu0 %v2282
    %3801 = vmatprep.subr.mxu0 0.0
    %3802 = vmatpush1.msra.mxu0 %v2283
    %3803 = vmatprep.subr.mxu0 0.0
    %3804 = vmatpush1.msra.mxu0 %v2284
    %3805 = vmatprep.subr.mxu0 0.0
    %3806 = vmatpush1.msra.mxu0 0.0
    %3807 = vmatprep.subr.mxu0 0.0
    %3808 = vmatpush1.msra.mxu0 0.0
    %3809 = vmatprep.subr.mxu0 0.0
    %3810 = vmatpush1.msra.mxu0 0.0
    %3811 = vmatprep.subr.mxu0 0.0
    %3812 = vmatpush1.msra.mxu0 0.0
    %3813 = vmatprep.subr.mxu0 0.0
    %3814 = vmatpush1.msra.mxu0 0.0
    %3815 = vmatprep.subr.mxu0 0.0
    %3816 = vmatpush1.msra.mxu0 0.0
    %3817 = vmatprep.subr.mxu0 0.0
    %3818 = vmatpush1.msra.mxu0 0.0
    %3819 = vmatprep.subr.mxu0 0.0
    %3820 = vmatpush1.msra.mxu0 0.0
    %3821 = vmatprep.subr.mxu0 0.0
    %3822 = vmatpush1.msra.mxu0 0.0
    %3823 = vmatprep.subr.mxu0 0.0
    %3824 = vmatpush1.msra.mxu0 0.0
    %3825 = vmatprep.subr.mxu0 0.0
    %3826 = vmatpush1.msra.mxu0 0.0
    %3827 = vmatprep.subr.mxu0 0.0
    %3828 = vmatpush1.msra.mxu0 0.0
    %3829 = vmatprep.subr.mxu0 0.0
    %3830 = vmatpush1.msra.mxu0 0.0
    %3831 = vmatprep.subr.mxu0 0.0
    %3832 = vmatpush1.msra.mxu0 0.0
    %3833 = vmatprep.subr.mxu0 0.0
    %3834 = vmatpush1.msra.mxu0 0.0
    %3835 = vmatprep.subr.mxu0 0.0
    %3836 = vmatpush1.msra.mxu0 0.0
    %3837 = vmatprep.subr.mxu0 0.0
    %3838 = vmatpush1.msra.mxu0 0.0
    %3839 = vmatprep.subr.mxu0 0.0
    %3840 = vmatpush1.msra.mxu0 0.0
    %3841 = vmatprep.subr.mxu0 0.0
    %3842 = vmatpush1.msra.mxu0 0.0
    %3843 = vmatprep.subr.mxu0 0.0
    %3844 = vmatpush1.msra.mxu0 0.0
    %3845 = vmatprep.subr.mxu0 0.0
    %3846 = vmatpush1.msra.mxu0 0.0
    %3847 = vmatprep.subr.mxu0 0.0
    %3848 = vmatpush1.msra.mxu0 0.0
    %3849 = vmatprep.subr.mxu0 0.0
    %3850 = vmatpush1.msra.mxu0 0.0
    %3851 = vmatprep.subr.mxu0 0.0
    %3852 = vmatpush1.msra.mxu0 0.0
    %3853 = vmatprep.subr.mxu0 0.0
    %3854 = vmatpush1.msra.mxu0 0.0
    %3855 = vmatprep.subr.mxu0 0.0
    %3856 = vmatpush1.msra.mxu0 0.0
    %3857 = vmatprep.subr.mxu0 0.0
    %3858 = vmatpush1.msra.mxu0 0.0
    %3859 = vmatprep.subr.mxu0 0.0
    %3860 = vmatpush1.msra.mxu0 0.0
    %3861 = vmatprep.mubr.f32.mxu0 0.0
    %3862 = vmatmul.mubr.f32.gmra.mrb[0].mxu0 %v3795
    %v3863 = vpop.f32.mrb[0].mxu0
    %v3864 = vadd.f32 0.0, %v3863
    %v3865 = vpop.f32.mrb[0].mxu0
    %3866 = vdwg.mxu0
    %v3867 = vadd.f32 %v2883, %v3864
    %v3868 = vmul.f32 %v3867, 0.5
    %v3869 = vtanh.pop %v3868
    %v3870 = vmul.f32 %v3869, 0.5
    %v3871 = vadd.f32 %v3870, 0.5
    %3873 = vrot.lane.b32.xlu0 %v3788, 32
    %v3874 = vpop.permute.xlu0 %3873
    %v3876 = vmul.f32 %v3871, %v3874
    %3878 = vrot.lane.b32.xlu0 %v3869, 64
    %v3879 = vpop.permute.xlu0 %3878
    %v3881 = vmul.f32 %v3871, %v3879
    %3883 = vrot.lane.b32.xlu0 %v3881, 32
    %v3884 = vpop.permute.xlu0 %3883
    %v3886 = vadd.f32 %v3876, %v3884
    %v3887 = vtanh.pop %v3886
    %3889 = vrot.lane.b32.xlu0 %v3887, 64
    %v3890 = vpop.permute.xlu0 %3889
    %v3892 = vmul.f32 %v3871, %v3890
    %3893 = vrot.lane.b32.xlu0 %v3781, 96
    %v3894 = vpop.permute.xlu0 %3893
    %v3896 = vsub.f32 %v3892, %v3894
    %3898 = vrot.lane.b32.xlu0 %v3896, 32
    %v3899 = vpop.permute.xlu0 %3898
    %v3901 = vmul.f32 %v104, %v3899
    %v3902 = vadd.f32 %v3781, %v3901
    %v3903 = vsub.f32 %v3886, %v3874
    %3905 = vrot.lane.b32.xlu0 %v3903, 96
    %v3906 = vpop.permute.xlu0 %3905
    %v3908 = vmul.f32 %v104, %v3906
    %v3909 = vadd.f32 %v3788, %v3908
    %3911 = vrot.lane.b32.xlu0 %v3892, 32
    %v3912 = vpop.permute.xlu0 %3911
    %v3914 = vmul.f32 %v104, %v3912
    %v3916 = vsel %vm1307, %v3902, 0
    %3918 = vmatprep.subr.mxu0 0.0
    %3919 = vmatpush1.msra.mxu0 %v2281
    %3920 = vmatprep.subr.mxu0 0.0
    %3921 = vmatpush1.msra.mxu0 %v2282
    %3922 = vmatprep.subr.mxu0 0.0
    %3923 = vmatpush1.msra.mxu0 %v2283
    %3924 = vmatprep.subr.mxu0 0.0
    %3925 = vmatpush1.msra.mxu0 %v2284
    %3926 = vmatprep.subr.mxu0 0.0
    %3927 = vmatpush1.msra.mxu0 0.0
    %3928 = vmatprep.subr.mxu0 0.0
    %3929 = vmatpush1.msra.mxu0 0.0
    %3930 = vmatprep.subr.mxu0 0.0
    %3931 = vmatpush1.msra.mxu0 0.0
    %3932 = vmatprep.subr.mxu0 0.0
    %3933 = vmatpush1.msra.mxu0 0.0
    %3934 = vmatprep.subr.mxu0 0.0
    %3935 = vmatpush1.msra.mxu0 0.0
    %3936 = vmatprep.subr.mxu0 0.0
    %3937 = vmatpush1.msra.mxu0 0.0
    %3938 = vmatprep.subr.mxu0 0.0
    %3939 = vmatpush1.msra.mxu0 0.0
    %3940 = vmatprep.subr.mxu0 0.0
    %3941 = vmatpush1.msra.mxu0 0.0
    %3942 = vmatprep.subr.mxu0 0.0
    %3943 = vmatpush1.msra.mxu0 0.0
    %3944 = vmatprep.subr.mxu0 0.0
    %3945 = vmatpush1.msra.mxu0 0.0
    %3946 = vmatprep.subr.mxu0 0.0
    %3947 = vmatpush1.msra.mxu0 0.0
    %3948 = vmatprep.subr.mxu0 0.0
    %3949 = vmatpush1.msra.mxu0 0.0
    %3950 = vmatprep.subr.mxu0 0.0
    %3951 = vmatpush1.msra.mxu0 0.0
    %3952 = vmatprep.subr.mxu0 0.0
    %3953 = vmatpush1.msra.mxu0 0.0
    %3954 = vmatprep.subr.mxu0 0.0
    %3955 = vmatpush1.msra.mxu0 0.0
    %3956 = vmatprep.subr.mxu0 0.0
    %3957 = vmatpush1.msra.mxu0 0.0
    %3958 = vmatprep.subr.mxu0 0.0
    %3959 = vmatpush1.msra.mxu0 0.0
    %3960 = vmatprep.subr.mxu0 0.0
    %3961 = vmatpush1.msra.mxu0 0.0
    %3962 = vmatprep.subr.mxu0 0.0
    %3963 = vmatpush1.msra.mxu0 0.0
    %3964 = vmatprep.subr.mxu0 0.0
    %3965 = vmatpush1.msra.mxu0 0.0
    %3966 = vmatprep.subr.mxu0 0.0
    %3967 = vmatpush1.msra.mxu0 0.0
    %3968 = vmatprep.subr.mxu0 0.0
    %3969 = vmatpush1.msra.mxu0 0.0
    %3970 = vmatprep.subr.mxu0 0.0
    %3971 = vmatpush1.msra.mxu0 0.0
    %3972 = vmatprep.subr.mxu0 0.0
    %3973 = vmatpush1.msra.mxu0 0.0
    %3974 = vmatprep.subr.mxu0 0.0
    %3975 = vmatpush1.msra.mxu0 0.0
    %3976 = vmatprep.subr.mxu0 0.0
    %3977 = vmatpush1.msra.mxu0 0.0
    %3978 = vmatprep.subr.mxu0 0.0
    %3979 = vmatpush1.msra.mxu0 0.0
    %3980 = vmatprep.subr.mxu0 0.0
    %3981 = vmatpush1.msra.mxu0 0.0
    %3982 = vmatprep.mubr.f32.mxu0 0.0
    %3983 = vmatmul.mubr.f32.gmra.mrb[0].mxu0 %v3916
    %v3984 = vpop.f32.mrb[0].mxu0
    %v3985 = vadd.f32 0.0, %v3984
    %v3986 = vpop.f32.mrb[0].mxu0
    %3987 = vdwg.mxu0
    %v3988 = vadd.f32 %v3024, %v3985
    %v3989 = vmul.f32 %v3988, 0.5
    %v3990 = vtanh.pop %v3989
    %v3991 = vmul.f32 %v3990, 0.5
    %v3992 = vadd.f32 %v3991, 0.5
    %3994 = vrot.lane.b32.xlu0 %v3909, 32
    %v3995 = vpop.permute.xlu0 %3994
    %v3997 = vmul.f32 %v3992, %v3995
    %3999 = vrot.lane.b32.xlu0 %v3990, 64
    %v4000 = vpop.permute.xlu0 %3999
    %v4002 = vmul.f32 %v3992, %v4000
    %4004 = vrot.lane.b32.xlu0 %v4002, 32
    %v4005 = vpop.permute.xlu0 %4004
    %v4007 = vadd.f32 %v3997, %v4005
    %v4008 = vtanh.pop %v4007
    %4010 = vrot.lane.b32.xlu0 %v4008, 64
    %v4011 = vpop.permute.xlu0 %4010
    %v4013 = vmul.f32 %v3992, %v4011
    %4014 = vrot.lane.b32.xlu0 %v3902, 96
    %v4015 = vpop.permute.xlu0 %4014
    %v4017 = vsub.f32 %v4013, %v4015
    %4019 = vrot.lane.b32.xlu0 %v4017, 32
    %v4020 = vpop.permute.xlu0 %4019
    %v4022 = vmul.f32 %v108, %v4020
    %v4023 = vadd.f32 %v3902, %v4022
    %v4024 = vsub.f32 %v4007, %v3995
    %4026 = vrot.lane.b32.xlu0 %v4024, 96
    %v4027 = vpop.permute.xlu0 %4026
    %v4029 = vmul.f32 %v108, %v4027
    %v4030 = vadd.f32 %v3909, %v4029
    %4032 = vrot.lane.b32.xlu0 %v4013, 32
    %v4033 = vpop.permute.xlu0 %4032
    %v4035 = vmul.f32 %v108, %v4033
    %v4037 = vsel %vm1307, %v4023, 0
    %4039 = vmatprep.subr.mxu0 0.0
    %4040 = vmatpush1.msra.mxu0 %v2281
    %4041 = vmatprep.subr.mxu0 0.0
    %4042 = vmatpush1.msra.mxu0 %v2282
    %4043 = vmatprep.subr.mxu0 0.0
    %4044 = vmatpush1.msra.mxu0 %v2283
    %4045 = vmatprep.subr.mxu0 0.0
    %4046 = vmatpush1.msra.mxu0 %v2284
    %4047 = vmatprep.subr.mxu0 0.0
    %4048 = vmatpush1.msra.mxu0 0.0
    %4049 = vmatprep.subr.mxu0 0.0
    %4050 = vmatpush1.msra.mxu0 0.0
    %4051 = vmatprep.subr.mxu0 0.0
    %4052 = vmatpush1.msra.mxu0 0.0
    %4053 = vmatprep.subr.mxu0 0.0
    %4054 = vmatpush1.msra.mxu0 0.0
    %4055 = vmatprep.subr.mxu0 0.0
    %4056 = vmatpush1.msra.mxu0 0.0
    %4057 = vmatprep.subr.mxu0 0.0
    %4058 = vmatpush1.msra.mxu0 0.0
    %4059 = vmatprep.subr.mxu0 0.0
    %4060 = vmatpush1.msra.mxu0 0.0
    %4061 = vmatprep.subr.mxu0 0.0
    %4062 = vmatpush1.msra.mxu0 0.0
    %4063 = vmatprep.subr.mxu0 0.0
    %4064 = vmatpush1.msra.mxu0 0.0
    %4065 = vmatprep.subr.mxu0 0.0
    %4066 = vmatpush1.msra.mxu0 0.0
    %4067 = vmatprep.subr.mxu0 0.0
    %4068 = vmatpush1.msra.mxu0 0.0
    %4069 = vmatprep.subr.mxu0 0.0
    %4070 = vmatpush1.msra.mxu0 0.0
    %4071 = vmatprep.subr.mxu0 0.0
    %4072 = vmatpush1.msra.mxu0 0.0
    %4073 = vmatprep.subr.mxu0 0.0
    %4074 = vmatpush1.msra.mxu0 0.0
    %4075 = vmatprep.subr.mxu0 0.0
    %4076 = vmatpush1.msra.mxu0 0.0
    %4077 = vmatprep.subr.mxu0 0.0
    %4078 = vmatpush1.msra.mxu0 0.0
    %4079 = vmatprep.subr.mxu0 0.0
    %4080 = vmatpush1.msra.mxu0 0.0
    %4081 = vmatprep.subr.mxu0 0.0
    %4082 = vmatpush1.msra.mxu0 0.0
    %4083 = vmatprep.subr.mxu0 0.0
    %4084 = vmatpush1.msra.mxu0 0.0
    %4085 = vmatprep.subr.mxu0 0.0
    %4086 = vmatpush1.msra.mxu0 0.0
    %4087 = vmatprep.subr.mxu0 0.0
    %4088 = vmatpush1.msra.mxu0 0.0
    %4089 = vmatprep.subr.mxu0 0.0
    %4090 = vmatpush1.msra.mxu0 0.0
    %4091 = vmatprep.subr.mxu0 0.0
    %4092 = vmatpush1.msra.mxu0 0.0
    %4093 = vmatprep.subr.mxu0 0.0
    %4094 = vmatpush1.msra.mxu0 0.0
    %4095 = vmatprep.subr.mxu0 0.0
    %4096 = vmatpush1.msra.mxu0 0.0
    %4097 = vmatprep.subr.mxu0 0.0
    %4098 = vmatpush1.msra.mxu0 0.0
    %4099 = vmatprep.subr.mxu0 0.0
    %4100 = vmatpush1.msra.mxu0 0.0
    %4101 = vmatprep.subr.mxu0 0.0
    %4102 = vmatpush1.msra.mxu0 0.0
    %4103 = vmatprep.mubr.f32.mxu0 0.0
    %4104 = vmatmul.mubr.f32.gmra.mrb[0].mxu0 %v4037
    %v4105 = vpop.f32.mrb[0].mxu0
    %v4106 = vadd.f32 0.0, %v4105
    %v4107 = vpop.f32.mrb[0].mxu0
    %4108 = vdwg.mxu0
    %v4109 = vadd.f32 %v3165, %v4106
    %v4110 = vmul.f32 %v4109, 0.5
    %v4111 = vtanh.pop %v4110
    %v4112 = vmul.f32 %v4111, 0.5
    %v4113 = vadd.f32 %v4112, 0.5
    %4115 = vrot.lane.b32.xlu0 %v4030, 32
    %v4116 = vpop.permute.xlu0 %4115
    %v4118 = vmul.f32 %v4113, %v4116
    %4120 = vrot.lane.b32.xlu0 %v4111, 64
    %v4121 = vpop.permute.xlu0 %4120
    %v4123 = vmul.f32 %v4113, %v4121
    %4125 = vrot.lane.b32.xlu0 %v4123, 32
    %v4126 = vpop.permute.xlu0 %4125
    %v4128 = vadd.f32 %v4118, %v4126
    %v4129 = vtanh.pop %v4128
    %4131 = vrot.lane.b32.xlu0 %v4129, 64
    %v4132 = vpop.permute.xlu0 %4131
    %v4134 = vmul.f32 %v4113, %v4132
    %4135 = vrot.lane.b32.xlu0 %v4023, 96
    %v4136 = vpop.permute.xlu0 %4135
    %v4138 = vsub.f32 %v4134, %v4136
    %4140 = vrot.lane.b32.xlu0 %v4138, 32
    %v4141 = vpop.permute.xlu0 %4140
    %v4143 = vmul.f32 %v112, %v4141
    %v4144 = vadd.f32 %v4023, %v4143
    %v4145 = vsub.f32 %v4128, %v4116
    %4147 = vrot.lane.b32.xlu0 %v4145, 96
    %v4148 = vpop.permute.xlu0 %4147
    %v4150 = vmul.f32 %v112, %v4148
    %v4151 = vadd.f32 %v4030, %v4150
    %4153 = vrot.lane.b32.xlu0 %v4134, 32
    %v4154 = vpop.permute.xlu0 %4153
    %v4156 = vmul.f32 %v112, %v4154
    %v4158 = vsel %vm1307, %v4144, 0
    %4160 = vmatprep.subr.mxu0 0.0
    %4161 = vmatpush1.msra.mxu0 %v2281
    %4162 = vmatprep.subr.mxu0 0.0
    %4163 = vmatpush1.msra.mxu0 %v2282
    %4164 = vmatprep.subr.mxu0 0.0
    %4165 = vmatpush1.msra.mxu0 %v2283
    %4166 = vmatprep.subr.mxu0 0.0
    %4167 = vmatpush1.msra.mxu0 %v2284
    %4168 = vmatprep.subr.mxu0 0.0
    %4169 = vmatpush1.msra.mxu0 0.0
    %4170 = vmatprep.subr.mxu0 0.0
    %4171 = vmatpush1.msra.mxu0 0.0
    %4172 = vmatprep.subr.mxu0 0.0
    %4173 = vmatpush1.msra.mxu0 0.0
    %4174 = vmatprep.subr.mxu0 0.0
    %4175 = vmatpush1.msra.mxu0 0.0
    %4176 = vmatprep.subr.mxu0 0.0
    %4177 = vmatpush1.msra.mxu0 0.0
    %4178 = vmatprep.subr.mxu0 0.0
    %4179 = vmatpush1.msra.mxu0 0.0
    %4180 = vmatprep.subr.mxu0 0.0
    %4181 = vmatpush1.msra.mxu0 0.0
    %4182 = vmatprep.subr.mxu0 0.0
    %4183 = vmatpush1.msra.mxu0 0.0
    %4184 = vmatprep.subr.mxu0 0.0
    %4185 = vmatpush1.msra.mxu0 0.0
    %4186 = vmatprep.subr.mxu0 0.0
    %4187 = vmatpush1.msra.mxu0 0.0
    %4188 = vmatprep.subr.mxu0 0.0
    %4189 = vmatpush1.msra.mxu0 0.0
    %4190 = vmatprep.subr.mxu0 0.0
    %4191 = vmatpush1.msra.mxu0 0.0
    %4192 = vmatprep.subr.mxu0 0.0
    %4193 = vmatpush1.msra.mxu0 0.0
    %4194 = vmatprep.subr.mxu0 0.0
    %4195 = vmatpush1.msra.mxu0 0.0
    %4196 = vmatprep.subr.mxu0 0.0
    %4197 = vmatpush1.msra.mxu0 0.0
    %4198 = vmatprep.subr.mxu0 0.0
    %4199 = vmatpush1.msra.mxu0 0.0
    %4200 = vmatprep.subr.mxu0 0.0
    %4201 = vmatpush1.msra.mxu0 0.0
    %4202 = vmatprep.subr.mxu0 0.0
    %4203 = vmatpush1.msra.mxu0 0.0
    %4204 = vmatprep.subr.mxu0 0.0
    %4205 = vmatpush1.msra.mxu0 0.0
    %4206 = vmatprep.subr.mxu0 0.0
    %4207 = vmatpush1.msra.mxu0 0.0
    %4208 = vmatprep.subr.mxu0 0.0
    %4209 = vmatpush1.msra.mxu0 0.0
    %4210 = vmatprep.subr.mxu0 0.0
    %4211 = vmatpush1.msra.mxu0 0.0
    %4212 = vmatprep.subr.mxu0 0.0
    %4213 = vmatpush1.msra.mxu0 0.0
    %4214 = vmatprep.subr.mxu0 0.0
    %4215 = vmatpush1.msra.mxu0 0.0
    %4216 = vmatprep.subr.mxu0 0.0
    %4217 = vmatpush1.msra.mxu0 0.0
    %4218 = vmatprep.subr.mxu0 0.0
    %4219 = vmatpush1.msra.mxu0 0.0
    %4220 = vmatprep.subr.mxu0 0.0
    %4221 = vmatpush1.msra.mxu0 0.0
    %4222 = vmatprep.subr.mxu0 0.0
    %4223 = vmatpush1.msra.mxu0 0.0
    %4224 = vmatprep.mubr.f32.mxu0 0.0
    %4225 = vmatmul.mubr.f32.gmra.mrb[0].mxu0 %v4158
    %v4226 = vpop.f32.mrb[0].mxu0
    %v4227 = vadd.f32 0.0, %v4226
    %v4228 = vpop.f32.mrb[0].mxu0
    %4229 = vdwg.mxu0
    %v4230 = vadd.f32 %v3306, %v4227
    %v4231 = vmul.f32 %v4230, 0.5
    %v4232 = vtanh.pop %v4231
    %v4233 = vmul.f32 %v4232, 0.5
    %v4234 = vadd.f32 %v4233, 0.5
    %4236 = vrot.lane.b32.xlu0 %v4151, 32
    %v4237 = vpop.permute.xlu0 %4236
    %v4239 = vmul.f32 %v4234, %v4237
    %4241 = vrot.lane.b32.xlu0 %v4232, 64
    %v4242 = vpop.permute.xlu0 %4241
    %v4244 = vmul.f32 %v4234, %v4242
    %4246 = vrot.lane.b32.xlu0 %v4244, 32
    %v4247 = vpop.permute.xlu0 %4246
    %v4249 = vadd.f32 %v4239, %v4247
    %v4250 = vtanh.pop %v4249
    %4252 = vrot.lane.b32.xlu0 %v4250, 64
    %v4253 = vpop.permute.xlu0 %4252
    %v4255 = vmul.f32 %v4234, %v4253
    %4256 = vrot.lane.b32.xlu0 %v4144, 96
    %v4257 = vpop.permute.xlu0 %4256
    %v4259 = vsub.f32 %v4255, %v4257
    %4261 = vrot.lane.b32.xlu0 %v4259, 32
    %v4262 = vpop.permute.xlu0 %4261
    %v4264 = vmul.f32 %v116, %v4262
    %v4265 = vadd.f32 %v4144, %v4264
    %v4266 = vsub.f32 %v4249, %v4237
    %4268 = vrot.lane.b32.xlu0 %v4266, 96
    %v4269 = vpop.permute.xlu0 %4268
    %v4271 = vmul.f32 %v116, %v4269
    %v4272 = vadd.f32 %v4151, %v4271
    %4274 = vrot.lane.b32.xlu0 %v4255, 32
    %v4275 = vpop.permute.xlu0 %4274
    %v4277 = vmul.f32 %v116, %v4275
    %v4279 = vsel %vm1307, %v4265, 0
    %4281 = vmatprep.subr.mxu0 0.0
    %4282 = vmatpush1.msra.mxu0 %v2281
    %4283 = vmatprep.subr.mxu0 0.0
    %4284 = vmatpush1.msra.mxu0 %v2282
    %4285 = vmatprep.subr.mxu0 0.0
    %4286 = vmatpush1.msra.mxu0 %v2283
    %4287 = vmatprep.subr.mxu0 0.0
    %4288 = vmatpush1.msra.mxu0 %v2284
    %4289 = vmatprep.subr.mxu0 0.0
    %4290 = vmatpush1.msra.mxu0 0.0
    %4291 = vmatprep.subr.mxu0 0.0
    %4292 = vmatpush1.msra.mxu0 0.0
    %4293 = vmatprep.subr.mxu0 0.0
    %4294 = vmatpush1.msra.mxu0 0.0
    %4295 = vmatprep.subr.mxu0 0.0
    %4296 = vmatpush1.msra.mxu0 0.0
    %4297 = vmatprep.subr.mxu0 0.0
    %4298 = vmatpush1.msra.mxu0 0.0
    %4299 = vmatprep.subr.mxu0 0.0
    %4300 = vmatpush1.msra.mxu0 0.0
    %4301 = vmatprep.subr.mxu0 0.0
    %4302 = vmatpush1.msra.mxu0 0.0
    %4303 = vmatprep.subr.mxu0 0.0
    %4304 = vmatpush1.msra.mxu0 0.0
    %4305 = vmatprep.subr.mxu0 0.0
    %4306 = vmatpush1.msra.mxu0 0.0
    %4307 = vmatprep.subr.mxu0 0.0
    %4308 = vmatpush1.msra.mxu0 0.0
    %4309 = vmatprep.subr.mxu0 0.0
    %4310 = vmatpush1.msra.mxu0 0.0
    %4311 = vmatprep.subr.mxu0 0.0
    %4312 = vmatpush1.msra.mxu0 0.0
    %4313 = vmatprep.subr.mxu0 0.0
    %4314 = vmatpush1.msra.mxu0 0.0
    %4315 = vmatprep.subr.mxu0 0.0
    %4316 = vmatpush1.msra.mxu0 0.0
    %4317 = vmatprep.subr.mxu0 0.0
    %4318 = vmatpush1.msra.mxu0 0.0
    %4319 = vmatprep.subr.mxu0 0.0
    %4320 = vmatpush1.msra.mxu0 0.0
    %4321 = vmatprep.subr.mxu0 0.0
    %4322 = vmatpush1.msra.mxu0 0.0
    %4323 = vmatprep.subr.mxu0 0.0
    %4324 = vmatpush1.msra.mxu0 0.0
    %4325 = vmatprep.subr.mxu0 0.0
    %4326 = vmatpush1.msra.mxu0 0.0
    %4327 = vmatprep.subr.mxu0 0.0
    %4328 = vmatpush1.msra.mxu0 0.0
    %4329 = vmatprep.subr.mxu0 0.0
    %4330 = vmatpush1.msra.mxu0 0.0
    %4331 = vmatprep.subr.mxu0 0.0
    %4332 = vmatpush1.msra.mxu0 0.0
    %4333 = vmatprep.subr.mxu0 0.0
    %4334 = vmatpush1.msra.mxu0 0.0
    %4335 = vmatprep.subr.mxu0 0.0
    %4336 = vmatpush1.msra.mxu0 0.0
    %4337 = vmatprep.subr.mxu0 0.0
    %4338 = vmatpush1.msra.mxu0 0.0
    %4339 = vmatprep.subr.mxu0 0.0
    %4340 = vmatpush1.msra.mxu0 0.0
    %4341 = vmatprep.subr.mxu0 0.0
    %4342 = vmatpush1.msra.mxu0 0.0
    %4343 = vmatprep.subr.mxu0 0.0
    %4344 = vmatpush1.msra.mxu0 0.0
    %4345 = vmatprep.mubr.f32.mxu0 0.0
    %4346 = vmatmul.mubr.f32.gmra.mrb[0].mxu0 %v4279
    %v4347 = vpop.f32.mrb[0].mxu0
    %v4348 = vadd.f32 0.0, %v4347
    %v4349 = vpop.f32.mrb[0].mxu0
    %4350 = vdwg.mxu0
    %v4351 = vadd.f32 %v3447, %v4348
    %v4352 = vmul.f32 %v4351, 0.5
    %v4353 = vtanh.pop %v4352
    %v4354 = vmul.f32 %v4353, 0.5
    %v4355 = vadd.f32 %v4354, 0.5
    %4357 = vrot.lane.b32.xlu0 %v4272, 32
    %v4358 = vpop.permute.xlu0 %4357
    %v4360 = vmul.f32 %v4355, %v4358
    %4362 = vrot.lane.b32.xlu0 %v4353, 64
    %v4363 = vpop.permute.xlu0 %4362
    %v4365 = vmul.f32 %v4355, %v4363
    %4367 = vrot.lane.b32.xlu0 %v4365, 32
    %v4368 = vpop.permute.xlu0 %4367
    %v4370 = vadd.f32 %v4360, %v4368
    %v4371 = vtanh.pop %v4370
    %4373 = vrot.lane.b32.xlu0 %v4371, 64
    %v4374 = vpop.permute.xlu0 %4373
    %v4376 = vmul.f32 %v4355, %v4374
    %4377 = vrot.lane.b32.xlu0 %v4265, 96
    %v4378 = vpop.permute.xlu0 %4377
    %v4380 = vsub.f32 %v4376, %v4378
    %4382 = vrot.lane.b32.xlu0 %v4380, 32
    %v4383 = vpop.permute.xlu0 %4382
    %v4385 = vmul.f32 %v120, %v4383
    %v4386 = vadd.f32 %v4265, %v4385
    %v4387 = vsub.f32 %v4370, %v4358
    %4389 = vrot.lane.b32.xlu0 %v4387, 96
    %v4390 = vpop.permute.xlu0 %4389
    %v4392 = vmul.f32 %v120, %v4390
    %v4393 = vadd.f32 %v4272, %v4392
    %4395 = vrot.lane.b32.xlu0 %v4376, 32
    %v4396 = vpop.permute.xlu0 %4395
    %v4398 = vmul.f32 %v120, %v4396
    %s4399 = scalar_lea.vmem [#allocation8], 8
    %4400 = vst.msk [vmem:[%s4399] sm:$0xf] %vm2262, %v4386
    %s4401 = scalar_lea.vmem [#allocation9], 8
    %4402 = vst.msk [vmem:[%s4401] sm:$0xf] %vm2262, %v4393
    %4404 = vrot.lane.b32.xlu0 %v4386, 112
    %v4405 = vpop.permute.xlu0 %4404
    %s4407 = scalar_lea.vmem [#allocation8], 12
    %4408 = vst.msk [vmem:[%s4407] sm:$0xf] %vm2262, %v4405
    %4410 = vrot.lane.b32.xlu0 %v4393, 112
    %v4411 = vpop.permute.xlu0 %4410
    %s4413 = scalar_lea.vmem [#allocation9], 12
    %4414 = vst.msk [vmem:[%s4413] sm:$0xf] %vm2262, %v4411
    %v4415 = vmul.f32 %v3544, %v122
    %v4416 = vmul.f32 %v4398, %v123
    %v4417 = vadd.f32 %v4415, %v4416
    %vm4418 = vcmask 257024
    %4419 = vst.msk [vmem:[%s10] sm:$0xf] %vm4418, %v4417
    %v4420 = vmul.f32 %v3672, %v122
    %v4421 = vmul.f32 %v4277, %v123
    %v4422 = vadd.f32 %v4420, %v4421
    %s4423 = scalar_lea.vmem %s10, 4
    %4424 = vst.msk [vmem:[%s4423] sm:$0xf] %vm4418, %v4422
    %v4425 = vmul.f32 %v3793, %v122
    %v4426 = vmul.f32 %v4156, %v123
    %v4427 = vadd.f32 %v4425, %v4426
    %s4428 = scalar_lea.vmem %s10, 8
    %4429 = vst.msk [vmem:[%s4428] sm:$0xf] %vm4418, %v4427
    %v4430 = vmul.f32 %v3914, %v122
    %v4431 = vmul.f32 %v4035, %v123
    %v4432 = vadd.f32 %v4430, %v4431
    %s4433 = scalar_lea.vmem %s10, 12
    %4434 = vst.msk [vmem:[%s4433] sm:$0xf] %vm4418, %v4432
    %v4435 = vmul.f32 %v4035, %v122
    %v4436 = vmul.f32 %v3914, %v123
    %v4437 = vadd.f32 %v4435, %v4436
    %s4438 = scalar_lea.vmem %s10, 16
    %4439 = vst.msk [vmem:[%s4438] sm:$0xf] %vm4418, %v4437
    %v4440 = vmul.f32 %v4156, %v122
    %v4441 = vmul.f32 %v3793, %v123
    %v4442 = vadd.f32 %v4440, %v4441
    %s4443 = scalar_lea.vmem %s10, 20
    %4444 = vst.msk [vmem:[%s4443] sm:$0xf] %vm4418, %v4442
    %v4445 = vmul.f32 %v4277, %v122
    %v4446 = vmul.f32 %v3672, %v123
    %v4447 = vadd.f32 %v4445, %v4446
    %s4448 = scalar_lea.vmem %s10, 24
    %4449 = vst.msk [vmem:[%s4448] sm:$0xf] %vm4418, %v4447
    %v4450 = vmul.f32 %v4398, %v122
    %v4451 = vmul.f32 %v3544, %v123
    %v4452 = vadd.f32 %v4450, %v4451
    %s4453 = scalar_lea.vmem %s10, 28
    %4454 = vst.msk [vmem:[%s4453] sm:$0xf] %vm4418, %v4452
    %4455 = vst.msk [vmem:[#allocation11] sm:$0xf] %vm4418, %v4386
    // Predicated region
    $region54: #{a_call__.1} parent=1 // pred_check
      _
    $region55: #{a_call__.1} parent=1 // pred_check_branch
      %4457 = sbr.rel (0) target = $region57
    $region56: #{a_call__.1} parent=1 // pred_region
      _
    $region57: #{a_call__.1} parent=1 // pred_fallthru
      _
    // Predicated region
    $region58: #{a_call__.1} parent=1 // pred_check
      _
    $region59: #{a_call__.1} parent=1 // pred_check_branch
      %4459 = sbr.rel (0) target = $region61
    $region60: #{a_call__.1} parent=1 // pred_region
      %s4461 = ssub.s32 256, 256
      %4462 = vsyncadd [#allocation4], %s4461
      %s4463 = sshll.u32 [#allocation8], 4
      %s4464 = int_to_ptr.vmem [resolvable:$true] %s4463
      %4469 = dma.vmem_to_hbm [thread:$0]  %s4464, 256, %s11, [#allocation4], 64, 64, 4
    $region61: #{a_call__.1} parent=1 // pred_fallthru
      _
    // Predicated region
    $region62: #{a_call__.1} parent=1 // pred_check
      _
    $region63: #{a_call__.1} parent=1 // pred_check_branch
      %4471 = sbr.rel (0) target = $region65
    $region64: #{a_call__.1} parent=1 // pred_region
      %s4473 = ssub.s32 256, 256
      %4474 = vsyncadd [#allocation10], %s4473
      %s4475 = sshll.u32 [#allocation9], 4
      %s4476 = int_to_ptr.vmem [resolvable:$true] %s4475
      %4481 = dma.vmem_to_hbm [thread:$0]  %s4476, 256, %s12, [#allocation10], 64, 64, 4
    $region65: #{a_call__.1} parent=1 // pred_fallthru
      _
    // Predicated region
    $region66: #{a_call__.1} parent=1 // pred_check
      _
    $region67: #{a_call__.1} parent=1 // pred_check_branch
      %4483 = sbr.rel (0) target = $region69
    $region68: #{a_call__.1} parent=1 // pred_region
      %s4485 = ssub.s32 64, 64
      %4486 = vsyncadd [#allocation10], %s4485
      %s4488 = sshll.u32 [#allocation11], 4
      %s4489 = int_to_ptr.vmem [resolvable:$true] %s4488
      %4491 = dma.vmem_to_hbm [thread:$0]  %s4489, 64, %s13, [#allocation10]
    $region69: #{a_call__.1} parent=1 // pred_fallthru
      _
    // Predicated region
    $region70: #{a_call__.1} parent=1 // pred_check
      _
    $region71: #{a_call__.1} parent=1 // pred_check_branch
      %4493 = sbr.rel (0) target = $region73
    $region72: #{a_call__.1} parent=1 // pred_region
      _
    $region73: #{a_call__.1} parent=1 // pred_fallthru
      _
    // Predicated region
    $region74: #{a_call__.1} parent=1 // pred_check
      _
    $region75: #{a_call__.1} parent=1 // pred_check_branch
      %4495 = sbr.rel (0) target = $region77
    $region76: #{a_call__.1} parent=1 // pred_region
      %4496 = dma.done [#allocation4], 256
    $region77: #{a_call__.1} parent=1 // pred_fallthru
      _
    // Predicated region
    $region78: #{a_call__.1} parent=1 // pred_check
      _
    $region79: #{a_call__.1} parent=1 // pred_check_branch
      %4498 = sbr.rel (0) target = $region81
    $region80: #{a_call__.1} parent=1 // pred_region
      %4499 = dma.done [#allocation10], 256
    $region81: #{a_call__.1} parent=1 // pred_fallthru
      _
    // Predicated region
    $region82: #{a_call__.1} parent=1 // pred_check
      _
    $region83: #{a_call__.1} parent=1 // pred_check_branch
      %4501 = sbr.rel (0) target = $region85
    $region84: #{a_call__.1} parent=1 // pred_region
      %4502 = dma.done [#allocation10], 64
    $region85: #{a_call__.1} parent=1 // pred_fallthru
      _
    %4503 = vsyncpa [#allocation3], 1
    %4504 = vsyncpa [#allocation6], 1
    %4505 = vsyncpa [#allocation4], 1
    %4506 = vsyncpa [#allocation10], 1

</llo_original>
